<compile_context>
chip_gen: v7x
topology: tpu7x:2x2x1
jax: 0.10.0
libtpu: 0.0.40
codegen_flags: <defaults>
</compile_context>

<pallas_src>
import functools

import numpy as np
import jax
import jax.numpy as jnp
from jax import lax
from jax.experimental import pallas as pl
from jax.experimental.pallas import tpu as pltpu


def _conv3x3_vpu(xs, w_ref, b_ref, cout, act, row_ok, col_ok, H, W):
    """3x3 'same' conv on per-channel (H, W) f32 planes, VPU + XLU only.

    xs      : list of cin arrays, each (H, W) f32
    w_ref   : SMEM ref, flat f32[9*cin*cout], layout [tap(kh*3+kw), cin, cout]
    b_ref   : SMEM ref, f32[cout]
    row_ok  : {-1: bool(H,W), +1: bool(H,W)} row-validity masks (dh != 0)
    col_ok  : {-1: bool(H,W), +1: bool(H,W)} column-validity masks (dw != 0)
    returns : list of cout arrays, each (H, W) f32
    """
    cin = len(xs)

    # Hoist every SMEM scalar read ahead of the vector work (one read each).
    wv = [w_ref[k] for k in range(9 * cin * cout)]
    bv = [b_ref[co] for co in range(cout)]

    # Column-shifted, zero-padded copies of every input plane: 2*cin lane
    # rotations (XLU) + 2*cin selects per conv.  dw == 0 is the plane itself.
    tcol = {0: xs}
    for dw in (-1, 1):
        tcol[dw] = [
            jnp.where(col_ok[dw], pltpu.roll(xs[c], shift=(-dw) % W, axis=1), 0.0)
            for c in range(cin)
        ]

    # Bias folded into the accumulator init (saves one full-width add per cout).
    acc = [jnp.full((H, W), bv[co], dtype=jnp.float32) for co in range(cout)]
    for dh in (-1, 0, 1):
        dhi = dh + 1
        for co in range(cout):
            # Row shift / row mask are linear, so they are applied ONCE to the
            # (dw, cin)-reduced partial: 2 sublane rolls + 2 selects per cout
            # instead of per (tap, cin).
            p = None
            for dw in (-1, 0, 1):
                dwi = dw + 1
                for c in range(cin):
                    w = wv[((dhi * 3 + dwi) * cin + c) * cout + co]
                    t = w * tcol[dw][c]                      # scalar-bcast VPU FMA
                    p = t if p is None else p + t
            if dh != 0:
                p = pltpu.roll(p, shift=(-dh) % H, axis=0)   # sublane rotate (XLU)
                p = jnp.where(row_ok[dh], p, 0.0)
            acc[co] = acc[co] + p

    if act == "relu":
        return [jnp.maximum(a, 0.0) for a in acc]
    if act == "sigmoid":
        return [jax.nn.sigmoid(a) for a in acc]
    return acc


def _detail_kernel(x_ref,
                   w1_ref, b1_ref, w2_ref, b2_ref, w3_ref, b3_ref, w4_ref, b4_ref,
                   out_ref, d_ref, *, H, W, C, mid):
    # Border-validity masks generated in-kernel (no HBM mask constant, no DMA).
    ri = lax.broadcasted_iota(jnp.int32, (H, W), 0)
    cj = lax.broadcasted_iota(jnp.int32, (H, W), 1)
    row_ok = {-1: ri >= 1, 1: ri < (H - 1)}
    col_ok = {-1: cj >= 1, 1: cj < (W - 1)}

    # Per-channel (H, W) planes: sublane- and lane-dense.
    x = [x_ref[0, c].astype(jnp.float32) for c in range(C)]

    h = _conv3x3_vpu(x, w1_ref, b1_ref, mid, "relu", row_ok, col_ok, H, W)   # downd conv1
    d = _conv3x3_vpu(h, w2_ref, b2_ref, 1, "sigmoid", row_ok, col_ok, H, W)  # downd conv2
    u = _conv3x3_vpu(d, w3_ref, b3_ref, mid, "relu", row_ok, col_ok, H, W)   # upd conv1
    y = _conv3x3_vpu(u, w4_ref, b4_ref, C, "relu", row_ok, col_ok, H, W)     # upd conv2

    # Per-channel lane-dense stores (no sublane concat / relayout, unmasked vst
    # when W is a multiple of 128).
    for c in range(C):
        out_ref[0, c] = (y[c] + x[c]).astype(out_ref.dtype)
    d_ref[0, 0] = d[0].astype(d_ref.dtype)


def pack_params(params):
    """One-time repack of PyTorch-layout params into the kernel layout."""
    def w_flat(w_oihw):
        # (Cout, Cin, 3, 3) -> flat [tap(kh*3+kw), cin, cout]
        return jnp.transpose(w_oihw, (2, 3, 1, 0)).reshape(-1).astype(jnp.float32)
    return {
        "w1": w_flat(params["d1_w"]), "b1": params["d1_b"].astype(jnp.float32),
        "w2": w_flat(params["d2_w"]), "b2": params["d2_b"].astype(jnp.float32),
        "w3": w_flat(params["u1_w"]), "b3": params["u1_b"].astype(jnp.float32),
        "w4": w_flat(params["u2_w"]), "b4": params["u2_b"].astype(jnp.float32),
    }


@jax.jit
def detailbranch_forward(x_nchw, packed):
    """Fused Pallas implementation. Returns (upd(downd(x)) + x, downd(x)), NCHW."""
    B, C, H, W = x_nchw.shape
    mid = packed["b1"].shape[0]

    smem = pl.BlockSpec(memory_space=pltpu.MemorySpace.SMEM)
    kern = functools.partial(_detail_kernel, H=H, W=W, C=C, mid=mid)

    out, d = pl.pallas_call(
        kern,
        out_shape=(jax.ShapeDtypeStruct((B, C, H, W), x_nchw.dtype),
                   jax.ShapeDtypeStruct((B, 1, H, W), x_nchw.dtype)),
        grid=(B,),
        in_specs=[
            pl.BlockSpec((1, C, H, W), lambda i: (i, 0, 0, 0)),   # x tile (VMEM)
            smem, smem, smem, smem, smem, smem, smem, smem,        # weights / biases
        ],
        out_specs=(pl.BlockSpec((1, C, H, W), lambda i: (i, 0, 0, 0)),
                   pl.BlockSpec((1, 1, H, W), lambda i: (i, 0, 0, 0))),
        compiler_params=pltpu.CompilerParams(
            dimension_semantics=("parallel",),
            # Explicit cap with headroom for double buffering; fits every
            # generation (v7x physical VMEM is 64 MiB).  Re-derive together
            # with the band height once row-banding is added.
            vmem_limit_bytes=48 * 1024 * 1024),
    )(x_nchw,
      packed["w1"], packed["b1"], packed["w2"], packed["b2"],
      packed["w3"], packed["b3"], packed["w4"], packed["b4"])

    return out, d


def init_params(key, num, rate=0.5):
    mid = int(num * rate)
    ks = jax.random.split(key, 8)
    scale = 0.1

    def w(k, cout, cin):
        return scale * jax.random.normal(k, (cout, cin, 3, 3), jnp.float32)

    def bias(k, c):
        return scale * jax.random.normal(k, (c,), jnp.float32)

    return {
        "d1_w": w(ks[0], mid, num), "d1_b": bias(ks[1], mid),
        "d2_w": w(ks[2], 1, mid),   "d2_b": bias(ks[3], 1),
        "u1_w": w(ks[4], mid, 1),   "u1_b": bias(ks[5], mid),
        "u2_w": w(ks[6], num, mid), "u2_b": bias(ks[7], num),
    }


# ----- pure-JAX reference (for correctness check only) -----
def _conv_ref(x_nchw, w_oihw, b, act):
    y = lax.conv_general_dilated(
        x_nchw, w_oihw, window_strides=(1, 1), padding=((1, 1), (1, 1)),
        dimension_numbers=("NCHW", "OIHW", "NCHW"))
    y = y + b[None, :, None, None]
    if act == "relu":
        y = jnp.maximum(y, 0.0)
    elif act == "sigmoid":
        y = jax.nn.sigmoid(y)
    return y


def detailbranch_ref(x_nchw, params):
    h = _conv_ref(x_nchw, params["d1_w"], params["d1_b"], "relu")
    d = _conv_ref(h, params["d2_w"], params["d2_b"], "sigmoid")
    u = _conv_ref(d, params["u1_w"], params["u1_b"], "relu")
    out = _conv_ref(u, params["u2_w"], params["u2_b"], "relu") + x_nchw
    return out, d


if __name__ == "__main__":
    num, rate = 4, 0.5
    B, H, W = 2, 16, 128   # W chosen as a multiple of 128 (lane-dense planes)

    key = jax.random.PRNGKey(0)
    kx, kp = jax.random.split(key)
    x = jax.random.normal(kx, (B, num, H, W), jnp.float32)  # NCHW, like PyTorch
    params = init_params(kp, num, rate)
    packed = pack_params(params)   # one-time repack into kernel-friendly layout

    out, d = detailbranch_forward(x, packed)
    out = jax.block_until_ready(out)
    d = jax.block_until_ready(d)

    ref_out, ref_d = detailbranch_ref(x, params)
    np.testing.assert_allclose(np.asarray(out), np.asarray(ref_out), rtol=2e-4, atol=2e-4)
    np.testing.assert_allclose(np.asarray(d), np.asarray(ref_d), rtol=2e-4, atol=2e-4)

    assert out.shape == (B, num, H, W) and d.shape == (B, 1, H, W)
    print("KERNEL_OK")
</pallas_src>

<mosaic_0001>
module attributes {stable_mosaic.version = 11 : i64} {
  func.func @_detail_kernel(%arg0: i32, %arg1: memref<1x4x16x128xf32, #tpu.memory_space<vmem>>, %arg2: memref<72xf32, #tpu.memory_space<smem>>, %arg3: memref<2xf32, #tpu.memory_space<smem>>, %arg4: memref<18xf32, #tpu.memory_space<smem>>, %arg5: memref<1xf32, #tpu.memory_space<smem>>, %arg6: memref<18xf32, #tpu.memory_space<smem>>, %arg7: memref<2xf32, #tpu.memory_space<smem>>, %arg8: memref<72xf32, #tpu.memory_space<smem>>, %arg9: memref<4xf32, #tpu.memory_space<smem>>, %arg10: memref<1x4x16x128xf32, #tpu.memory_space<vmem>>, %arg11: memref<1x1x16x128xf32, #tpu.memory_space<vmem>>) attributes {dimension_semantics = [#tpu.dimension_semantics<parallel>], iteration_bounds = array<i64: 2>, scalar_prefetch = 0 : i64, scratch_operands = 0 : i64, tpu.core_type = #tpu.core_type<tc>, window_params = [{transform_indices = @transform_0, window_bounds = array<i64: 1, 4, 16, 128>}, {transform_indices = @transform_1, window_bounds = array<i64: 72>}, {transform_indices = @transform_2, window_bounds = array<i64: 2>}, {transform_indices = @transform_3, window_bounds = array<i64: 18>}, {transform_indices = @transform_4, window_bounds = array<i64: 1>}, {transform_indices = @transform_5, window_bounds = array<i64: 18>}, {transform_indices = @transform_6, window_bounds = array<i64: 2>}, {transform_indices = @transform_7, window_bounds = array<i64: 72>}, {transform_indices = @transform_8, window_bounds = array<i64: 4>}, {transform_indices = @transform_9, window_bounds = array<i64: 1, 4, 16, 128>}, {transform_indices = @transform_10, window_bounds = array<i64: 1, 1, 16, 128>}]} {
    %0 = tpu.iota {dimensions = array<i32: 0>} : vector<16x128xi32>
    %1 = tpu.iota {dimensions = array<i32: 1>} : vector<16x128xi32>
    %c1_i32 = arith.constant 1 : i32
    %2 = vector.broadcast %c1_i32 : i32 to vector<16x128xi32>
    %3 = arith.cmpi sge, %0, %2 : vector<16x128xi32>
    %c15_i32 = arith.constant 15 : i32
    %4 = vector.broadcast %c15_i32 : i32 to vector<16x128xi32>
    %5 = arith.cmpi slt, %0, %4 : vector<16x128xi32>
    %c1_i32_0 = arith.constant 1 : i32
    %6 = vector.broadcast %c1_i32_0 : i32 to vector<16x128xi32>
    %7 = arith.cmpi sge, %1, %6 : vector<16x128xi32>
    %c127_i32 = arith.constant 127 : i32
    %8 = vector.broadcast %c127_i32 : i32 to vector<16x128xi32>
    %9 = arith.cmpi slt, %1, %8 : vector<16x128xi32>
    %c0 = arith.constant 0 : index
    %c0_1 = arith.constant 0 : index
    %c0_2 = arith.constant 0 : index
    %c0_3 = arith.constant 0 : index
    %10 = vector.load %arg1[%c0, %c0_1, %c0_2, %c0_3] : memref<1x4x16x128xf32, #tpu.memory_space<vmem>>, vector<1x1x16x128xf32>
    %11 = vector.shape_cast %10 : vector<1x1x16x128xf32> to vector<16x128xf32>
    %c0_4 = arith.constant 0 : index
    %c1 = arith.constant 1 : index
    %c0_5 = arith.constant 0 : index
    %c0_6 = arith.constant 0 : index
    %12 = vector.load %arg1[%c0_4, %c1, %c0_5, %c0_6] : memref<1x4x16x128xf32, #tpu.memory_space<vmem>>, vector<1x1x16x128xf32>
    %13 = vector.shape_cast %12 : vector<1x1x16x128xf32> to vector<16x128xf32>
    %c0_7 = arith.constant 0 : index
    %c2 = arith.constant 2 : index
    %c0_8 = arith.constant 0 : index
    %c0_9 = arith.constant 0 : index
    %14 = vector.load %arg1[%c0_7, %c2, %c0_8, %c0_9] : memref<1x4x16x128xf32, #tpu.memory_space<vmem>>, vector<1x1x16x128xf32>
    %15 = vector.shape_cast %14 : vector<1x1x16x128xf32> to vector<16x128xf32>
    %c0_10 = arith.constant 0 : index
    %c3 = arith.constant 3 : index
    %c0_11 = arith.constant 0 : index
    %c0_12 = arith.constant 0 : index
    %16 = vector.load %arg1[%c0_10, %c3, %c0_11, %c0_12] : memref<1x4x16x128xf32, #tpu.memory_space<vmem>>, vector<1x1x16x128xf32>
    %17 = vector.shape_cast %16 : vector<1x1x16x128xf32> to vector<16x128xf32>
    %c0_13 = arith.constant 0 : index
    %18 = memref.load %arg2[%c0_13] : memref<72xf32, #tpu.memory_space<smem>>
    %c1_14 = arith.constant 1 : index
    %19 = memref.load %arg2[%c1_14] : memref<72xf32, #tpu.memory_space<smem>>
    %c2_15 = arith.constant 2 : index
    %20 = memref.load %arg2[%c2_15] : memref<72xf32, #tpu.memory_space<smem>>
    %c3_16 = arith.constant 3 : index
    %21 = memref.load %arg2[%c3_16] : memref<72xf32, #tpu.memory_space<smem>>
    %c4 = arith.constant 4 : index
    %22 = memref.load %arg2[%c4] : memref<72xf32, #tpu.memory_space<smem>>
    %c5 = arith.constant 5 : index
    %23 = memref.load %arg2[%c5] : memref<72xf32, #tpu.memory_space<smem>>
    %c6 = arith.constant 6 : index
    %24 = memref.load %arg2[%c6] : memref<72xf32, #tpu.memory_space<smem>>
    %c7 = arith.constant 7 : index
    %25 = memref.load %arg2[%c7] : memref<72xf32, #tpu.memory_space<smem>>
    %c8 = arith.constant 8 : index
    %26 = memref.load %arg2[%c8] : memref<72xf32, #tpu.memory_space<smem>>
    %c9 = arith.constant 9 : index
    %27 = memref.load %arg2[%c9] : memref<72xf32, #tpu.memory_space<smem>>
    %c10 = arith.constant 10 : index
    %28 = memref.load %arg2[%c10] : memref<72xf32, #tpu.memory_space<smem>>
    %c11 = arith.constant 11 : index
    %29 = memref.load %arg2[%c11] : memref<72xf32, #tpu.memory_space<smem>>
    %c12 = arith.constant 12 : index
    %30 = memref.load %arg2[%c12] : memref<72xf32, #tpu.memory_space<smem>>
    %c13 = arith.constant 13 : index
    %31 = memref.load %arg2[%c13] : memref<72xf32, #tpu.memory_space<smem>>
    %c14 = arith.constant 14 : index
    %32 = memref.load %arg2[%c14] : memref<72xf32, #tpu.memory_space<smem>>
    %c15 = arith.constant 15 : index
    %33 = memref.load %arg2[%c15] : memref<72xf32, #tpu.memory_space<smem>>
    %c16 = arith.constant 16 : index
    %34 = memref.load %arg2[%c16] : memref<72xf32, #tpu.memory_space<smem>>
    %c17 = arith.constant 17 : index
    %35 = memref.load %arg2[%c17] : memref<72xf32, #tpu.memory_space<smem>>
    %c18 = arith.constant 18 : index
    %36 = memref.load %arg2[%c18] : memref<72xf32, #tpu.memory_space<smem>>
    %c19 = arith.constant 19 : index
    %37 = memref.load %arg2[%c19] : memref<72xf32, #tpu.memory_space<smem>>
    %c20 = arith.constant 20 : index
    %38 = memref.load %arg2[%c20] : memref<72xf32, #tpu.memory_space<smem>>
    %c21 = arith.constant 21 : index
    %39 = memref.load %arg2[%c21] : memref<72xf32, #tpu.memory_space<smem>>
    %c22 = arith.constant 22 : index
    %40 = memref.load %arg2[%c22] : memref<72xf32, #tpu.memory_space<smem>>
    %c23 = arith.constant 23 : index
    %41 = memref.load %arg2[%c23] : memref<72xf32, #tpu.memory_space<smem>>
    %c24 = arith.constant 24 : index
    %42 = memref.load %arg2[%c24] : memref<72xf32, #tpu.memory_space<smem>>
    %c25 = arith.constant 25 : index
    %43 = memref.load %arg2[%c25] : memref<72xf32, #tpu.memory_space<smem>>
    %c26 = arith.constant 26 : index
    %44 = memref.load %arg2[%c26] : memref<72xf32, #tpu.memory_space<smem>>
    %c27 = arith.constant 27 : index
    %45 = memref.load %arg2[%c27] : memref<72xf32, #tpu.memory_space<smem>>
    %c28 = arith.constant 28 : index
    %46 = memref.load %arg2[%c28] : memref<72xf32, #tpu.memory_space<smem>>
    %c29 = arith.constant 29 : index
    %47 = memref.load %arg2[%c29] : memref<72xf32, #tpu.memory_space<smem>>
    %c30 = arith.constant 30 : index
    %48 = memref.load %arg2[%c30] : memref<72xf32, #tpu.memory_space<smem>>
    %c31 = arith.constant 31 : index
    %49 = memref.load %arg2[%c31] : memref<72xf32, #tpu.memory_space<smem>>
    %c32 = arith.constant 32 : index
    %50 = memref.load %arg2[%c32] : memref<72xf32, #tpu.memory_space<smem>>
    %c33 = arith.constant 33 : index
    %51 = memref.load %arg2[%c33] : memref<72xf32, #tpu.memory_space<smem>>
    %c34 = arith.constant 34 : index
    %52 = memref.load %arg2[%c34] : memref<72xf32, #tpu.memory_space<smem>>
    %c35 = arith.constant 35 : index
    %53 = memref.load %arg2[%c35] : memref<72xf32, #tpu.memory_space<smem>>
    %c36 = arith.constant 36 : index
    %54 = memref.load %arg2[%c36] : memref<72xf32, #tpu.memory_space<smem>>
    %c37 = arith.constant 37 : index
    %55 = memref.load %arg2[%c37] : memref<72xf32, #tpu.memory_space<smem>>
    %c38 = arith.constant 38 : index
    %56 = memref.load %arg2[%c38] : memref<72xf32, #tpu.memory_space<smem>>
    %c39 = arith.constant 39 : index
    %57 = memref.load %arg2[%c39] : memref<72xf32, #tpu.memory_space<smem>>
    %c40 = arith.constant 40 : index
    %58 = memref.load %arg2[%c40] : memref<72xf32, #tpu.memory_space<smem>>
    %c41 = arith.constant 41 : index
    %59 = memref.load %arg2[%c41] : memref<72xf32, #tpu.memory_space<smem>>
    %c42 = arith.constant 42 : index
    %60 = memref.load %arg2[%c42] : memref<72xf32, #tpu.memory_space<smem>>
    %c43 = arith.constant 43 : index
    %61 = memref.load %arg2[%c43] : memref<72xf32, #tpu.memory_space<smem>>
    %c44 = arith.constant 44 : index
    %62 = memref.load %arg2[%c44] : memref<72xf32, #tpu.memory_space<smem>>
    %c45 = arith.constant 45 : index
    %63 = memref.load %arg2[%c45] : memref<72xf32, #tpu.memory_space<smem>>
    %c46 = arith.constant 46 : index
    %64 = memref.load %arg2[%c46] : memref<72xf32, #tpu.memory_space<smem>>
    %c47 = arith.constant 47 : index
    %65 = memref.load %arg2[%c47] : memref<72xf32, #tpu.memory_space<smem>>
    %c48 = arith.constant 48 : index
    %66 = memref.load %arg2[%c48] : memref<72xf32, #tpu.memory_space<smem>>
    %c49 = arith.constant 49 : index
    %67 = memref.load %arg2[%c49] : memref<72xf32, #tpu.memory_space<smem>>
    %c50 = arith.constant 50 : index
    %68 = memref.load %arg2[%c50] : memref<72xf32, #tpu.memory_space<smem>>
    %c51 = arith.constant 51 : index
    %69 = memref.load %arg2[%c51] : memref<72xf32, #tpu.memory_space<smem>>
    %c52 = arith.constant 52 : index
    %70 = memref.load %arg2[%c52] : memref<72xf32, #tpu.memory_space<smem>>
    %c53 = arith.constant 53 : index
    %71 = memref.load %arg2[%c53] : memref<72xf32, #tpu.memory_space<smem>>
    %c54 = arith.constant 54 : index
    %72 = memref.load %arg2[%c54] : memref<72xf32, #tpu.memory_space<smem>>
    %c55 = arith.constant 55 : index
    %73 = memref.load %arg2[%c55] : memref<72xf32, #tpu.memory_space<smem>>
    %c56 = arith.constant 56 : index
    %74 = memref.load %arg2[%c56] : memref<72xf32, #tpu.memory_space<smem>>
    %c57 = arith.constant 57 : index
    %75 = memref.load %arg2[%c57] : memref<72xf32, #tpu.memory_space<smem>>
    %c58 = arith.constant 58 : index
    %76 = memref.load %arg2[%c58] : memref<72xf32, #tpu.memory_space<smem>>
    %c59 = arith.constant 59 : index
    %77 = memref.load %arg2[%c59] : memref<72xf32, #tpu.memory_space<smem>>
    %c60 = arith.constant 60 : index
    %78 = memref.load %arg2[%c60] : memref<72xf32, #tpu.memory_space<smem>>
    %c61 = arith.constant 61 : index
    %79 = memref.load %arg2[%c61] : memref<72xf32, #tpu.memory_space<smem>>
    %c62 = arith.constant 62 : index
    %80 = memref.load %arg2[%c62] : memref<72xf32, #tpu.memory_space<smem>>
    %c63 = arith.constant 63 : index
    %81 = memref.load %arg2[%c63] : memref<72xf32, #tpu.memory_space<smem>>
    %c64 = arith.constant 64 : index
    %82 = memref.load %arg2[%c64] : memref<72xf32, #tpu.memory_space<smem>>
    %c65 = arith.constant 65 : index
    %83 = memref.load %arg2[%c65] : memref<72xf32, #tpu.memory_space<smem>>
    %c66 = arith.constant 66 : index
    %84 = memref.load %arg2[%c66] : memref<72xf32, #tpu.memory_space<smem>>
    %c67 = arith.constant 67 : index
    %85 = memref.load %arg2[%c67] : memref<72xf32, #tpu.memory_space<smem>>
    %c68 = arith.constant 68 : index
    %86 = memref.load %arg2[%c68] : memref<72xf32, #tpu.memory_space<smem>>
    %c69 = arith.constant 69 : index
    %87 = memref.load %arg2[%c69] : memref<72xf32, #tpu.memory_space<smem>>
    %c70 = arith.constant 70 : index
    %88 = memref.load %arg2[%c70] : memref<72xf32, #tpu.memory_space<smem>>
    %c71 = arith.constant 71 : index
    %89 = memref.load %arg2[%c71] : memref<72xf32, #tpu.memory_space<smem>>
    %c0_17 = arith.constant 0 : index
    %90 = memref.load %arg3[%c0_17] : memref<2xf32, #tpu.memory_space<smem>>
    %c1_18 = arith.constant 1 : index
    %91 = memref.load %arg3[%c1_18] : memref<2xf32, #tpu.memory_space<smem>>
    %c1_i32_19 = arith.constant 1 : i32
    %92 = tpu.dynamic_rotate %11 by %c1_i32_19 dim 1 : vector<16x128xf32>, i32 -> vector<16x128xf32>
    %cst = arith.constant 0.000000e+00 : f32
    %93 = vector.broadcast %cst : f32 to vector<16x128xf32>
    %94 = arith.select %7, %92, %93 : vector<16x128xi1>, vector<16x128xf32>
    %c1_i32_20 = arith.constant 1 : i32
    %95 = tpu.dynamic_rotate %13 by %c1_i32_20 dim 1 : vector<16x128xf32>, i32 -> vector<16x128xf32>
    %cst_21 = arith.constant 0.000000e+00 : f32
    %96 = vector.broadcast %cst_21 : f32 to vector<16x128xf32>
    %97 = arith.select %7, %95, %96 : vector<16x128xi1>, vector<16x128xf32>
    %c1_i32_22 = arith.constant 1 : i32
    %98 = tpu.dynamic_rotate %15 by %c1_i32_22 dim 1 : vector<16x128xf32>, i32 -> vector<16x128xf32>
    %cst_23 = arith.constant 0.000000e+00 : f32
    %99 = vector.broadcast %cst_23 : f32 to vector<16x128xf32>
    %100 = arith.select %7, %98, %99 : vector<16x128xi1>, vector<16x128xf32>
    %c1_i32_24 = arith.constant 1 : i32
    %101 = tpu.dynamic_rotate %17 by %c1_i32_24 dim 1 : vector<16x128xf32>, i32 -> vector<16x128xf32>
    %cst_25 = arith.constant 0.000000e+00 : f32
    %102 = vector.broadcast %cst_25 : f32 to vector<16x128xf32>
    %103 = arith.select %7, %101, %102 : vector<16x128xi1>, vector<16x128xf32>
    %c127_i32_26 = arith.constant 127 : i32
    %104 = tpu.dynamic_rotate %11 by %c127_i32_26 dim 1 : vector<16x128xf32>, i32 -> vector<16x128xf32>
    %cst_27 = arith.constant 0.000000e+00 : f32
    %105 = vector.broadcast %cst_27 : f32 to vector<16x128xf32>
    %106 = arith.select %9, %104, %105 : vector<16x128xi1>, vector<16x128xf32>
    %c127_i32_28 = arith.constant 127 : i32
    %107 = tpu.dynamic_rotate %13 by %c127_i32_28 dim 1 : vector<16x128xf32>, i32 -> vector<16x128xf32>
    %cst_29 = arith.constant 0.000000e+00 : f32
    %108 = vector.broadcast %cst_29 : f32 to vector<16x128xf32>
    %109 = arith.select %9, %107, %108 : vector<16x128xi1>, vector<16x128xf32>
    %c127_i32_30 = arith.constant 127 : i32
    %110 = tpu.dynamic_rotate %15 by %c127_i32_30 dim 1 : vector<16x128xf32>, i32 -> vector<16x128xf32>
    %cst_31 = arith.constant 0.000000e+00 : f32
    %111 = vector.broadcast %cst_31 : f32 to vector<16x128xf32>
    %112 = arith.select %9, %110, %111 : vector<16x128xi1>, vector<16x128xf32>
    %c127_i32_32 = arith.constant 127 : i32
    %113 = tpu.dynamic_rotate %17 by %c127_i32_32 dim 1 : vector<16x128xf32>, i32 -> vector<16x128xf32>
    %cst_33 = arith.constant 0.000000e+00 : f32
    %114 = vector.broadcast %cst_33 : f32 to vector<16x128xf32>
    %115 = arith.select %9, %113, %114 : vector<16x128xi1>, vector<16x128xf32>
    %116 = vector.broadcast %90 : f32 to vector<16x128xf32>
    %117 = vector.broadcast %91 : f32 to vector<16x128xf32>
    %118 = vector.broadcast %18 : f32 to vector<16x128xf32>
    %119 = arith.mulf %118, %94 : vector<16x128xf32>
    %120 = vector.broadcast %20 : f32 to vector<16x128xf32>
    %121 = arith.mulf %120, %97 : vector<16x128xf32>
    %122 = arith.addf %119, %121 : vector<16x128xf32>
    %123 = vector.broadcast %22 : f32 to vector<16x128xf32>
    %124 = arith.mulf %123, %100 : vector<16x128xf32>
    %125 = arith.addf %122, %124 : vector<16x128xf32>
    %126 = vector.broadcast %24 : f32 to vector<16x128xf32>
    %127 = arith.mulf %126, %103 : vector<16x128xf32>
    %128 = arith.addf %125, %127 : vector<16x128xf32>
    %129 = vector.broadcast %26 : f32 to vector<16x128xf32>
    %130 = arith.mulf %129, %11 : vector<16x128xf32>
    %131 = arith.addf %128, %130 : vector<16x128xf32>
    %132 = vector.broadcast %28 : f32 to vector<16x128xf32>
    %133 = arith.mulf %132, %13 : vector<16x128xf32>
    %134 = arith.addf %131, %133 : vector<16x128xf32>
    %135 = vector.broadcast %30 : f32 to vector<16x128xf32>
    %136 = arith.mulf %135, %15 : vector<16x128xf32>
    %137 = arith.addf %134, %136 : vector<16x128xf32>
    %138 = vector.broadcast %32 : f32 to vector<16x128xf32>
    %139 = arith.mulf %138, %17 : vector<16x128xf32>
    %140 = arith.addf %137, %139 : vector<16x128xf32>
    %141 = vector.broadcast %34 : f32 to vector<16x128xf32>
    %142 = arith.mulf %141, %106 : vector<16x128xf32>
    %143 = arith.addf %140, %142 : vector<16x128xf32>
    %144 = vector.broadcast %36 : f32 to vector<16x128xf32>
    %145 = arith.mulf %144, %109 : vector<16x128xf32>
    %146 = arith.addf %143, %145 : vector<16x128xf32>
    %147 = vector.broadcast %38 : f32 to vector<16x128xf32>
    %148 = arith.mulf %147, %112 : vector<16x128xf32>
    %149 = arith.addf %146, %148 : vector<16x128xf32>
    %150 = vector.broadcast %40 : f32 to vector<16x128xf32>
    %151 = arith.mulf %150, %115 : vector<16x128xf32>
    %152 = arith.addf %149, %151 : vector<16x128xf32>
    %c1_i32_34 = arith.constant 1 : i32
    %153 = tpu.dynamic_rotate %152 by %c1_i32_34 dim 0 : vector<16x128xf32>, i32 -> vector<16x128xf32>
    %cst_35 = arith.constant 0.000000e+00 : f32
    %154 = vector.broadcast %cst_35 : f32 to vector<16x128xf32>
    %155 = arith.select %3, %153, %154 : vector<16x128xi1>, vector<16x128xf32>
    %156 = arith.addf %116, %155 : vector<16x128xf32>
    %157 = vector.broadcast %19 : f32 to vector<16x128xf32>
    %158 = arith.mulf %157, %94 : vector<16x128xf32>
    %159 = vector.broadcast %21 : f32 to vector<16x128xf32>
    %160 = arith.mulf %159, %97 : vector<16x128xf32>
    %161 = arith.addf %158, %160 : vector<16x128xf32>
    %162 = vector.broadcast %23 : f32 to vector<16x128xf32>
    %163 = arith.mulf %162, %100 : vector<16x128xf32>
    %164 = arith.addf %161, %163 : vector<16x128xf32>
    %165 = vector.broadcast %25 : f32 to vector<16x128xf32>
    %166 = arith.mulf %165, %103 : vector<16x128xf32>
    %167 = arith.addf %164, %166 : vector<16x128xf32>
    %168 = vector.broadcast %27 : f32 to vector<16x128xf32>
    %169 = arith.mulf %168, %11 : vector<16x128xf32>
    %170 = arith.addf %167, %169 : vector<16x128xf32>
    %171 = vector.broadcast %29 : f32 to vector<16x128xf32>
    %172 = arith.mulf %171, %13 : vector<16x128xf32>
    %173 = arith.addf %170, %172 : vector<16x128xf32>
    %174 = vector.broadcast %31 : f32 to vector<16x128xf32>
    %175 = arith.mulf %174, %15 : vector<16x128xf32>
    %176 = arith.addf %173, %175 : vector<16x128xf32>
    %177 = vector.broadcast %33 : f32 to vector<16x128xf32>
    %178 = arith.mulf %177, %17 : vector<16x128xf32>
    %179 = arith.addf %176, %178 : vector<16x128xf32>
    %180 = vector.broadcast %35 : f32 to vector<16x128xf32>
    %181 = arith.mulf %180, %106 : vector<16x128xf32>
    %182 = arith.addf %179, %181 : vector<16x128xf32>
    %183 = vector.broadcast %37 : f32 to vector<16x128xf32>
    %184 = arith.mulf %183, %109 : vector<16x128xf32>
    %185 = arith.addf %182, %184 : vector<16x128xf32>
    %186 = vector.broadcast %39 : f32 to vector<16x128xf32>
    %187 = arith.mulf %186, %112 : vector<16x128xf32>
    %188 = arith.addf %185, %187 : vector<16x128xf32>
    %189 = vector.broadcast %41 : f32 to vector<16x128xf32>
    %190 = arith.mulf %189, %115 : vector<16x128xf32>
    %191 = arith.addf %188, %190 : vector<16x128xf32>
    %c1_i32_36 = arith.constant 1 : i32
    %192 = tpu.dynamic_rotate %191 by %c1_i32_36 dim 0 : vector<16x128xf32>, i32 -> vector<16x128xf32>
    %cst_37 = arith.constant 0.000000e+00 : f32
    %193 = vector.broadcast %cst_37 : f32 to vector<16x128xf32>
    %194 = arith.select %3, %192, %193 : vector<16x128xi1>, vector<16x128xf32>
    %195 = arith.addf %117, %194 : vector<16x128xf32>
    %196 = vector.broadcast %42 : f32 to vector<16x128xf32>
    %197 = arith.mulf %196, %94 : vector<16x128xf32>
    %198 = vector.broadcast %44 : f32 to vector<16x128xf32>
    %199 = arith.mulf %198, %97 : vector<16x128xf32>
    %200 = arith.addf %197, %199 : vector<16x128xf32>
    %201 = vector.broadcast %46 : f32 to vector<16x128xf32>
    %202 = arith.mulf %201, %100 : vector<16x128xf32>
    %203 = arith.addf %200, %202 : vector<16x128xf32>
    %204 = vector.broadcast %48 : f32 to vector<16x128xf32>
    %205 = arith.mulf %204, %103 : vector<16x128xf32>
    %206 = arith.addf %203, %205 : vector<16x128xf32>
    %207 = vector.broadcast %50 : f32 to vector<16x128xf32>
    %208 = arith.mulf %207, %11 : vector<16x128xf32>
    %209 = arith.addf %206, %208 : vector<16x128xf32>
    %210 = vector.broadcast %52 : f32 to vector<16x128xf32>
    %211 = arith.mulf %210, %13 : vector<16x128xf32>
    %212 = arith.addf %209, %211 : vector<16x128xf32>
    %213 = vector.broadcast %54 : f32 to vector<16x128xf32>
    %214 = arith.mulf %213, %15 : vector<16x128xf32>
    %215 = arith.addf %212, %214 : vector<16x128xf32>
    %216 = vector.broadcast %56 : f32 to vector<16x128xf32>
    %217 = arith.mulf %216, %17 : vector<16x128xf32>
    %218 = arith.addf %215, %217 : vector<16x128xf32>
    %219 = vector.broadcast %58 : f32 to vector<16x128xf32>
    %220 = arith.mulf %219, %106 : vector<16x128xf32>
    %221 = arith.addf %218, %220 : vector<16x128xf32>
    %222 = vector.broadcast %60 : f32 to vector<16x128xf32>
    %223 = arith.mulf %222, %109 : vector<16x128xf32>
    %224 = arith.addf %221, %223 : vector<16x128xf32>
    %225 = vector.broadcast %62 : f32 to vector<16x128xf32>
    %226 = arith.mulf %225, %112 : vector<16x128xf32>
    %227 = arith.addf %224, %226 : vector<16x128xf32>
    %228 = vector.broadcast %64 : f32 to vector<16x128xf32>
    %229 = arith.mulf %228, %115 : vector<16x128xf32>
    %230 = arith.addf %227, %229 : vector<16x128xf32>
    %231 = arith.addf %156, %230 : vector<16x128xf32>
    %232 = vector.broadcast %43 : f32 to vector<16x128xf32>
    %233 = arith.mulf %232, %94 : vector<16x128xf32>
    %234 = vector.broadcast %45 : f32 to vector<16x128xf32>
    %235 = arith.mulf %234, %97 : vector<16x128xf32>
    %236 = arith.addf %233, %235 : vector<16x128xf32>
    %237 = vector.broadcast %47 : f32 to vector<16x128xf32>
    %238 = arith.mulf %237, %100 : vector<16x128xf32>
    %239 = arith.addf %236, %238 : vector<16x128xf32>
    %240 = vector.broadcast %49 : f32 to vector<16x128xf32>
    %241 = arith.mulf %240, %103 : vector<16x128xf32>
    %242 = arith.addf %239, %241 : vector<16x128xf32>
    %243 = vector.broadcast %51 : f32 to vector<16x128xf32>
    %244 = arith.mulf %243, %11 : vector<16x128xf32>
    %245 = arith.addf %242, %244 : vector<16x128xf32>
    %246 = vector.broadcast %53 : f32 to vector<16x128xf32>
    %247 = arith.mulf %246, %13 : vector<16x128xf32>
    %248 = arith.addf %245, %247 : vector<16x128xf32>
    %249 = vector.broadcast %55 : f32 to vector<16x128xf32>
    %250 = arith.mulf %249, %15 : vector<16x128xf32>
    %251 = arith.addf %248, %250 : vector<16x128xf32>
    %252 = vector.broadcast %57 : f32 to vector<16x128xf32>
    %253 = arith.mulf %252, %17 : vector<16x128xf32>
    %254 = arith.addf %251, %253 : vector<16x128xf32>
    %255 = vector.broadcast %59 : f32 to vector<16x128xf32>
    %256 = arith.mulf %255, %106 : vector<16x128xf32>
    %257 = arith.addf %254, %256 : vector<16x128xf32>
    %258 = vector.broadcast %61 : f32 to vector<16x128xf32>
    %259 = arith.mulf %258, %109 : vector<16x128xf32>
    %260 = arith.addf %257, %259 : vector<16x128xf32>
    %261 = vector.broadcast %63 : f32 to vector<16x128xf32>
    %262 = arith.mulf %261, %112 : vector<16x128xf32>
    %263 = arith.addf %260, %262 : vector<16x128xf32>
    %264 = vector.broadcast %65 : f32 to vector<16x128xf32>
    %265 = arith.mulf %264, %115 : vector<16x128xf32>
    %266 = arith.addf %263, %265 : vector<16x128xf32>
    %267 = arith.addf %195, %266 : vector<16x128xf32>
    %268 = vector.broadcast %66 : f32 to vector<16x128xf32>
    %269 = arith.mulf %268, %94 : vector<16x128xf32>
    %270 = vector.broadcast %68 : f32 to vector<16x128xf32>
    %271 = arith.mulf %270, %97 : vector<16x128xf32>
    %272 = arith.addf %269, %271 : vector<16x128xf32>
    %273 = vector.broadcast %70 : f32 to vector<16x128xf32>
    %274 = arith.mulf %273, %100 : vector<16x128xf32>
    %275 = arith.addf %272, %274 : vector<16x128xf32>
    %276 = vector.broadcast %72 : f32 to vector<16x128xf32>
    %277 = arith.mulf %276, %103 : vector<16x128xf32>
    %278 = arith.addf %275, %277 : vector<16x128xf32>
    %279 = vector.broadcast %74 : f32 to vector<16x128xf32>
    %280 = arith.mulf %279, %11 : vector<16x128xf32>
    %281 = arith.addf %278, %280 : vector<16x128xf32>
    %282 = vector.broadcast %76 : f32 to vector<16x128xf32>
    %283 = arith.mulf %282, %13 : vector<16x128xf32>
    %284 = arith.addf %281, %283 : vector<16x128xf32>
    %285 = vector.broadcast %78 : f32 to vector<16x128xf32>
    %286 = arith.mulf %285, %15 : vector<16x128xf32>
    %287 = arith.addf %284, %286 : vector<16x128xf32>
    %288 = vector.broadcast %80 : f32 to vector<16x128xf32>
    %289 = arith.mulf %288, %17 : vector<16x128xf32>
    %290 = arith.addf %287, %289 : vector<16x128xf32>
    %291 = vector.broadcast %82 : f32 to vector<16x128xf32>
    %292 = arith.mulf %291, %106 : vector<16x128xf32>
    %293 = arith.addf %290, %292 : vector<16x128xf32>
    %294 = vector.broadcast %84 : f32 to vector<16x128xf32>
    %295 = arith.mulf %294, %109 : vector<16x128xf32>
    %296 = arith.addf %293, %295 : vector<16x128xf32>
    %297 = vector.broadcast %86 : f32 to vector<16x128xf32>
    %298 = arith.mulf %297, %112 : vector<16x128xf32>
    %299 = arith.addf %296, %298 : vector<16x128xf32>
    %300 = vector.broadcast %88 : f32 to vector<16x128xf32>
    %301 = arith.mulf %300, %115 : vector<16x128xf32>
    %302 = arith.addf %299, %301 : vector<16x128xf32>
    %c15_i32_38 = arith.constant 15 : i32
    %303 = tpu.dynamic_rotate %302 by %c15_i32_38 dim 0 : vector<16x128xf32>, i32 -> vector<16x128xf32>
    %cst_39 = arith.constant 0.000000e+00 : f32
    %304 = vector.broadcast %cst_39 : f32 to vector<16x128xf32>
    %305 = arith.select %5, %303, %304 : vector<16x128xi1>, vector<16x128xf32>
    %306 = arith.addf %231, %305 : vector<16x128xf32>
    %307 = vector.broadcast %67 : f32 to vector<16x128xf32>
    %308 = arith.mulf %307, %94 : vector<16x128xf32>
    %309 = vector.broadcast %69 : f32 to vector<16x128xf32>
    %310 = arith.mulf %309, %97 : vector<16x128xf32>
    %311 = arith.addf %308, %310 : vector<16x128xf32>
    %312 = vector.broadcast %71 : f32 to vector<16x128xf32>
    %313 = arith.mulf %312, %100 : vector<16x128xf32>
    %314 = arith.addf %311, %313 : vector<16x128xf32>
    %315 = vector.broadcast %73 : f32 to vector<16x128xf32>
    %316 = arith.mulf %315, %103 : vector<16x128xf32>
    %317 = arith.addf %314, %316 : vector<16x128xf32>
    %318 = vector.broadcast %75 : f32 to vector<16x128xf32>
    %319 = arith.mulf %318, %11 : vector<16x128xf32>
    %320 = arith.addf %317, %319 : vector<16x128xf32>
    %321 = vector.broadcast %77 : f32 to vector<16x128xf32>
    %322 = arith.mulf %321, %13 : vector<16x128xf32>
    %323 = arith.addf %320, %322 : vector<16x128xf32>
    %324 = vector.broadcast %79 : f32 to vector<16x128xf32>
    %325 = arith.mulf %324, %15 : vector<16x128xf32>
    %326 = arith.addf %323, %325 : vector<16x128xf32>
    %327 = vector.broadcast %81 : f32 to vector<16x128xf32>
    %328 = arith.mulf %327, %17 : vector<16x128xf32>
    %329 = arith.addf %326, %328 : vector<16x128xf32>
    %330 = vector.broadcast %83 : f32 to vector<16x128xf32>
    %331 = arith.mulf %330, %106 : vector<16x128xf32>
    %332 = arith.addf %329, %331 : vector<16x128xf32>
    %333 = vector.broadcast %85 : f32 to vector<16x128xf32>
    %334 = arith.mulf %333, %109 : vector<16x128xf32>
    %335 = arith.addf %332, %334 : vector<16x128xf32>
    %336 = vector.broadcast %87 : f32 to vector<16x128xf32>
    %337 = arith.mulf %336, %112 : vector<16x128xf32>
    %338 = arith.addf %335, %337 : vector<16x128xf32>
    %339 = vector.broadcast %89 : f32 to vector<16x128xf32>
    %340 = arith.mulf %339, %115 : vector<16x128xf32>
    %341 = arith.addf %338, %340 : vector<16x128xf32>
    %c15_i32_40 = arith.constant 15 : i32
    %342 = tpu.dynamic_rotate %341 by %c15_i32_40 dim 0 : vector<16x128xf32>, i32 -> vector<16x128xf32>
    %cst_41 = arith.constant 0.000000e+00 : f32
    %343 = vector.broadcast %cst_41 : f32 to vector<16x128xf32>
    %344 = arith.select %5, %342, %343 : vector<16x128xi1>, vector<16x128xf32>
    %345 = arith.addf %267, %344 : vector<16x128xf32>
    %cst_42 = arith.constant 0.000000e+00 : f32
    %346 = vector.broadcast %cst_42 : f32 to vector<16x128xf32>
    %347 = arith.maximumf %306, %346 : vector<16x128xf32>
    %cst_43 = arith.constant 0.000000e+00 : f32
    %348 = vector.broadcast %cst_43 : f32 to vector<16x128xf32>
    %349 = arith.maximumf %345, %348 : vector<16x128xf32>
    %c0_44 = arith.constant 0 : index
    %350 = memref.load %arg4[%c0_44] : memref<18xf32, #tpu.memory_space<smem>>
    %c1_45 = arith.constant 1 : index
    %351 = memref.load %arg4[%c1_45] : memref<18xf32, #tpu.memory_space<smem>>
    %c2_46 = arith.constant 2 : index
    %352 = memref.load %arg4[%c2_46] : memref<18xf32, #tpu.memory_space<smem>>
    %c3_47 = arith.constant 3 : index
    %353 = memref.load %arg4[%c3_47] : memref<18xf32, #tpu.memory_space<smem>>
    %c4_48 = arith.constant 4 : index
    %354 = memref.load %arg4[%c4_48] : memref<18xf32, #tpu.memory_space<smem>>
    %c5_49 = arith.constant 5 : index
    %355 = memref.load %arg4[%c5_49] : memref<18xf32, #tpu.memory_space<smem>>
    %c6_50 = arith.constant 6 : index
    %356 = memref.load %arg4[%c6_50] : memref<18xf32, #tpu.memory_space<smem>>
    %c7_51 = arith.constant 7 : index
    %357 = memref.load %arg4[%c7_51] : memref<18xf32, #tpu.memory_space<smem>>
    %c8_52 = arith.constant 8 : index
    %358 = memref.load %arg4[%c8_52] : memref<18xf32, #tpu.memory_space<smem>>
    %c9_53 = arith.constant 9 : index
    %359 = memref.load %arg4[%c9_53] : memref<18xf32, #tpu.memory_space<smem>>
    %c10_54 = arith.constant 10 : index
    %360 = memref.load %arg4[%c10_54] : memref<18xf32, #tpu.memory_space<smem>>
    %c11_55 = arith.constant 11 : index
    %361 = memref.load %arg4[%c11_55] : memref<18xf32, #tpu.memory_space<smem>>
    %c12_56 = arith.constant 12 : index
    %362 = memref.load %arg4[%c12_56] : memref<18xf32, #tpu.memory_space<smem>>
    %c13_57 = arith.constant 13 : index
    %363 = memref.load %arg4[%c13_57] : memref<18xf32, #tpu.memory_space<smem>>
    %c14_58 = arith.constant 14 : index
    %364 = memref.load %arg4[%c14_58] : memref<18xf32, #tpu.memory_space<smem>>
    %c15_59 = arith.constant 15 : index
    %365 = memref.load %arg4[%c15_59] : memref<18xf32, #tpu.memory_space<smem>>
    %c16_60 = arith.constant 16 : index
    %366 = memref.load %arg4[%c16_60] : memref<18xf32, #tpu.memory_space<smem>>
    %c17_61 = arith.constant 17 : index
    %367 = memref.load %arg4[%c17_61] : memref<18xf32, #tpu.memory_space<smem>>
    %c0_62 = arith.constant 0 : index
    %368 = memref.load %arg5[%c0_62] : memref<1xf32, #tpu.memory_space<smem>>
    %c1_i32_63 = arith.constant 1 : i32
    %369 = tpu.dynamic_rotate %347 by %c1_i32_63 dim 1 : vector<16x128xf32>, i32 -> vector<16x128xf32>
    %cst_64 = arith.constant 0.000000e+00 : f32
    %370 = vector.broadcast %cst_64 : f32 to vector<16x128xf32>
    %371 = arith.select %7, %369, %370 : vector<16x128xi1>, vector<16x128xf32>
    %c1_i32_65 = arith.constant 1 : i32
    %372 = tpu.dynamic_rotate %349 by %c1_i32_65 dim 1 : vector<16x128xf32>, i32 -> vector<16x128xf32>
    %cst_66 = arith.constant 0.000000e+00 : f32
    %373 = vector.broadcast %cst_66 : f32 to vector<16x128xf32>
    %374 = arith.select %7, %372, %373 : vector<16x128xi1>, vector<16x128xf32>
    %c127_i32_67 = arith.constant 127 : i32
    %375 = tpu.dynamic_rotate %347 by %c127_i32_67 dim 1 : vector<16x128xf32>, i32 -> vector<16x128xf32>
    %cst_68 = arith.constant 0.000000e+00 : f32
    %376 = vector.broadcast %cst_68 : f32 to vector<16x128xf32>
    %377 = arith.select %9, %375, %376 : vector<16x128xi1>, vector<16x128xf32>
    %c127_i32_69 = arith.constant 127 : i32
    %378 = tpu.dynamic_rotate %349 by %c127_i32_69 dim 1 : vector<16x128xf32>, i32 -> vector<16x128xf32>
    %cst_70 = arith.constant 0.000000e+00 : f32
    %379 = vector.broadcast %cst_70 : f32 to vector<16x128xf32>
    %380 = arith.select %9, %378, %379 : vector<16x128xi1>, vector<16x128xf32>
    %381 = vector.broadcast %368 : f32 to vector<16x128xf32>
    %382 = vector.broadcast %350 : f32 to vector<16x128xf32>
    %383 = arith.mulf %382, %371 : vector<16x128xf32>
    %384 = vector.broadcast %351 : f32 to vector<16x128xf32>
    %385 = arith.mulf %384, %374 : vector<16x128xf32>
    %386 = arith.addf %383, %385 : vector<16x128xf32>
    %387 = vector.broadcast %352 : f32 to vector<16x128xf32>
    %388 = arith.mulf %387, %347 : vector<16x128xf32>
    %389 = arith.addf %386, %388 : vector<16x128xf32>
    %390 = vector.broadcast %353 : f32 to vector<16x128xf32>
    %391 = arith.mulf %390, %349 : vector<16x128xf32>
    %392 = arith.addf %389, %391 : vector<16x128xf32>
    %393 = vector.broadcast %354 : f32 to vector<16x128xf32>
    %394 = arith.mulf %393, %377 : vector<16x128xf32>
    %395 = arith.addf %392, %394 : vector<16x128xf32>
    %396 = vector.broadcast %355 : f32 to vector<16x128xf32>
    %397 = arith.mulf %396, %380 : vector<16x128xf32>
    %398 = arith.addf %395, %397 : vector<16x128xf32>
    %c1_i32_71 = arith.constant 1 : i32
    %399 = tpu.dynamic_rotate %398 by %c1_i32_71 dim 0 : vector<16x128xf32>, i32 -> vector<16x128xf32>
    %cst_72 = arith.constant 0.000000e+00 : f32
    %400 = vector.broadcast %cst_72 : f32 to vector<16x128xf32>
    %401 = arith.select %3, %399, %400 : vector<16x128xi1>, vector<16x128xf32>
    %402 = arith.addf %381, %401 : vector<16x128xf32>
    %403 = vector.broadcast %356 : f32 to vector<16x128xf32>
    %404 = arith.mulf %403, %371 : vector<16x128xf32>
    %405 = vector.broadcast %357 : f32 to vector<16x128xf32>
    %406 = arith.mulf %405, %374 : vector<16x128xf32>
    %407 = arith.addf %404, %406 : vector<16x128xf32>
    %408 = vector.broadcast %358 : f32 to vector<16x128xf32>
    %409 = arith.mulf %408, %347 : vector<16x128xf32>
    %410 = arith.addf %407, %409 : vector<16x128xf32>
    %411 = vector.broadcast %359 : f32 to vector<16x128xf32>
    %412 = arith.mulf %411, %349 : vector<16x128xf32>
    %413 = arith.addf %410, %412 : vector<16x128xf32>
    %414 = vector.broadcast %360 : f32 to vector<16x128xf32>
    %415 = arith.mulf %414, %377 : vector<16x128xf32>
    %416 = arith.addf %413, %415 : vector<16x128xf32>
    %417 = vector.broadcast %361 : f32 to vector<16x128xf32>
    %418 = arith.mulf %417, %380 : vector<16x128xf32>
    %419 = arith.addf %416, %418 : vector<16x128xf32>
    %420 = arith.addf %402, %419 : vector<16x128xf32>
    %421 = vector.broadcast %362 : f32 to vector<16x128xf32>
    %422 = arith.mulf %421, %371 : vector<16x128xf32>
    %423 = vector.broadcast %363 : f32 to vector<16x128xf32>
    %424 = arith.mulf %423, %374 : vector<16x128xf32>
    %425 = arith.addf %422, %424 : vector<16x128xf32>
    %426 = vector.broadcast %364 : f32 to vector<16x128xf32>
    %427 = arith.mulf %426, %347 : vector<16x128xf32>
    %428 = arith.addf %425, %427 : vector<16x128xf32>
    %429 = vector.broadcast %365 : f32 to vector<16x128xf32>
    %430 = arith.mulf %429, %349 : vector<16x128xf32>
    %431 = arith.addf %428, %430 : vector<16x128xf32>
    %432 = vector.broadcast %366 : f32 to vector<16x128xf32>
    %433 = arith.mulf %432, %377 : vector<16x128xf32>
    %434 = arith.addf %431, %433 : vector<16x128xf32>
    %435 = vector.broadcast %367 : f32 to vector<16x128xf32>
    %436 = arith.mulf %435, %380 : vector<16x128xf32>
    %437 = arith.addf %434, %436 : vector<16x128xf32>
    %c15_i32_73 = arith.constant 15 : i32
    %438 = tpu.dynamic_rotate %437 by %c15_i32_73 dim 0 : vector<16x128xf32>, i32 -> vector<16x128xf32>
    %cst_74 = arith.constant 0.000000e+00 : f32
    %439 = vector.broadcast %cst_74 : f32 to vector<16x128xf32>
    %440 = arith.select %5, %438, %439 : vector<16x128xi1>, vector<16x128xf32>
    %441 = arith.addf %420, %440 : vector<16x128xf32>
    %442 = arith.negf %441 : vector<16x128xf32>
    %443 = math.exp %442 : vector<16x128xf32>
    %cst_75 = arith.constant 1.000000e+00 : f32
    %444 = vector.broadcast %cst_75 : f32 to vector<16x128xf32>
    %445 = arith.addf %444, %443 : vector<16x128xf32>
    %446 = arith.divf %444, %445 : vector<16x128xf32>
    %c0_76 = arith.constant 0 : index
    %447 = memref.load %arg6[%c0_76] : memref<18xf32, #tpu.memory_space<smem>>
    %c1_77 = arith.constant 1 : index
    %448 = memref.load %arg6[%c1_77] : memref<18xf32, #tpu.memory_space<smem>>
    %c2_78 = arith.constant 2 : index
    %449 = memref.load %arg6[%c2_78] : memref<18xf32, #tpu.memory_space<smem>>
    %c3_79 = arith.constant 3 : index
    %450 = memref.load %arg6[%c3_79] : memref<18xf32, #tpu.memory_space<smem>>
    %c4_80 = arith.constant 4 : index
    %451 = memref.load %arg6[%c4_80] : memref<18xf32, #tpu.memory_space<smem>>
    %c5_81 = arith.constant 5 : index
    %452 = memref.load %arg6[%c5_81] : memref<18xf32, #tpu.memory_space<smem>>
    %c6_82 = arith.constant 6 : index
    %453 = memref.load %arg6[%c6_82] : memref<18xf32, #tpu.memory_space<smem>>
    %c7_83 = arith.constant 7 : index
    %454 = memref.load %arg6[%c7_83] : memref<18xf32, #tpu.memory_space<smem>>
    %c8_84 = arith.constant 8 : index
    %455 = memref.load %arg6[%c8_84] : memref<18xf32, #tpu.memory_space<smem>>
    %c9_85 = arith.constant 9 : index
    %456 = memref.load %arg6[%c9_85] : memref<18xf32, #tpu.memory_space<smem>>
    %c10_86 = arith.constant 10 : index
    %457 = memref.load %arg6[%c10_86] : memref<18xf32, #tpu.memory_space<smem>>
    %c11_87 = arith.constant 11 : index
    %458 = memref.load %arg6[%c11_87] : memref<18xf32, #tpu.memory_space<smem>>
    %c12_88 = arith.constant 12 : index
    %459 = memref.load %arg6[%c12_88] : memref<18xf32, #tpu.memory_space<smem>>
    %c13_89 = arith.constant 13 : index
    %460 = memref.load %arg6[%c13_89] : memref<18xf32, #tpu.memory_space<smem>>
    %c14_90 = arith.constant 14 : index
    %461 = memref.load %arg6[%c14_90] : memref<18xf32, #tpu.memory_space<smem>>
    %c15_91 = arith.constant 15 : index
    %462 = memref.load %arg6[%c15_91] : memref<18xf32, #tpu.memory_space<smem>>
    %c16_92 = arith.constant 16 : index
    %463 = memref.load %arg6[%c16_92] : memref<18xf32, #tpu.memory_space<smem>>
    %c17_93 = arith.constant 17 : index
    %464 = memref.load %arg6[%c17_93] : memref<18xf32, #tpu.memory_space<smem>>
    %c0_94 = arith.constant 0 : index
    %465 = memref.load %arg7[%c0_94] : memref<2xf32, #tpu.memory_space<smem>>
    %c1_95 = arith.constant 1 : index
    %466 = memref.load %arg7[%c1_95] : memref<2xf32, #tpu.memory_space<smem>>
    %c1_i32_96 = arith.constant 1 : i32
    %467 = tpu.dynamic_rotate %446 by %c1_i32_96 dim 1 : vector<16x128xf32>, i32 -> vector<16x128xf32>
    %cst_97 = arith.constant 0.000000e+00 : f32
    %468 = vector.broadcast %cst_97 : f32 to vector<16x128xf32>
    %469 = arith.select %7, %467, %468 : vector<16x128xi1>, vector<16x128xf32>
    %c127_i32_98 = arith.constant 127 : i32
    %470 = tpu.dynamic_rotate %446 by %c127_i32_98 dim 1 : vector<16x128xf32>, i32 -> vector<16x128xf32>
    %cst_99 = arith.constant 0.000000e+00 : f32
    %471 = vector.broadcast %cst_99 : f32 to vector<16x128xf32>
    %472 = arith.select %9, %470, %471 : vector<16x128xi1>, vector<16x128xf32>
    %473 = vector.broadcast %465 : f32 to vector<16x128xf32>
    %474 = vector.broadcast %466 : f32 to vector<16x128xf32>
    %475 = vector.broadcast %447 : f32 to vector<16x128xf32>
    %476 = arith.mulf %475, %469 : vector<16x128xf32>
    %477 = vector.broadcast %449 : f32 to vector<16x128xf32>
    %478 = arith.mulf %477, %446 : vector<16x128xf32>
    %479 = arith.addf %476, %478 : vector<16x128xf32>
    %480 = vector.broadcast %451 : f32 to vector<16x128xf32>
    %481 = arith.mulf %480, %472 : vector<16x128xf32>
    %482 = arith.addf %479, %481 : vector<16x128xf32>
    %c1_i32_100 = arith.constant 1 : i32
    %483 = tpu.dynamic_rotate %482 by %c1_i32_100 dim 0 : vector<16x128xf32>, i32 -> vector<16x128xf32>
    %cst_101 = arith.constant 0.000000e+00 : f32
    %484 = vector.broadcast %cst_101 : f32 to vector<16x128xf32>
    %485 = arith.select %3, %483, %484 : vector<16x128xi1>, vector<16x128xf32>
    %486 = arith.addf %473, %485 : vector<16x128xf32>
    %487 = vector.broadcast %448 : f32 to vector<16x128xf32>
    %488 = arith.mulf %487, %469 : vector<16x128xf32>
    %489 = vector.broadcast %450 : f32 to vector<16x128xf32>
    %490 = arith.mulf %489, %446 : vector<16x128xf32>
    %491 = arith.addf %488, %490 : vector<16x128xf32>
    %492 = vector.broadcast %452 : f32 to vector<16x128xf32>
    %493 = arith.mulf %492, %472 : vector<16x128xf32>
    %494 = arith.addf %491, %493 : vector<16x128xf32>
    %c1_i32_102 = arith.constant 1 : i32
    %495 = tpu.dynamic_rotate %494 by %c1_i32_102 dim 0 : vector<16x128xf32>, i32 -> vector<16x128xf32>
    %cst_103 = arith.constant 0.000000e+00 : f32
    %496 = vector.broadcast %cst_103 : f32 to vector<16x128xf32>
    %497 = arith.select %3, %495, %496 : vector<16x128xi1>, vector<16x128xf32>
    %498 = arith.addf %474, %497 : vector<16x128xf32>
    %499 = vector.broadcast %453 : f32 to vector<16x128xf32>
    %500 = arith.mulf %499, %469 : vector<16x128xf32>
    %501 = vector.broadcast %455 : f32 to vector<16x128xf32>
    %502 = arith.mulf %501, %446 : vector<16x128xf32>
    %503 = arith.addf %500, %502 : vector<16x128xf32>
    %504 = vector.broadcast %457 : f32 to vector<16x128xf32>
    %505 = arith.mulf %504, %472 : vector<16x128xf32>
    %506 = arith.addf %503, %505 : vector<16x128xf32>
    %507 = arith.addf %486, %506 : vector<16x128xf32>
    %508 = vector.broadcast %454 : f32 to vector<16x128xf32>
    %509 = arith.mulf %508, %469 : vector<16x128xf32>
    %510 = vector.broadcast %456 : f32 to vector<16x128xf32>
    %511 = arith.mulf %510, %446 : vector<16x128xf32>
    %512 = arith.addf %509, %511 : vector<16x128xf32>
    %513 = vector.broadcast %458 : f32 to vector<16x128xf32>
    %514 = arith.mulf %513, %472 : vector<16x128xf32>
    %515 = arith.addf %512, %514 : vector<16x128xf32>
    %516 = arith.addf %498, %515 : vector<16x128xf32>
    %517 = vector.broadcast %459 : f32 to vector<16x128xf32>
    %518 = arith.mulf %517, %469 : vector<16x128xf32>
    %519 = vector.broadcast %461 : f32 to vector<16x128xf32>
    %520 = arith.mulf %519, %446 : vector<16x128xf32>
    %521 = arith.addf %518, %520 : vector<16x128xf32>
    %522 = vector.broadcast %463 : f32 to vector<16x128xf32>
    %523 = arith.mulf %522, %472 : vector<16x128xf32>
    %524 = arith.addf %521, %523 : vector<16x128xf32>
    %c15_i32_104 = arith.constant 15 : i32
    %525 = tpu.dynamic_rotate %524 by %c15_i32_104 dim 0 : vector<16x128xf32>, i32 -> vector<16x128xf32>
    %cst_105 = arith.constant 0.000000e+00 : f32
    %526 = vector.broadcast %cst_105 : f32 to vector<16x128xf32>
    %527 = arith.select %5, %525, %526 : vector<16x128xi1>, vector<16x128xf32>
    %528 = arith.addf %507, %527 : vector<16x128xf32>
    %529 = vector.broadcast %460 : f32 to vector<16x128xf32>
    %530 = arith.mulf %529, %469 : vector<16x128xf32>
    %531 = vector.broadcast %462 : f32 to vector<16x128xf32>
    %532 = arith.mulf %531, %446 : vector<16x128xf32>
    %533 = arith.addf %530, %532 : vector<16x128xf32>
    %534 = vector.broadcast %464 : f32 to vector<16x128xf32>
    %535 = arith.mulf %534, %472 : vector<16x128xf32>
    %536 = arith.addf %533, %535 : vector<16x128xf32>
    %c15_i32_106 = arith.constant 15 : i32
    %537 = tpu.dynamic_rotate %536 by %c15_i32_106 dim 0 : vector<16x128xf32>, i32 -> vector<16x128xf32>
    %cst_107 = arith.constant 0.000000e+00 : f32
    %538 = vector.broadcast %cst_107 : f32 to vector<16x128xf32>
    %539 = arith.select %5, %537, %538 : vector<16x128xi1>, vector<16x128xf32>
    %540 = arith.addf %516, %539 : vector<16x128xf32>
    %cst_108 = arith.constant 0.000000e+00 : f32
    %541 = vector.broadcast %cst_108 : f32 to vector<16x128xf32>
    %542 = arith.maximumf %528, %541 : vector<16x128xf32>
    %cst_109 = arith.constant 0.000000e+00 : f32
    %543 = vector.broadcast %cst_109 : f32 to vector<16x128xf32>
    %544 = arith.maximumf %540, %543 : vector<16x128xf32>
    %c0_110 = arith.constant 0 : index
    %545 = memref.load %arg8[%c0_110] : memref<72xf32, #tpu.memory_space<smem>>
    %c1_111 = arith.constant 1 : index
    %546 = memref.load %arg8[%c1_111] : memref<72xf32, #tpu.memory_space<smem>>
    %c2_112 = arith.constant 2 : index
    %547 = memref.load %arg8[%c2_112] : memref<72xf32, #tpu.memory_space<smem>>
    %c3_113 = arith.constant 3 : index
    %548 = memref.load %arg8[%c3_113] : memref<72xf32, #tpu.memory_space<smem>>
    %c4_114 = arith.constant 4 : index
    %549 = memref.load %arg8[%c4_114] : memref<72xf32, #tpu.memory_space<smem>>
    %c5_115 = arith.constant 5 : index
    %550 = memref.load %arg8[%c5_115] : memref<72xf32, #tpu.memory_space<smem>>
    %c6_116 = arith.constant 6 : index
    %551 = memref.load %arg8[%c6_116] : memref<72xf32, #tpu.memory_space<smem>>
    %c7_117 = arith.constant 7 : index
    %552 = memref.load %arg8[%c7_117] : memref<72xf32, #tpu.memory_space<smem>>
    %c8_118 = arith.constant 8 : index
    %553 = memref.load %arg8[%c8_118] : memref<72xf32, #tpu.memory_space<smem>>
    %c9_119 = arith.constant 9 : index
    %554 = memref.load %arg8[%c9_119] : memref<72xf32, #tpu.memory_space<smem>>
    %c10_120 = arith.constant 10 : index
    %555 = memref.load %arg8[%c10_120] : memref<72xf32, #tpu.memory_space<smem>>
    %c11_121 = arith.constant 11 : index
    %556 = memref.load %arg8[%c11_121] : memref<72xf32, #tpu.memory_space<smem>>
    %c12_122 = arith.constant 12 : index
    %557 = memref.load %arg8[%c12_122] : memref<72xf32, #tpu.memory_space<smem>>
    %c13_123 = arith.constant 13 : index
    %558 = memref.load %arg8[%c13_123] : memref<72xf32, #tpu.memory_space<smem>>
    %c14_124 = arith.constant 14 : index
    %559 = memref.load %arg8[%c14_124] : memref<72xf32, #tpu.memory_space<smem>>
    %c15_125 = arith.constant 15 : index
    %560 = memref.load %arg8[%c15_125] : memref<72xf32, #tpu.memory_space<smem>>
    %c16_126 = arith.constant 16 : index
    %561 = memref.load %arg8[%c16_126] : memref<72xf32, #tpu.memory_space<smem>>
    %c17_127 = arith.constant 17 : index
    %562 = memref.load %arg8[%c17_127] : memref<72xf32, #tpu.memory_space<smem>>
    %c18_128 = arith.constant 18 : index
    %563 = memref.load %arg8[%c18_128] : memref<72xf32, #tpu.memory_space<smem>>
    %c19_129 = arith.constant 19 : index
    %564 = memref.load %arg8[%c19_129] : memref<72xf32, #tpu.memory_space<smem>>
    %c20_130 = arith.constant 20 : index
    %565 = memref.load %arg8[%c20_130] : memref<72xf32, #tpu.memory_space<smem>>
    %c21_131 = arith.constant 21 : index
    %566 = memref.load %arg8[%c21_131] : memref<72xf32, #tpu.memory_space<smem>>
    %c22_132 = arith.constant 22 : index
    %567 = memref.load %arg8[%c22_132] : memref<72xf32, #tpu.memory_space<smem>>
    %c23_133 = arith.constant 23 : index
    %568 = memref.load %arg8[%c23_133] : memref<72xf32, #tpu.memory_space<smem>>
    %c24_134 = arith.constant 24 : index
    %569 = memref.load %arg8[%c24_134] : memref<72xf32, #tpu.memory_space<smem>>
    %c25_135 = arith.constant 25 : index
    %570 = memref.load %arg8[%c25_135] : memref<72xf32, #tpu.memory_space<smem>>
    %c26_136 = arith.constant 26 : index
    %571 = memref.load %arg8[%c26_136] : memref<72xf32, #tpu.memory_space<smem>>
    %c27_137 = arith.constant 27 : index
    %572 = memref.load %arg8[%c27_137] : memref<72xf32, #tpu.memory_space<smem>>
    %c28_138 = arith.constant 28 : index
    %573 = memref.load %arg8[%c28_138] : memref<72xf32, #tpu.memory_space<smem>>
    %c29_139 = arith.constant 29 : index
    %574 = memref.load %arg8[%c29_139] : memref<72xf32, #tpu.memory_space<smem>>
    %c30_140 = arith.constant 30 : index
    %575 = memref.load %arg8[%c30_140] : memref<72xf32, #tpu.memory_space<smem>>
    %c31_141 = arith.constant 31 : index
    %576 = memref.load %arg8[%c31_141] : memref<72xf32, #tpu.memory_space<smem>>
    %c32_142 = arith.constant 32 : index
    %577 = memref.load %arg8[%c32_142] : memref<72xf32, #tpu.memory_space<smem>>
    %c33_143 = arith.constant 33 : index
    %578 = memref.load %arg8[%c33_143] : memref<72xf32, #tpu.memory_space<smem>>
    %c34_144 = arith.constant 34 : index
    %579 = memref.load %arg8[%c34_144] : memref<72xf32, #tpu.memory_space<smem>>
    %c35_145 = arith.constant 35 : index
    %580 = memref.load %arg8[%c35_145] : memref<72xf32, #tpu.memory_space<smem>>
    %c36_146 = arith.constant 36 : index
    %581 = memref.load %arg8[%c36_146] : memref<72xf32, #tpu.memory_space<smem>>
    %c37_147 = arith.constant 37 : index
    %582 = memref.load %arg8[%c37_147] : memref<72xf32, #tpu.memory_space<smem>>
    %c38_148 = arith.constant 38 : index
    %583 = memref.load %arg8[%c38_148] : memref<72xf32, #tpu.memory_space<smem>>
    %c39_149 = arith.constant 39 : index
    %584 = memref.load %arg8[%c39_149] : memref<72xf32, #tpu.memory_space<smem>>
    %c40_150 = arith.constant 40 : index
    %585 = memref.load %arg8[%c40_150] : memref<72xf32, #tpu.memory_space<smem>>
    %c41_151 = arith.constant 41 : index
    %586 = memref.load %arg8[%c41_151] : memref<72xf32, #tpu.memory_space<smem>>
    %c42_152 = arith.constant 42 : index
    %587 = memref.load %arg8[%c42_152] : memref<72xf32, #tpu.memory_space<smem>>
    %c43_153 = arith.constant 43 : index
    %588 = memref.load %arg8[%c43_153] : memref<72xf32, #tpu.memory_space<smem>>
    %c44_154 = arith.constant 44 : index
    %589 = memref.load %arg8[%c44_154] : memref<72xf32, #tpu.memory_space<smem>>
    %c45_155 = arith.constant 45 : index
    %590 = memref.load %arg8[%c45_155] : memref<72xf32, #tpu.memory_space<smem>>
    %c46_156 = arith.constant 46 : index
    %591 = memref.load %arg8[%c46_156] : memref<72xf32, #tpu.memory_space<smem>>
    %c47_157 = arith.constant 47 : index
    %592 = memref.load %arg8[%c47_157] : memref<72xf32, #tpu.memory_space<smem>>
    %c48_158 = arith.constant 48 : index
    %593 = memref.load %arg8[%c48_158] : memref<72xf32, #tpu.memory_space<smem>>
    %c49_159 = arith.constant 49 : index
    %594 = memref.load %arg8[%c49_159] : memref<72xf32, #tpu.memory_space<smem>>
    %c50_160 = arith.constant 50 : index
    %595 = memref.load %arg8[%c50_160] : memref<72xf32, #tpu.memory_space<smem>>
    %c51_161 = arith.constant 51 : index
    %596 = memref.load %arg8[%c51_161] : memref<72xf32, #tpu.memory_space<smem>>
    %c52_162 = arith.constant 52 : index
    %597 = memref.load %arg8[%c52_162] : memref<72xf32, #tpu.memory_space<smem>>
    %c53_163 = arith.constant 53 : index
    %598 = memref.load %arg8[%c53_163] : memref<72xf32, #tpu.memory_space<smem>>
    %c54_164 = arith.constant 54 : index
    %599 = memref.load %arg8[%c54_164] : memref<72xf32, #tpu.memory_space<smem>>
    %c55_165 = arith.constant 55 : index
    %600 = memref.load %arg8[%c55_165] : memref<72xf32, #tpu.memory_space<smem>>
    %c56_166 = arith.constant 56 : index
    %601 = memref.load %arg8[%c56_166] : memref<72xf32, #tpu.memory_space<smem>>
    %c57_167 = arith.constant 57 : index
    %602 = memref.load %arg8[%c57_167] : memref<72xf32, #tpu.memory_space<smem>>
    %c58_168 = arith.constant 58 : index
    %603 = memref.load %arg8[%c58_168] : memref<72xf32, #tpu.memory_space<smem>>
    %c59_169 = arith.constant 59 : index
    %604 = memref.load %arg8[%c59_169] : memref<72xf32, #tpu.memory_space<smem>>
    %c60_170 = arith.constant 60 : index
    %605 = memref.load %arg8[%c60_170] : memref<72xf32, #tpu.memory_space<smem>>
    %c61_171 = arith.constant 61 : index
    %606 = memref.load %arg8[%c61_171] : memref<72xf32, #tpu.memory_space<smem>>
    %c62_172 = arith.constant 62 : index
    %607 = memref.load %arg8[%c62_172] : memref<72xf32, #tpu.memory_space<smem>>
    %c63_173 = arith.constant 63 : index
    %608 = memref.load %arg8[%c63_173] : memref<72xf32, #tpu.memory_space<smem>>
    %c64_174 = arith.constant 64 : index
    %609 = memref.load %arg8[%c64_174] : memref<72xf32, #tpu.memory_space<smem>>
    %c65_175 = arith.constant 65 : index
    %610 = memref.load %arg8[%c65_175] : memref<72xf32, #tpu.memory_space<smem>>
    %c66_176 = arith.constant 66 : index
    %611 = memref.load %arg8[%c66_176] : memref<72xf32, #tpu.memory_space<smem>>
    %c67_177 = arith.constant 67 : index
    %612 = memref.load %arg8[%c67_177] : memref<72xf32, #tpu.memory_space<smem>>
    %c68_178 = arith.constant 68 : index
    %613 = memref.load %arg8[%c68_178] : memref<72xf32, #tpu.memory_space<smem>>
    %c69_179 = arith.constant 69 : index
    %614 = memref.load %arg8[%c69_179] : memref<72xf32, #tpu.memory_space<smem>>
    %c70_180 = arith.constant 70 : index
    %615 = memref.load %arg8[%c70_180] : memref<72xf32, #tpu.memory_space<smem>>
    %c71_181 = arith.constant 71 : index
    %616 = memref.load %arg8[%c71_181] : memref<72xf32, #tpu.memory_space<smem>>
    %c0_182 = arith.constant 0 : index
    %617 = memref.load %arg9[%c0_182] : memref<4xf32, #tpu.memory_space<smem>>
    %c1_183 = arith.constant 1 : index
    %618 = memref.load %arg9[%c1_183] : memref<4xf32, #tpu.memory_space<smem>>
    %c2_184 = arith.constant 2 : index
    %619 = memref.load %arg9[%c2_184] : memref<4xf32, #tpu.memory_space<smem>>
    %c3_185 = arith.constant 3 : index
    %620 = memref.load %arg9[%c3_185] : memref<4xf32, #tpu.memory_space<smem>>
    %c1_i32_186 = arith.constant 1 : i32
    %621 = tpu.dynamic_rotate %542 by %c1_i32_186 dim 1 : vector<16x128xf32>, i32 -> vector<16x128xf32>
    %cst_187 = arith.constant 0.000000e+00 : f32
    %622 = vector.broadcast %cst_187 : f32 to vector<16x128xf32>
    %623 = arith.select %7, %621, %622 : vector<16x128xi1>, vector<16x128xf32>
    %c1_i32_188 = arith.constant 1 : i32
    %624 = tpu.dynamic_rotate %544 by %c1_i32_188 dim 1 : vector<16x128xf32>, i32 -> vector<16x128xf32>
    %cst_189 = arith.constant 0.000000e+00 : f32
    %625 = vector.broadcast %cst_189 : f32 to vector<16x128xf32>
    %626 = arith.select %7, %624, %625 : vector<16x128xi1>, vector<16x128xf32>
    %c127_i32_190 = arith.constant 127 : i32
    %627 = tpu.dynamic_rotate %542 by %c127_i32_190 dim 1 : vector<16x128xf32>, i32 -> vector<16x128xf32>
    %cst_191 = arith.constant 0.000000e+00 : f32
    %628 = vector.broadcast %cst_191 : f32 to vector<16x128xf32>
    %629 = arith.select %9, %627, %628 : vector<16x128xi1>, vector<16x128xf32>
    %c127_i32_192 = arith.constant 127 : i32
    %630 = tpu.dynamic_rotate %544 by %c127_i32_192 dim 1 : vector<16x128xf32>, i32 -> vector<16x128xf32>
    %cst_193 = arith.constant 0.000000e+00 : f32
    %631 = vector.broadcast %cst_193 : f32 to vector<16x128xf32>
    %632 = arith.select %9, %630, %631 : vector<16x128xi1>, vector<16x128xf32>
    %633 = vector.broadcast %617 : f32 to vector<16x128xf32>
    %634 = vector.broadcast %618 : f32 to vector<16x128xf32>
    %635 = vector.broadcast %619 : f32 to vector<16x128xf32>
    %636 = vector.broadcast %620 : f32 to vector<16x128xf32>
    %637 = vector.broadcast %545 : f32 to vector<16x128xf32>
    %638 = arith.mulf %637, %623 : vector<16x128xf32>
    %639 = vector.broadcast %549 : f32 to vector<16x128xf32>
    %640 = arith.mulf %639, %626 : vector<16x128xf32>
    %641 = arith.addf %638, %640 : vector<16x128xf32>
    %642 = vector.broadcast %553 : f32 to vector<16x128xf32>
    %643 = arith.mulf %642, %542 : vector<16x128xf32>
    %644 = arith.addf %641, %643 : vector<16x128xf32>
    %645 = vector.broadcast %557 : f32 to vector<16x128xf32>
    %646 = arith.mulf %645, %544 : vector<16x128xf32>
    %647 = arith.addf %644, %646 : vector<16x128xf32>
    %648 = vector.broadcast %561 : f32 to vector<16x128xf32>
    %649 = arith.mulf %648, %629 : vector<16x128xf32>
    %650 = arith.addf %647, %649 : vector<16x128xf32>
    %651 = vector.broadcast %565 : f32 to vector<16x128xf32>
    %652 = arith.mulf %651, %632 : vector<16x128xf32>
    %653 = arith.addf %650, %652 : vector<16x128xf32>
    %c1_i32_194 = arith.constant 1 : i32
    %654 = tpu.dynamic_rotate %653 by %c1_i32_194 dim 0 : vector<16x128xf32>, i32 -> vector<16x128xf32>
    %cst_195 = arith.constant 0.000000e+00 : f32
    %655 = vector.broadcast %cst_195 : f32 to vector<16x128xf32>
    %656 = arith.select %3, %654, %655 : vector<16x128xi1>, vector<16x128xf32>
    %657 = arith.addf %633, %656 : vector<16x128xf32>
    %658 = vector.broadcast %546 : f32 to vector<16x128xf32>
    %659 = arith.mulf %658, %623 : vector<16x128xf32>
    %660 = vector.broadcast %550 : f32 to vector<16x128xf32>
    %661 = arith.mulf %660, %626 : vector<16x128xf32>
    %662 = arith.addf %659, %661 : vector<16x128xf32>
    %663 = vector.broadcast %554 : f32 to vector<16x128xf32>
    %664 = arith.mulf %663, %542 : vector<16x128xf32>
    %665 = arith.addf %662, %664 : vector<16x128xf32>
    %666 = vector.broadcast %558 : f32 to vector<16x128xf32>
    %667 = arith.mulf %666, %544 : vector<16x128xf32>
    %668 = arith.addf %665, %667 : vector<16x128xf32>
    %669 = vector.broadcast %562 : f32 to vector<16x128xf32>
    %670 = arith.mulf %669, %629 : vector<16x128xf32>
    %671 = arith.addf %668, %670 : vector<16x128xf32>
    %672 = vector.broadcast %566 : f32 to vector<16x128xf32>
    %673 = arith.mulf %672, %632 : vector<16x128xf32>
    %674 = arith.addf %671, %673 : vector<16x128xf32>
    %c1_i32_196 = arith.constant 1 : i32
    %675 = tpu.dynamic_rotate %674 by %c1_i32_196 dim 0 : vector<16x128xf32>, i32 -> vector<16x128xf32>
    %cst_197 = arith.constant 0.000000e+00 : f32
    %676 = vector.broadcast %cst_197 : f32 to vector<16x128xf32>
    %677 = arith.select %3, %675, %676 : vector<16x128xi1>, vector<16x128xf32>
    %678 = arith.addf %634, %677 : vector<16x128xf32>
    %679 = vector.broadcast %547 : f32 to vector<16x128xf32>
    %680 = arith.mulf %679, %623 : vector<16x128xf32>
    %681 = vector.broadcast %551 : f32 to vector<16x128xf32>
    %682 = arith.mulf %681, %626 : vector<16x128xf32>
    %683 = arith.addf %680, %682 : vector<16x128xf32>
    %684 = vector.broadcast %555 : f32 to vector<16x128xf32>
    %685 = arith.mulf %684, %542 : vector<16x128xf32>
    %686 = arith.addf %683, %685 : vector<16x128xf32>
    %687 = vector.broadcast %559 : f32 to vector<16x128xf32>
    %688 = arith.mulf %687, %544 : vector<16x128xf32>
    %689 = arith.addf %686, %688 : vector<16x128xf32>
    %690 = vector.broadcast %563 : f32 to vector<16x128xf32>
    %691 = arith.mulf %690, %629 : vector<16x128xf32>
    %692 = arith.addf %689, %691 : vector<16x128xf32>
    %693 = vector.broadcast %567 : f32 to vector<16x128xf32>
    %694 = arith.mulf %693, %632 : vector<16x128xf32>
    %695 = arith.addf %692, %694 : vector<16x128xf32>
    %c1_i32_198 = arith.constant 1 : i32
    %696 = tpu.dynamic_rotate %695 by %c1_i32_198 dim 0 : vector<16x128xf32>, i32 -> vector<16x128xf32>
    %cst_199 = arith.constant 0.000000e+00 : f32
    %697 = vector.broadcast %cst_199 : f32 to vector<16x128xf32>
    %698 = arith.select %3, %696, %697 : vector<16x128xi1>, vector<16x128xf32>
    %699 = arith.addf %635, %698 : vector<16x128xf32>
    %700 = vector.broadcast %548 : f32 to vector<16x128xf32>
    %701 = arith.mulf %700, %623 : vector<16x128xf32>
    %702 = vector.broadcast %552 : f32 to vector<16x128xf32>
    %703 = arith.mulf %702, %626 : vector<16x128xf32>
    %704 = arith.addf %701, %703 : vector<16x128xf32>
    %705 = vector.broadcast %556 : f32 to vector<16x128xf32>
    %706 = arith.mulf %705, %542 : vector<16x128xf32>
    %707 = arith.addf %704, %706 : vector<16x128xf32>
    %708 = vector.broadcast %560 : f32 to vector<16x128xf32>
    %709 = arith.mulf %708, %544 : vector<16x128xf32>
    %710 = arith.addf %707, %709 : vector<16x128xf32>
    %711 = vector.broadcast %564 : f32 to vector<16x128xf32>
    %712 = arith.mulf %711, %629 : vector<16x128xf32>
    %713 = arith.addf %710, %712 : vector<16x128xf32>
    %714 = vector.broadcast %568 : f32 to vector<16x128xf32>
    %715 = arith.mulf %714, %632 : vector<16x128xf32>
    %716 = arith.addf %713, %715 : vector<16x128xf32>
    %c1_i32_200 = arith.constant 1 : i32
    %717 = tpu.dynamic_rotate %716 by %c1_i32_200 dim 0 : vector<16x128xf32>, i32 -> vector<16x128xf32>
    %cst_201 = arith.constant 0.000000e+00 : f32
    %718 = vector.broadcast %cst_201 : f32 to vector<16x128xf32>
    %719 = arith.select %3, %717, %718 : vector<16x128xi1>, vector<16x128xf32>
    %720 = arith.addf %636, %719 : vector<16x128xf32>
    %721 = vector.broadcast %569 : f32 to vector<16x128xf32>
    %722 = arith.mulf %721, %623 : vector<16x128xf32>
    %723 = vector.broadcast %573 : f32 to vector<16x128xf32>
    %724 = arith.mulf %723, %626 : vector<16x128xf32>
    %725 = arith.addf %722, %724 : vector<16x128xf32>
    %726 = vector.broadcast %577 : f32 to vector<16x128xf32>
    %727 = arith.mulf %726, %542 : vector<16x128xf32>
    %728 = arith.addf %725, %727 : vector<16x128xf32>
    %729 = vector.broadcast %581 : f32 to vector<16x128xf32>
    %730 = arith.mulf %729, %544 : vector<16x128xf32>
    %731 = arith.addf %728, %730 : vector<16x128xf32>
    %732 = vector.broadcast %585 : f32 to vector<16x128xf32>
    %733 = arith.mulf %732, %629 : vector<16x128xf32>
    %734 = arith.addf %731, %733 : vector<16x128xf32>
    %735 = vector.broadcast %589 : f32 to vector<16x128xf32>
    %736 = arith.mulf %735, %632 : vector<16x128xf32>
    %737 = arith.addf %734, %736 : vector<16x128xf32>
    %738 = arith.addf %657, %737 : vector<16x128xf32>
    %739 = vector.broadcast %570 : f32 to vector<16x128xf32>
    %740 = arith.mulf %739, %623 : vector<16x128xf32>
    %741 = vector.broadcast %574 : f32 to vector<16x128xf32>
    %742 = arith.mulf %741, %626 : vector<16x128xf32>
    %743 = arith.addf %740, %742 : vector<16x128xf32>
    %744 = vector.broadcast %578 : f32 to vector<16x128xf32>
    %745 = arith.mulf %744, %542 : vector<16x128xf32>
    %746 = arith.addf %743, %745 : vector<16x128xf32>
    %747 = vector.broadcast %582 : f32 to vector<16x128xf32>
    %748 = arith.mulf %747, %544 : vector<16x128xf32>
    %749 = arith.addf %746, %748 : vector<16x128xf32>
    %750 = vector.broadcast %586 : f32 to vector<16x128xf32>
    %751 = arith.mulf %750, %629 : vector<16x128xf32>
    %752 = arith.addf %749, %751 : vector<16x128xf32>
    %753 = vector.broadcast %590 : f32 to vector<16x128xf32>
    %754 = arith.mulf %753, %632 : vector<16x128xf32>
    %755 = arith.addf %752, %754 : vector<16x128xf32>
    %756 = arith.addf %678, %755 : vector<16x128xf32>
    %757 = vector.broadcast %571 : f32 to vector<16x128xf32>
    %758 = arith.mulf %757, %623 : vector<16x128xf32>
    %759 = vector.broadcast %575 : f32 to vector<16x128xf32>
    %760 = arith.mulf %759, %626 : vector<16x128xf32>
    %761 = arith.addf %758, %760 : vector<16x128xf32>
    %762 = vector.broadcast %579 : f32 to vector<16x128xf32>
    %763 = arith.mulf %762, %542 : vector<16x128xf32>
    %764 = arith.addf %761, %763 : vector<16x128xf32>
    %765 = vector.broadcast %583 : f32 to vector<16x128xf32>
    %766 = arith.mulf %765, %544 : vector<16x128xf32>
    %767 = arith.addf %764, %766 : vector<16x128xf32>
    %768 = vector.broadcast %587 : f32 to vector<16x128xf32>
    %769 = arith.mulf %768, %629 : vector<16x128xf32>
    %770 = arith.addf %767, %769 : vector<16x128xf32>
    %771 = vector.broadcast %591 : f32 to vector<16x128xf32>
    %772 = arith.mulf %771, %632 : vector<16x128xf32>
    %773 = arith.addf %770, %772 : vector<16x128xf32>
    %774 = arith.addf %699, %773 : vector<16x128xf32>
    %775 = vector.broadcast %572 : f32 to vector<16x128xf32>
    %776 = arith.mulf %775, %623 : vector<16x128xf32>
    %777 = vector.broadcast %576 : f32 to vector<16x128xf32>
    %778 = arith.mulf %777, %626 : vector<16x128xf32>
    %779 = arith.addf %776, %778 : vector<16x128xf32>
    %780 = vector.broadcast %580 : f32 to vector<16x128xf32>
    %781 = arith.mulf %780, %542 : vector<16x128xf32>
    %782 = arith.addf %779, %781 : vector<16x128xf32>
    %783 = vector.broadcast %584 : f32 to vector<16x128xf32>
    %784 = arith.mulf %783, %544 : vector<16x128xf32>
    %785 = arith.addf %782, %784 : vector<16x128xf32>
    %786 = vector.broadcast %588 : f32 to vector<16x128xf32>
    %787 = arith.mulf %786, %629 : vector<16x128xf32>
    %788 = arith.addf %785, %787 : vector<16x128xf32>
    %789 = vector.broadcast %592 : f32 to vector<16x128xf32>
    %790 = arith.mulf %789, %632 : vector<16x128xf32>
    %791 = arith.addf %788, %790 : vector<16x128xf32>
    %792 = arith.addf %720, %791 : vector<16x128xf32>
    %793 = vector.broadcast %593 : f32 to vector<16x128xf32>
    %794 = arith.mulf %793, %623 : vector<16x128xf32>
    %795 = vector.broadcast %597 : f32 to vector<16x128xf32>
    %796 = arith.mulf %795, %626 : vector<16x128xf32>
    %797 = arith.addf %794, %796 : vector<16x128xf32>
    %798 = vector.broadcast %601 : f32 to vector<16x128xf32>
    %799 = arith.mulf %798, %542 : vector<16x128xf32>
    %800 = arith.addf %797, %799 : vector<16x128xf32>
    %801 = vector.broadcast %605 : f32 to vector<16x128xf32>
    %802 = arith.mulf %801, %544 : vector<16x128xf32>
    %803 = arith.addf %800, %802 : vector<16x128xf32>
    %804 = vector.broadcast %609 : f32 to vector<16x128xf32>
    %805 = arith.mulf %804, %629 : vector<16x128xf32>
    %806 = arith.addf %803, %805 : vector<16x128xf32>
    %807 = vector.broadcast %613 : f32 to vector<16x128xf32>
    %808 = arith.mulf %807, %632 : vector<16x128xf32>
    %809 = arith.addf %806, %808 : vector<16x128xf32>
    %c15_i32_202 = arith.constant 15 : i32
    %810 = tpu.dynamic_rotate %809 by %c15_i32_202 dim 0 : vector<16x128xf32>, i32 -> vector<16x128xf32>
    %cst_203 = arith.constant 0.000000e+00 : f32
    %811 = vector.broadcast %cst_203 : f32 to vector<16x128xf32>
    %812 = arith.select %5, %810, %811 : vector<16x128xi1>, vector<16x128xf32>
    %813 = arith.addf %738, %812 : vector<16x128xf32>
    %814 = vector.broadcast %594 : f32 to vector<16x128xf32>
    %815 = arith.mulf %814, %623 : vector<16x128xf32>
    %816 = vector.broadcast %598 : f32 to vector<16x128xf32>
    %817 = arith.mulf %816, %626 : vector<16x128xf32>
    %818 = arith.addf %815, %817 : vector<16x128xf32>
    %819 = vector.broadcast %602 : f32 to vector<16x128xf32>
    %820 = arith.mulf %819, %542 : vector<16x128xf32>
    %821 = arith.addf %818, %820 : vector<16x128xf32>
    %822 = vector.broadcast %606 : f32 to vector<16x128xf32>
    %823 = arith.mulf %822, %544 : vector<16x128xf32>
    %824 = arith.addf %821, %823 : vector<16x128xf32>
    %825 = vector.broadcast %610 : f32 to vector<16x128xf32>
    %826 = arith.mulf %825, %629 : vector<16x128xf32>
    %827 = arith.addf %824, %826 : vector<16x128xf32>
    %828 = vector.broadcast %614 : f32 to vector<16x128xf32>
    %829 = arith.mulf %828, %632 : vector<16x128xf32>
    %830 = arith.addf %827, %829 : vector<16x128xf32>
    %c15_i32_204 = arith.constant 15 : i32
    %831 = tpu.dynamic_rotate %830 by %c15_i32_204 dim 0 : vector<16x128xf32>, i32 -> vector<16x128xf32>
    %cst_205 = arith.constant 0.000000e+00 : f32
    %832 = vector.broadcast %cst_205 : f32 to vector<16x128xf32>
    %833 = arith.select %5, %831, %832 : vector<16x128xi1>, vector<16x128xf32>
    %834 = arith.addf %756, %833 : vector<16x128xf32>
    %835 = vector.broadcast %595 : f32 to vector<16x128xf32>
    %836 = arith.mulf %835, %623 : vector<16x128xf32>
    %837 = vector.broadcast %599 : f32 to vector<16x128xf32>
    %838 = arith.mulf %837, %626 : vector<16x128xf32>
    %839 = arith.addf %836, %838 : vector<16x128xf32>
    %840 = vector.broadcast %603 : f32 to vector<16x128xf32>
    %841 = arith.mulf %840, %542 : vector<16x128xf32>
    %842 = arith.addf %839, %841 : vector<16x128xf32>
    %843 = vector.broadcast %607 : f32 to vector<16x128xf32>
    %844 = arith.mulf %843, %544 : vector<16x128xf32>
    %845 = arith.addf %842, %844 : vector<16x128xf32>
    %846 = vector.broadcast %611 : f32 to vector<16x128xf32>
    %847 = arith.mulf %846, %629 : vector<16x128xf32>
    %848 = arith.addf %845, %847 : vector<16x128xf32>
    %849 = vector.broadcast %615 : f32 to vector<16x128xf32>
    %850 = arith.mulf %849, %632 : vector<16x128xf32>
    %851 = arith.addf %848, %850 : vector<16x128xf32>
    %c15_i32_206 = arith.constant 15 : i32
    %852 = tpu.dynamic_rotate %851 by %c15_i32_206 dim 0 : vector<16x128xf32>, i32 -> vector<16x128xf32>
    %cst_207 = arith.constant 0.000000e+00 : f32
    %853 = vector.broadcast %cst_207 : f32 to vector<16x128xf32>
    %854 = arith.select %5, %852, %853 : vector<16x128xi1>, vector<16x128xf32>
    %855 = arith.addf %774, %854 : vector<16x128xf32>
    %856 = vector.broadcast %596 : f32 to vector<16x128xf32>
    %857 = arith.mulf %856, %623 : vector<16x128xf32>
    %858 = vector.broadcast %600 : f32 to vector<16x128xf32>
    %859 = arith.mulf %858, %626 : vector<16x128xf32>
    %860 = arith.addf %857, %859 : vector<16x128xf32>
    %861 = vector.broadcast %604 : f32 to vector<16x128xf32>
    %862 = arith.mulf %861, %542 : vector<16x128xf32>
    %863 = arith.addf %860, %862 : vector<16x128xf32>
    %864 = vector.broadcast %608 : f32 to vector<16x128xf32>
    %865 = arith.mulf %864, %544 : vector<16x128xf32>
    %866 = arith.addf %863, %865 : vector<16x128xf32>
    %867 = vector.broadcast %612 : f32 to vector<16x128xf32>
    %868 = arith.mulf %867, %629 : vector<16x128xf32>
    %869 = arith.addf %866, %868 : vector<16x128xf32>
    %870 = vector.broadcast %616 : f32 to vector<16x128xf32>
    %871 = arith.mulf %870, %632 : vector<16x128xf32>
    %872 = arith.addf %869, %871 : vector<16x128xf32>
    %c15_i32_208 = arith.constant 15 : i32
    %873 = tpu.dynamic_rotate %872 by %c15_i32_208 dim 0 : vector<16x128xf32>, i32 -> vector<16x128xf32>
    %cst_209 = arith.constant 0.000000e+00 : f32
    %874 = vector.broadcast %cst_209 : f32 to vector<16x128xf32>
    %875 = arith.select %5, %873, %874 : vector<16x128xi1>, vector<16x128xf32>
    %876 = arith.addf %792, %875 : vector<16x128xf32>
    %cst_210 = arith.constant 0.000000e+00 : f32
    %877 = vector.broadcast %cst_210 : f32 to vector<16x128xf32>
    %878 = arith.maximumf %813, %877 : vector<16x128xf32>
    %cst_211 = arith.constant 0.000000e+00 : f32
    %879 = vector.broadcast %cst_211 : f32 to vector<16x128xf32>
    %880 = arith.maximumf %834, %879 : vector<16x128xf32>
    %cst_212 = arith.constant 0.000000e+00 : f32
    %881 = vector.broadcast %cst_212 : f32 to vector<16x128xf32>
    %882 = arith.maximumf %855, %881 : vector<16x128xf32>
    %cst_213 = arith.constant 0.000000e+00 : f32
    %883 = vector.broadcast %cst_213 : f32 to vector<16x128xf32>
    %884 = arith.maximumf %876, %883 : vector<16x128xf32>
    %885 = arith.addf %878, %11 : vector<16x128xf32>
    %c0_214 = arith.constant 0 : index
    %c0_215 = arith.constant 0 : index
    %c0_216 = arith.constant 0 : index
    %c0_217 = arith.constant 0 : index
    %886 = vector.load %arg10[%c0_214, %c0_215, %c0_216, %c0_217] : memref<1x4x16x128xf32, #tpu.memory_space<vmem>>, vector<1x1x16x128xf32>
    %887 = vector.shape_cast %886 : vector<1x1x16x128xf32> to vector<16x128xf32>
    %888 = vector.shape_cast %885 : vector<16x128xf32> to vector<1x1x16x128xf32>
    tpu.vector_store %arg10[%c0_214, %c0_215, %c0_216, %c0_217], %888 {strides = array<i32>} : memref<1x4x16x128xf32, #tpu.memory_space<vmem>>, vector<1x1x16x128xf32>,
    %889 = arith.addf %880, %13 : vector<16x128xf32>
    %c0_218 = arith.constant 0 : index
    %c1_219 = arith.constant 1 : index
    %c0_220 = arith.constant 0 : index
    %c0_221 = arith.constant 0 : index
    %890 = vector.load %arg10[%c0_218, %c1_219, %c0_220, %c0_221] : memref<1x4x16x128xf32, #tpu.memory_space<vmem>>, vector<1x1x16x128xf32>
    %891 = vector.shape_cast %890 : vector<1x1x16x128xf32> to vector<16x128xf32>
    %892 = vector.shape_cast %889 : vector<16x128xf32> to vector<1x1x16x128xf32>
    tpu.vector_store %arg10[%c0_218, %c1_219, %c0_220, %c0_221], %892 {strides = array<i32>} : memref<1x4x16x128xf32, #tpu.memory_space<vmem>>, vector<1x1x16x128xf32>,
    %893 = arith.addf %882, %15 : vector<16x128xf32>
    %c0_222 = arith.constant 0 : index
    %c2_223 = arith.constant 2 : index
    %c0_224 = arith.constant 0 : index
    %c0_225 = arith.constant 0 : index
    %894 = vector.load %arg10[%c0_222, %c2_223, %c0_224, %c0_225] : memref<1x4x16x128xf32, #tpu.memory_space<vmem>>, vector<1x1x16x128xf32>
    %895 = vector.shape_cast %894 : vector<1x1x16x128xf32> to vector<16x128xf32>
    %896 = vector.shape_cast %893 : vector<16x128xf32> to vector<1x1x16x128xf32>
    tpu.vector_store %arg10[%c0_222, %c2_223, %c0_224, %c0_225], %896 {strides = array<i32>} : memref<1x4x16x128xf32, #tpu.memory_space<vmem>>, vector<1x1x16x128xf32>,
    %897 = arith.addf %884, %17 : vector<16x128xf32>
    %c0_226 = arith.constant 0 : index
    %c3_227 = arith.constant 3 : index
    %c0_228 = arith.constant 0 : index
    %c0_229 = arith.constant 0 : index
    %898 = vector.load %arg10[%c0_226, %c3_227, %c0_228, %c0_229] : memref<1x4x16x128xf32, #tpu.memory_space<vmem>>, vector<1x1x16x128xf32>
    %899 = vector.shape_cast %898 : vector<1x1x16x128xf32> to vector<16x128xf32>
    %900 = vector.shape_cast %897 : vector<16x128xf32> to vector<1x1x16x128xf32>
    tpu.vector_store %arg10[%c0_226, %c3_227, %c0_228, %c0_229], %900 {strides = array<i32>} : memref<1x4x16x128xf32, #tpu.memory_space<vmem>>, vector<1x1x16x128xf32>,
    %c0_230 = arith.constant 0 : index
    %c0_231 = arith.constant 0 : index
    %c0_232 = arith.constant 0 : index
    %c0_233 = arith.constant 0 : index
    %901 = vector.load %arg11[%c0_230, %c0_231, %c0_232, %c0_233] : memref<1x1x16x128xf32, #tpu.memory_space<vmem>>, vector<1x1x16x128xf32>
    %902 = vector.shape_cast %901 : vector<1x1x16x128xf32> to vector<16x128xf32>
    %903 = vector.shape_cast %446 : vector<16x128xf32> to vector<1x1x16x128xf32>
    tpu.vector_store %arg11[%c0_230, %c0_231, %c0_232, %c0_233], %903 {strides = array<i32>} : memref<1x1x16x128xf32, #tpu.memory_space<vmem>>, vector<1x1x16x128xf32>,
    return
  }
  func.func @transform_0(%arg0: i32) -> (i32, i32, i32, i32) {
    %c0_i32 = arith.constant 0 : i32
    %c0_i32_0 = arith.constant 0 : i32
    %c0_i32_1 = arith.constant 0 : i32
    %c0_i32_2 = arith.constant 0 : i32
    return %arg0, %c0_i32, %c0_i32_0, %c0_i32_1 : i32, i32, i32, i32
  }
  func.func @transform_1(%arg0: i32) -> i32 {
    %c0_i32 = arith.constant 0 : i32
    %c0_i32_0 = arith.constant 0 : i32
    return %c0_i32 : i32
  }
  func.func @transform_2(%arg0: i32) -> i32 {
    %c0_i32 = arith.constant 0 : i32
    %c0_i32_0 = arith.constant 0 : i32
    return %c0_i32 : i32
  }
  func.func @transform_3(%arg0: i32) -> i32 {
    %c0_i32 = arith.constant 0 : i32
    %c0_i32_0 = arith.constant 0 : i32
    return %c0_i32 : i32
  }
  func.func @transform_4(%arg0: i32) -> i32 {
    %c0_i32 = arith.constant 0 : i32
    %c0_i32_0 = arith.constant 0 : i32
    return %c0_i32 : i32
  }
  func.func @transform_5(%arg0: i32) -> i32 {
    %c0_i32 = arith.constant 0 : i32
    %c0_i32_0 = arith.constant 0 : i32
    return %c0_i32 : i32
  }
  func.func @transform_6(%arg0: i32) -> i32 {
    %c0_i32 = arith.constant 0 : i32
    %c0_i32_0 = arith.constant 0 : i32
    return %c0_i32 : i32
  }
  func.func @transform_7(%arg0: i32) -> i32 {
    %c0_i32 = arith.constant 0 : i32
    %c0_i32_0 = arith.constant 0 : i32
    return %c0_i32 : i32
  }
  func.func @transform_8(%arg0: i32) -> i32 {
    %c0_i32 = arith.constant 0 : i32
    %c0_i32_0 = arith.constant 0 : i32
    return %c0_i32 : i32
  }
  func.func @transform_9(%arg0: i32) -> (i32, i32, i32, i32) {
    %c0_i32 = arith.constant 0 : i32
    %c0_i32_0 = arith.constant 0 : i32
    %c0_i32_1 = arith.constant 0 : i32
    %c0_i32_2 = arith.constant 0 : i32
    return %arg0, %c0_i32, %c0_i32_0, %c0_i32_1 : i32, i32, i32, i32
  }
  func.func @transform_10(%arg0: i32) -> (i32, i32, i32, i32) {
    %c0_i32 = arith.constant 0 : i32
    %c0_i32_0 = arith.constant 0 : i32
    %c0_i32_1 = arith.constant 0 : i32
    %c0_i32_2 = arith.constant 0 : i32
    return %arg0, %c0_i32, %c0_i32_0, %c0_i32_1 : i32, i32, i32, i32
  }
}

</mosaic_0001>

<llo_original>
// kernel: detailbranch_forward.1
$region0: #{detailbranch_forward.1}
  #allocation0 [shape = 'u32[]', space=smem, size = 0x4, offset = 0x4, fixed_abs, tag = 'smem constant byte address 0x4 - core index']
  #allocation1 [shape = 'u32[144,128]{1,0:T(1,128)}', space=vmem, size = 0x12000, scoped, tag = 'internal scratch']
  #allocation2 [shape = 'f32[1]{0:T(128)S(6)}', space=smem, size = 0x200, scoped, tag = 'scoped memory for detailbranch_forward.1']
  %s0 = inlined_call_operand.hbm [shape: f32[2,4,16,128], index: 0, kind: input, shape index: {}]
  %s1 = inlined_call_operand.vmem [shape: f32[72], index: 1, kind: input, shape index: {}]
  %s2 = inlined_call_operand.vmem [shape: f32[2], index: 2, kind: input, shape index: {}]
  %s3 = inlined_call_operand.vmem [shape: f32[18], index: 3, kind: input, shape index: {}]
  %s4 = inlined_call_operand.<no memory space> [shape: f32[1], index: 4, kind: input, shape index: {}]
  %s5 = inlined_call_operand.vmem [shape: f32[18], index: 5, kind: input, shape index: {}]
  %s6 = inlined_call_operand.vmem [shape: f32[2], index: 6, kind: input, shape index: {}]
  %s7 = inlined_call_operand.vmem [shape: f32[72], index: 7, kind: input, shape index: {}]
  %s8 = inlined_call_operand.vmem [shape: f32[4], index: 8, kind: input, shape index: {}]
  %s9 = inlined_call_operand.hbm [shape: f32[2,4,16,128], index: 9, kind: output, shape index: {0}]
  %s10 = inlined_call_operand.hbm [shape: f32[2,1,16,128], index: 10, kind: output, shape index: {1}]
  %11 = xla_tuple %s9, %s10
  %s12 = sld [smem:[#allocation0]]
  $region109: #{detailbranch_forward.1} parent=0
    _
  %s14 = ssub.s32 1, %s12
  %s15 = scalar_select 0, %s14, %s12
  %16 = sst [smem:[#allocation2]] %s4
  $region1: #{detailbranch_forward.1} parent=0
    #allocation3 [shape = 'u8[65536]{0}', space=vmem, size = 0x10000, scoped, tag = 'input window, operand 0']
    #allocation4 [shape = 's32[2]{0}', space=sflag, size = 0x8, scoped, tag = 'scoped memory for detailbranch_forward.1']
    #allocation5 [shape = 's32[2]{0}', space=sflag, size = 0x8, scoped, tag = 'scoped memory for detailbranch_forward.1']
    #allocation6 [shape = 's32[2]{0}', space=sflag, size = 0x8, scoped, tag = 'scoped memory for detailbranch_forward.1']
    #allocation7 [shape = 'u8[512]{0}', space=smem, size = 0x200, scoped, tag = 'input window, operand 1, single buffered']
    #allocation8 [shape = 'u8[512]{0}', space=smem, size = 0x200, scoped, tag = 'input window, operand 2, single buffered']
    #allocation9 [shape = 's32[1]{0}', space=sflag, size = 0x4, scoped, tag = 'scoped memory for detailbranch_forward.1']
    #allocation10 [shape = 'u8[512]{0}', space=smem, size = 0x200, scoped, tag = 'input window, operand 3, single buffered']
    #allocation11 [shape = 'u8[512]{0}', space=smem, size = 0x200, scoped, tag = 'input window, operand 5, single buffered']
    #allocation12 [shape = 's32[1]{0}', space=sflag, size = 0x4, scoped, tag = 'scoped memory for detailbranch_forward.1']
    #allocation13 [shape = 'u8[512]{0}', space=smem, size = 0x200, scoped, tag = 'input window, operand 6, single buffered']
    #allocation14 [shape = 'u8[512]{0}', space=smem, size = 0x200, scoped, tag = 'input window, operand 7, single buffered']
    #allocation15 [shape = 's32[1]{0}', space=sflag, size = 0x4, scoped, tag = 'scoped memory for detailbranch_forward.1']
    #allocation16 [shape = 'u8[512]{0}', space=smem, size = 0x200, scoped, tag = 'input window, operand 8, single buffered']
    #allocation17 [shape = 'u8[65536]{0}', space=vmem, size = 0x10000, scoped, tag = 'output window, operand 0']
    #allocation18 [shape = 'u8[16384]{0}', space=vmem, size = 0x4000, scoped, tag = 'output window, operand 1']
    #allocation19 [shape = 's32[2]{0}', space=sflag, size = 0x8, scoped, tag = 'scoped memory for detailbranch_forward.1']
    %17 = vsyncpa [#allocation4], 0
    %s18 = scalar_lea.sflag [#allocation4], 1
    %19 = vsyncpa %s18, 0
    %20 = vsyncpa [#allocation6], 0
    %21 = vsyncpa [#allocation9], 0
    %22 = vsyncpa [#allocation12], 0
    %23 = vsyncpa [#allocation15], 0
    %24 = vsyncpa [#allocation5], 0
    %s25 = scalar_lea.sflag [#allocation5], 1
    %26 = vsyncpa %s25, 0
    %27 = vsyncpa [#allocation19], 0
    %s28 = scalar_lea.sflag [#allocation19], 1
    %29 = vsyncpa %s28, 0
    loop: start=0, step=1, limit=4
    $region2: #{detailbranch_forward.1} parent=1 // loop_pre_header
      _
    $region3: #{detailbranch_forward.1} parent=1 // loop_header
      %s31 = sphi 0, %s35
      %p32 = scmp.ge.s32.totalorder %s31, 4
      %s41 = sphi 0, %s43
      %s44 = sphi 0, %s41
      %s45 = sphi 0, %s44
      %s61 = sphi 0, %s45
      %s65 = sphi 0, %s65
      %s67 = sphi 0, %s65
      %s68 = sphi 0, %s67
      %s82 = sphi 0, %s68
      %s86 = sphi 0, %s86
      %s88 = sphi 0, %s86
      %s89 = sphi 0, %s88
      %s103 = sphi 0, %s89
      %s107 = sphi 0, %s107
      %s109 = sphi 0, %s107
      %s110 = sphi 0, %s109
      %s124 = sphi 0, %s110
      %s128 = sphi 0, %s128
      %s130 = sphi 0, %s128
      %s131 = sphi 0, %s130
      %s145 = sphi 0, %s131
      %s149 = sphi 0, %s149
      %s151 = sphi 0, %s149
      %s152 = sphi 0, %s151
      %s166 = sphi 0, %s152
      %s170 = sphi 0, %s170
      %s172 = sphi 0, %s170
      %s173 = sphi 0, %s172
      %s187 = sphi 0, %s173
      %s191 = sphi 0, %s191
      %s193 = sphi 0, %s191
      %s194 = sphi 0, %s193
      %s208 = sphi 0, %s194
      %s212 = sphi 0, %s212
      %s214 = sphi 0, %s212
      %s215 = sphi 0, %s214
      %s229 = sphi 0, %s215
      %s235 = sphi 0, %s237
      %s238 = sphi 0, %s235
      %s239 = sphi 0, %s238
      %s255 = sphi 0, %s239
      %s261 = sphi 0, %s263
      %s264 = sphi 0, %s261
      %s265 = sphi 0, %s264
      %s281 = sphi 0, %s265
    $region4: #{detailbranch_forward.1} parent=1 // loop_header_branch
      %34 = sbr.rel (%p32) target = $region8
    $region5: #{detailbranch_forward.1} parent=1 // loop_body
      %s36 = ssub.s32 %s31, 1
      %s37 = ssub.s32 %s31, 2
      %s38 = sadd.s32 %s31, 1
      %s39 = ssub.s32 %s31, %s38
      %p40 = scmp.eq.s32.totalorder %s39, 0
      %s42 = sadd.s32 %s41, 1
      %s43 = scalar_select %p40, %s41, %s42
      %p46 = pneg %p40
      %p47 = scmp.eq.s32.totalorder %s31, 1
      %p48 = por %p46, %p47
      %p49 = scmp.ne.s32.totalorder %s41, %s44
      %p50 = scmp.eq.s32.totalorder %s31, 0
      %p51 = por %p49, %p50
      %p52 = scmp.ne.s32.totalorder %s41, %s44
      %p53 = scmp.eq.s32.totalorder %s36, 1
      %p54 = por %p52, %p53
      %p55 = scmp.ne.s32.totalorder %s44, %s45
      %p56 = scmp.eq.s32.totalorder %s36, 0
      %p57 = por %p55, %p56
      %p58 = scmp.ne.s32.totalorder %s44, %s45
      %p59 = scmp.eq.s32.totalorder %s37, 1
      %p60 = por %p58, %p59
      %p62 = scmp.ne.s32.totalorder %s45, %s61
      %p63 = scmp.eq.s32.totalorder %s37, 0
      %p64 = por %p62, %p63
      %s66 = sadd.s32 %s65, 1
      %p69 = scmp.eq.s32.totalorder %s31, 1
      %p70 = scmp.ne.s32.totalorder %s65, %s67
      %p71 = scmp.eq.s32.totalorder %s31, 0
      %p72 = por %p70, %p71
      %p73 = scmp.ne.s32.totalorder %s65, %s67
      %p74 = scmp.eq.s32.totalorder %s36, 1
      %p75 = por %p73, %p74
      %p76 = scmp.ne.s32.totalorder %s67, %s68
      %p77 = scmp.eq.s32.totalorder %s36, 0
      %p78 = por %p76, %p77
      %p79 = scmp.ne.s32.totalorder %s67, %s68
      %p80 = scmp.eq.s32.totalorder %s37, 1
      %p81 = por %p79, %p80
      %p83 = scmp.ne.s32.totalorder %s68, %s82
      %p84 = scmp.eq.s32.totalorder %s37, 0
      %p85 = por %p83, %p84
      %s87 = sadd.s32 %s86, 1
      %p90 = scmp.eq.s32.totalorder %s31, 1
      %p91 = scmp.ne.s32.totalorder %s86, %s88
      %p92 = scmp.eq.s32.totalorder %s31, 0
      %p93 = por %p91, %p92
      %p94 = scmp.ne.s32.totalorder %s86, %s88
      %p95 = scmp.eq.s32.totalorder %s36, 1
      %p96 = por %p94, %p95
      %p97 = scmp.ne.s32.totalorder %s88, %s89
      %p98 = scmp.eq.s32.totalorder %s36, 0
      %p99 = por %p97, %p98
      %p100 = scmp.ne.s32.totalorder %s88, %s89
      %p101 = scmp.eq.s32.totalorder %s37, 1
      %p102 = por %p100, %p101
      %p104 = scmp.ne.s32.totalorder %s89, %s103
      %p105 = scmp.eq.s32.totalorder %s37, 0
      %p106 = por %p104, %p105
      %s108 = sadd.s32 %s107, 1
      %p111 = scmp.eq.s32.totalorder %s31, 1
      %p112 = scmp.ne.s32.totalorder %s107, %s109
      %p113 = scmp.eq.s32.totalorder %s31, 0
      %p114 = por %p112, %p113
      %p115 = scmp.ne.s32.totalorder %s107, %s109
      %p116 = scmp.eq.s32.totalorder %s36, 1
      %p117 = por %p115, %p116
      %p118 = scmp.ne.s32.totalorder %s109, %s110
      %p119 = scmp.eq.s32.totalorder %s36, 0
      %p120 = por %p118, %p119
      %p121 = scmp.ne.s32.totalorder %s109, %s110
      %p122 = scmp.eq.s32.totalorder %s37, 1
      %p123 = por %p121, %p122
      %p125 = scmp.ne.s32.totalorder %s110, %s124
      %p126 = scmp.eq.s32.totalorder %s37, 0
      %p127 = por %p125, %p126
      %s129 = sadd.s32 %s128, 1
      %p132 = scmp.eq.s32.totalorder %s31, 1
      %p133 = scmp.ne.s32.totalorder %s128, %s130
      %p134 = scmp.eq.s32.totalorder %s31, 0
      %p135 = por %p133, %p134
      %p136 = scmp.ne.s32.totalorder %s128, %s130
      %p137 = scmp.eq.s32.totalorder %s36, 1
      %p138 = por %p136, %p137
      %p139 = scmp.ne.s32.totalorder %s130, %s131
      %p140 = scmp.eq.s32.totalorder %s36, 0
      %p141 = por %p139, %p140
      %p142 = scmp.ne.s32.totalorder %s130, %s131
      %p143 = scmp.eq.s32.totalorder %s37, 1
      %p144 = por %p142, %p143
      %p146 = scmp.ne.s32.totalorder %s131, %s145
      %p147 = scmp.eq.s32.totalorder %s37, 0
      %p148 = por %p146, %p147
      %s150 = sadd.s32 %s149, 1
      %p153 = scmp.eq.s32.totalorder %s31, 1
      %p154 = scmp.ne.s32.totalorder %s149, %s151
      %p155 = scmp.eq.s32.totalorder %s31, 0
      %p156 = por %p154, %p155
      %p157 = scmp.ne.s32.totalorder %s149, %s151
      %p158 = scmp.eq.s32.totalorder %s36, 1
      %p159 = por %p157, %p158
      %p160 = scmp.ne.s32.totalorder %s151, %s152
      %p161 = scmp.eq.s32.totalorder %s36, 0
      %p162 = por %p160, %p161
      %p163 = scmp.ne.s32.totalorder %s151, %s152
      %p164 = scmp.eq.s32.totalorder %s37, 1
      %p165 = por %p163, %p164
      %p167 = scmp.ne.s32.totalorder %s152, %s166
      %p168 = scmp.eq.s32.totalorder %s37, 0
      %p169 = por %p167, %p168
      %s171 = sadd.s32 %s170, 1
      %p174 = scmp.eq.s32.totalorder %s31, 1
      %p175 = scmp.ne.s32.totalorder %s170, %s172
      %p176 = scmp.eq.s32.totalorder %s31, 0
      %p177 = por %p175, %p176
      %p178 = scmp.ne.s32.totalorder %s170, %s172
      %p179 = scmp.eq.s32.totalorder %s36, 1
      %p180 = por %p178, %p179
      %p181 = scmp.ne.s32.totalorder %s172, %s173
      %p182 = scmp.eq.s32.totalorder %s36, 0
      %p183 = por %p181, %p182
      %p184 = scmp.ne.s32.totalorder %s172, %s173
      %p185 = scmp.eq.s32.totalorder %s37, 1
      %p186 = por %p184, %p185
      %p188 = scmp.ne.s32.totalorder %s173, %s187
      %p189 = scmp.eq.s32.totalorder %s37, 0
      %p190 = por %p188, %p189
      %s192 = sadd.s32 %s191, 1
      %p195 = scmp.eq.s32.totalorder %s31, 1
      %p196 = scmp.ne.s32.totalorder %s191, %s193
      %p197 = scmp.eq.s32.totalorder %s31, 0
      %p198 = por %p196, %p197
      %p199 = scmp.ne.s32.totalorder %s191, %s193
      %p200 = scmp.eq.s32.totalorder %s36, 1
      %p201 = por %p199, %p200
      %p202 = scmp.ne.s32.totalorder %s193, %s194
      %p203 = scmp.eq.s32.totalorder %s36, 0
      %p204 = por %p202, %p203
      %p205 = scmp.ne.s32.totalorder %s193, %s194
      %p206 = scmp.eq.s32.totalorder %s37, 1
      %p207 = por %p205, %p206
      %p209 = scmp.ne.s32.totalorder %s194, %s208
      %p210 = scmp.eq.s32.totalorder %s37, 0
      %p211 = por %p209, %p210
      %s213 = sadd.s32 %s212, 1
      %p216 = scmp.eq.s32.totalorder %s31, 1
      %p217 = scmp.ne.s32.totalorder %s212, %s214
      %p218 = scmp.eq.s32.totalorder %s31, 0
      %p219 = por %p217, %p218
      %p220 = scmp.ne.s32.totalorder %s212, %s214
      %p221 = scmp.eq.s32.totalorder %s36, 1
      %p222 = por %p220, %p221
      %p223 = scmp.ne.s32.totalorder %s214, %s215
      %p224 = scmp.eq.s32.totalorder %s36, 0
      %p225 = por %p223, %p224
      %p226 = scmp.ne.s32.totalorder %s214, %s215
      %p227 = scmp.eq.s32.totalorder %s37, 1
      %p228 = por %p226, %p227
      %p230 = scmp.ne.s32.totalorder %s215, %s229
      %p231 = scmp.eq.s32.totalorder %s37, 0
      %p232 = por %p230, %p231
      %s233 = ssub.s32 %s31, %s38
      %p234 = scmp.eq.s32.totalorder %s233, 0
      %s236 = sadd.s32 %s235, 1
      %s237 = scalar_select %p234, %s235, %s236
      %p240 = pneg %p234
      %p241 = scmp.eq.s32.totalorder %s31, 1
      %p242 = por %p240, %p241
      %p243 = scmp.ne.s32.totalorder %s235, %s238
      %p244 = scmp.eq.s32.totalorder %s31, 0
      %p245 = por %p243, %p244
      %p246 = scmp.ne.s32.totalorder %s235, %s238
      %p247 = scmp.eq.s32.totalorder %s36, 1
      %p248 = por %p246, %p247
      %p249 = scmp.ne.s32.totalorder %s238, %s239
      %p250 = scmp.eq.s32.totalorder %s36, 0
      %p251 = por %p249, %p250
      %p252 = scmp.ne.s32.totalorder %s238, %s239
      %p253 = scmp.eq.s32.totalorder %s37, 1
      %p254 = por %p252, %p253
      %p256 = scmp.ne.s32.totalorder %s239, %s255
      %p257 = scmp.eq.s32.totalorder %s37, 0
      %p258 = por %p256, %p257
      %s259 = ssub.s32 %s31, %s38
      %p260 = scmp.eq.s32.totalorder %s259, 0
      %s262 = sadd.s32 %s261, 1
      %s263 = scalar_select %p260, %s261, %s262
      %p266 = pneg %p260
      %p267 = scmp.eq.s32.totalorder %s31, 1
      %p268 = por %p266, %p267
      %p269 = scmp.ne.s32.totalorder %s261, %s264
      %p270 = scmp.eq.s32.totalorder %s31, 0
      %p271 = por %p269, %p270
      %p272 = scmp.ne.s32.totalorder %s261, %s264
      %p273 = scmp.eq.s32.totalorder %s36, 1
      %p274 = por %p272, %p273
      %p275 = scmp.ne.s32.totalorder %s264, %s265
      %p276 = scmp.eq.s32.totalorder %s36, 0
      %p277 = por %p275, %p276
      %p278 = scmp.ne.s32.totalorder %s264, %s265
      %p279 = scmp.eq.s32.totalorder %s37, 1
      %p280 = por %p278, %p279
      %p282 = scmp.ne.s32.totalorder %s265, %s281
      %p283 = scmp.eq.s32.totalorder %s37, 0
      %p284 = por %p282, %p283
      %p285 = scmp.le.s32.totalorder 1, %s31
      %p286 = scmp.lt.s32.totalorder %s31, 3
      %p287 = pnand %p285, %p286
      %p288 = pneg %p287
      // Predicated region
      $region9: #{detailbranch_forward.1} parent=5 // pred_check
        _
      $region10: #{detailbranch_forward.1} parent=5 // pred_check_branch
        %290 = sbr.rel (%p287) target = $region12
      $region11: #{detailbranch_forward.1} parent=5 // pred_region
        %s291 = ssub.s32 %s31, 1
        // Predicated region
        $region13: #{detailbranch_forward.1} parent=11 // pred_check
          %p292 = pneg %p78
        $region14: #{detailbranch_forward.1} parent=11 // pred_check_branch
          %294 = sbr.rel (%p292) target = $region16
        $region15: #{detailbranch_forward.1} parent=11 // pred_region
          %s296 = ssub.s32 16, 16
          %297 = vsyncadd [#allocation6], %s296
          %s299 = sshll.u32 %s1, 4
          %s300 = int_to_ptr.vmem [resolvable:$true] %s299
          %302 = dma.vmem_to_smem %s300, 16, [#allocation7], [#allocation6]
        $region16: #{detailbranch_forward.1} parent=11 // pred_fallthru
          _
        // Predicated region
        $region17: #{detailbranch_forward.1} parent=11 // pred_check
          %p303 = pneg %p99
        $region18: #{detailbranch_forward.1} parent=11 // pred_check_branch
          %305 = sbr.rel (%p303) target = $region20
        $region19: #{detailbranch_forward.1} parent=11 // pred_region
          %s307 = ssub.s32 16, 16
          %308 = vsyncadd [#allocation9], %s307
          %s310 = sshll.u32 %s2, 4
          %s311 = int_to_ptr.vmem [resolvable:$true] %s310
          %313 = dma.vmem_to_smem %s311, 16, [#allocation8], [#allocation9]
        $region20: #{detailbranch_forward.1} parent=11 // pred_fallthru
          _
        // Predicated region
        $region21: #{detailbranch_forward.1} parent=11 // pred_check
          %p314 = pneg %p120
        $region22: #{detailbranch_forward.1} parent=11 // pred_check_branch
          %316 = sbr.rel (%p314) target = $region24
        $region23: #{detailbranch_forward.1} parent=11 // pred_region
          %s318 = ssub.s32 16, 16
          %319 = vsyncadd [#allocation9], %s318
          %s321 = sshll.u32 %s3, 4
          %s322 = int_to_ptr.vmem [resolvable:$true] %s321
          %324 = dma.vmem_to_smem %s322, 16, [#allocation10], [#allocation9]
        $region24: #{detailbranch_forward.1} parent=11 // pred_fallthru
          _
        // Predicated region
        $region25: #{detailbranch_forward.1} parent=11 // pred_check
          %p325 = pneg %p141
        $region26: #{detailbranch_forward.1} parent=11 // pred_check_branch
          %327 = sbr.rel (%p325) target = $region28
        $region27: #{detailbranch_forward.1} parent=11 // pred_region
          _
        $region28: #{detailbranch_forward.1} parent=11 // pred_fallthru
          _
        // Predicated region
        $region29: #{detailbranch_forward.1} parent=11 // pred_check
          %p328 = pneg %p162
        $region30: #{detailbranch_forward.1} parent=11 // pred_check_branch
          %330 = sbr.rel (%p328) target = $region32
        $region31: #{detailbranch_forward.1} parent=11 // pred_region
          %s332 = ssub.s32 16, 16
          %333 = vsyncadd [#allocation12], %s332
          %s335 = sshll.u32 %s5, 4
          %s336 = int_to_ptr.vmem [resolvable:$true] %s335
          %338 = dma.vmem_to_smem %s336, 16, [#allocation11], [#allocation12]
        $region32: #{detailbranch_forward.1} parent=11 // pred_fallthru
          _
        // Predicated region
        $region33: #{detailbranch_forward.1} parent=11 // pred_check
          %p339 = pneg %p183
        $region34: #{detailbranch_forward.1} parent=11 // pred_check_branch
          %341 = sbr.rel (%p339) target = $region36
        $region35: #{detailbranch_forward.1} parent=11 // pred_region
          %s343 = ssub.s32 16, 16
          %344 = vsyncadd [#allocation12], %s343
          %s346 = sshll.u32 %s6, 4
          %s347 = int_to_ptr.vmem [resolvable:$true] %s346
          %349 = dma.vmem_to_smem %s347, 16, [#allocation13], [#allocation12]
        $region36: #{detailbranch_forward.1} parent=11 // pred_fallthru
          _
        // Predicated region
        $region37: #{detailbranch_forward.1} parent=11 // pred_check
          %p350 = pneg %p204
        $region38: #{detailbranch_forward.1} parent=11 // pred_check_branch
          %352 = sbr.rel (%p350) target = $region40
        $region39: #{detailbranch_forward.1} parent=11 // pred_region
          %s354 = ssub.s32 16, 16
          %355 = vsyncadd [#allocation15], %s354
          %s357 = sshll.u32 %s7, 4
          %s358 = int_to_ptr.vmem [resolvable:$true] %s357
          %360 = dma.vmem_to_smem %s358, 16, [#allocation14], [#allocation15]
        $region40: #{detailbranch_forward.1} parent=11 // pred_fallthru
          _
        // Predicated region
        $region41: #{detailbranch_forward.1} parent=11 // pred_check
          %p361 = pneg %p225
        $region42: #{detailbranch_forward.1} parent=11 // pred_check_branch
          %363 = sbr.rel (%p361) target = $region44
        $region43: #{detailbranch_forward.1} parent=11 // pred_region
          %s365 = ssub.s32 16, 16
          %366 = vsyncadd [#allocation15], %s365
          %s368 = sshll.u32 %s8, 4
          %s369 = int_to_ptr.vmem [resolvable:$true] %s368
          %371 = dma.vmem_to_smem %s369, 16, [#allocation16], [#allocation15]
        $region44: #{detailbranch_forward.1} parent=11 // pred_fallthru
          _
      $region12: #{detailbranch_forward.1} parent=5 // pred_fallthru
        _
      %p372 = scmp.lt.s32.totalorder %s31, 2
      // Predicated region
      $region45: #{detailbranch_forward.1} parent=5 // pred_check
        %p373 = pneg %p372
      $region46: #{detailbranch_forward.1} parent=5 // pred_check_branch
        %375 = sbr.rel (%p373) target = $region48
      $region47: #{detailbranch_forward.1} parent=5 // pred_region
        // Predicated region
        $region49: #{detailbranch_forward.1} parent=47 // pred_check
          %p376 = pneg %p51
        $region50: #{detailbranch_forward.1} parent=47 // pred_check_branch
          %378 = sbr.rel (%p376) target = $region52
        $region51: #{detailbranch_forward.1} parent=47 // pred_region
          %s379 = sand.u32 %s41, 1
          %s380 = scalar_lea.sflag [#allocation4], %s379
          %s381 = sand.u32 %s41, 1
          %s382 = smul.addr %s381, 64
          %s383 = scalar_lea.vmem [#allocation3], %s382
          %s385 = ssub.s32 1024, 1024
          %386 = vsyncadd %s380, %s385
          %s387 = smul.addr %s31, 8
          %s388 = smul.addr %s387, 128
          %s389 = scalar_lea.hbm %s0, %s388
          %s390 = sshll.u32 %s383, 4
          %s391 = int_to_ptr.vmem [resolvable:$true] %s390
          %396 = dma.hbm_to_vmem [thread:$0]  %s389, 1024, %s391, %s380, 128, 128, 8
        $region52: #{detailbranch_forward.1} parent=47 // pred_fallthru
          _
      $region48: #{detailbranch_forward.1} parent=5 // pred_fallthru
        _
      %p397 = scmp.le.s32.totalorder 1, %s31
      %p398 = scmp.lt.s32.totalorder %s31, 3
      %p399 = pnand %p397, %p398
      %p400 = pneg %p399
      // Predicated region
      $region53: #{detailbranch_forward.1} parent=5 // pred_check
        _
      $region54: #{detailbranch_forward.1} parent=5 // pred_check_branch
        %402 = sbr.rel (%p399) target = $region56
      $region55: #{detailbranch_forward.1} parent=5 // pred_region
        %s403 = ssub.s32 %s31, 1
        %s404 = sand.u32 %s44, 1
        %s405 = scalar_lea.sflag [#allocation4], %s404
        %s406 = sand.u32 %s44, 1
        %s407 = smul.addr %s406, 64
        %s408 = scalar_lea.vmem [#allocation3], %s407
        // Predicated region
        $region57: #{detailbranch_forward.1} parent=55 // pred_check
          %p409 = pneg %p57
        $region58: #{detailbranch_forward.1} parent=55 // pred_check_branch
          %411 = sbr.rel (%p409) target = $region60
        $region59: #{detailbranch_forward.1} parent=55 // pred_region
          %412 = dma.done %s405, 1024
        $region60: #{detailbranch_forward.1} parent=55 // pred_fallthru
          _
        // Predicated region
        $region61: #{detailbranch_forward.1} parent=55 // pred_check
          %p413 = pneg %p78
        $region62: #{detailbranch_forward.1} parent=55 // pred_check_branch
          %415 = sbr.rel (%p413) target = $region64
        $region63: #{detailbranch_forward.1} parent=55 // pred_region
          %416 = dma.done [#allocation6], 16
        $region64: #{detailbranch_forward.1} parent=55 // pred_fallthru
          _
        // Predicated region
        $region65: #{detailbranch_forward.1} parent=55 // pred_check
          %p417 = pneg %p99
        $region66: #{detailbranch_forward.1} parent=55 // pred_check_branch
          %419 = sbr.rel (%p417) target = $region68
        $region67: #{detailbranch_forward.1} parent=55 // pred_region
          %420 = dma.done [#allocation9], 16
        $region68: #{detailbranch_forward.1} parent=55 // pred_fallthru
          _
        // Predicated region
        $region69: #{detailbranch_forward.1} parent=55 // pred_check
          %p421 = pneg %p120
        $region70: #{detailbranch_forward.1} parent=55 // pred_check_branch
          %423 = sbr.rel (%p421) target = $region72
        $region71: #{detailbranch_forward.1} parent=55 // pred_region
          %424 = dma.done [#allocation9], 16
        $region72: #{detailbranch_forward.1} parent=55 // pred_fallthru
          _
        // Predicated region
        $region73: #{detailbranch_forward.1} parent=55 // pred_check
          %p425 = pneg %p162
        $region74: #{detailbranch_forward.1} parent=55 // pred_check_branch
          %427 = sbr.rel (%p425) target = $region76
        $region75: #{detailbranch_forward.1} parent=55 // pred_region
          %428 = dma.done [#allocation12], 16
        $region76: #{detailbranch_forward.1} parent=55 // pred_fallthru
          _
        // Predicated region
        $region77: #{detailbranch_forward.1} parent=55 // pred_check
          %p429 = pneg %p183
        $region78: #{detailbranch_forward.1} parent=55 // pred_check_branch
          %431 = sbr.rel (%p429) target = $region80
        $region79: #{detailbranch_forward.1} parent=55 // pred_region
          %432 = dma.done [#allocation12], 16
        $region80: #{detailbranch_forward.1} parent=55 // pred_fallthru
          _
        // Predicated region
        $region81: #{detailbranch_forward.1} parent=55 // pred_check
          %p433 = pneg %p204
        $region82: #{detailbranch_forward.1} parent=55 // pred_check_branch
          %435 = sbr.rel (%p433) target = $region84
        $region83: #{detailbranch_forward.1} parent=55 // pred_region
          %436 = dma.done [#allocation15], 16
        $region84: #{detailbranch_forward.1} parent=55 // pred_fallthru
          _
        // Predicated region
        $region85: #{detailbranch_forward.1} parent=55 // pred_check
          %p437 = pneg %p225
        $region86: #{detailbranch_forward.1} parent=55 // pred_check_branch
          %439 = sbr.rel (%p437) target = $region88
        $region87: #{detailbranch_forward.1} parent=55 // pred_region
          %440 = dma.done [#allocation15], 16
        $region88: #{detailbranch_forward.1} parent=55 // pred_fallthru
          _
        %441 = sfence
        %s442 = sand.u32 %s44, 1
        %s443 = scalar_lea.sflag [#allocation4], %s442
        %s444 = sand.u32 %s44, 1
        %s445 = smul.addr %s444, 64
        %s446 = scalar_lea.vmem [#allocation3], %s445
        %p447 = pneg %p57
        %p448 = pneg %p54
        %p449 = pneg %p78
        %p450 = pneg %p75
        %p451 = pneg %p99
        %p452 = pneg %p96
        %p453 = pneg %p120
        %p454 = pneg %p117
        %p455 = pneg %p141
        %p456 = pneg %p138
        %p457 = pneg %p162
        %p458 = pneg %p159
        %p459 = pneg %p183
        %p460 = pneg %p180
        %p461 = pneg %p204
        %p462 = pneg %p201
        %p463 = pneg %p225
        %p464 = pneg %p222
        %p465 = pneg %p251
        %p466 = pneg %p248
        %s467 = sand.u32 %s238, 1
        %s468 = scalar_lea.sflag [#allocation5], %s467
        %s469 = sand.u32 %s238, 1
        %s470 = smul.addr %s469, 64
        %s471 = scalar_lea.vmem [#allocation17], %s470
        %p472 = pneg %p277
        %p473 = pneg %p274
        %s474 = sand.u32 %s264, 1
        %s475 = scalar_lea.sflag [#allocation19], %s474
        %s476 = sand.u32 %s264, 1
        %s477 = smul.addr %s476, 16
        %s478 = scalar_lea.vmem [#allocation18], %s477
        %v479 = vlaneseq
        %v480 = vshrl.u32 %v479, 7
        %v481 = vadd.s32 %v480, 8
        %v482 = vlaneseq
        %v483 = vand.u32 %v482, 127
        %vm484 = vcmp.ge.s32.totalorder %v480, 1
        %vm485 = vcmp.ge.s32.totalorder %v481, 1
        %vm486 = vcmp.lt.s32.totalorder %v480, 15
        %vm487 = vcmp.lt.s32.totalorder %v481, 15
        %vm488 = vcmp.ge.s32.totalorder %v483, 1
        %vm489 = vcmp.lt.s32.totalorder %v483, 127
        %v490 = vld [vmem:[%s408] sm:$0xff]
        %v491 = vld [vmem:[%s408 + $0x8] sm:$0xff]
        %s492 = scalar_lea.vmem %s408, 16 [#allocation3]
        %v493 = vld [vmem:[%s492] sm:$0xff]
        %v494 = vld [vmem:[%s492 + $0x8] sm:$0xff]
        %s495 = scalar_lea.vmem %s408, 32 [#allocation3]
        %v496 = vld [vmem:[%s495] sm:$0xff]
        %v497 = vld [vmem:[%s495 + $0x8] sm:$0xff]
        %s498 = scalar_lea.vmem %s408, 48 [#allocation3]
        %v499 = vld [vmem:[%s498] sm:$0xff]
        %v500 = vld [vmem:[%s498 + $0x8] sm:$0xff]
        %s501 = sld [smem:[#allocation7]]
        %s502 = sld [smem:[#allocation7 + $0x1]]
        %s503 = sld [smem:[#allocation7 + $0x2]]
        %s504 = sld [smem:[#allocation7 + $0x3]]
        %s505 = sld [smem:[#allocation7 + $0x4]]
        %s506 = sld [smem:[#allocation7 + $0x5]]
        %s507 = sld [smem:[#allocation7 + $0x6]]
        %s508 = sld [smem:[#allocation7 + $0x7]]
        %s509 = sld [smem:[#allocation7 + $0x8]]
        %s510 = sld [smem:[#allocation7 + $0x9]]
        %s511 = sld [smem:[#allocation7 + $0xa]]
        %s512 = sld [smem:[#allocation7 + $0xb]]
        %s513 = sld [smem:[#allocation7 + $0xc]]
        %s514 = sld [smem:[#allocation7 + $0xd]]
        %s515 = sld [smem:[#allocation7 + $0xe]]
        %s516 = sld [smem:[#allocation7 + $0xf]]
        %s517 = sld [smem:[#allocation7 + $0x10]]
        %s518 = sld [smem:[#allocation7 + $0x11]]
        %s519 = sld [smem:[#allocation7 + $0x12]]
        %s520 = sld [smem:[#allocation7 + $0x13]]
        %s521 = sld [smem:[#allocation7 + $0x14]]
        %s522 = sld [smem:[#allocation7 + $0x15]]
        %s523 = sld [smem:[#allocation7 + $0x16]]
        %s524 = sld [smem:[#allocation7 + $0x17]]
        %s525 = sld [smem:[#allocation7 + $0x18]]
        %s526 = sld [smem:[#allocation7 + $0x19]]
        %s527 = sld [smem:[#allocation7 + $0x1a]]
        %s528 = sld [smem:[#allocation7 + $0x1b]]
        %s529 = sld [smem:[#allocation7 + $0x1c]]
        %s530 = sld [smem:[#allocation7 + $0x1d]]
        %s531 = sld [smem:[#allocation7 + $0x1e]]
        %s532 = sld [smem:[#allocation7 + $0x1f]]
        %s533 = sld [smem:[#allocation7 + $0x20]]
        %s534 = sld [smem:[#allocation7 + $0x21]]
        %s535 = sld [smem:[#allocation7 + $0x22]]
        %s536 = sld [smem:[#allocation7 + $0x23]]
        %s537 = sld [smem:[#allocation7 + $0x24]]
        %s538 = sld [smem:[#allocation7 + $0x25]]
        %s539 = sld [smem:[#allocation7 + $0x26]]
        %s540 = sld [smem:[#allocation7 + $0x27]]
        %s541 = sld [smem:[#allocation7 + $0x28]]
        %s542 = sld [smem:[#allocation7 + $0x29]]
        %s543 = sld [smem:[#allocation7 + $0x2a]]
        %s544 = sld [smem:[#allocation7 + $0x2b]]
        %s545 = sld [smem:[#allocation7 + $0x2c]]
        %s546 = sld [smem:[#allocation7 + $0x2d]]
        %s547 = sld [smem:[#allocation7 + $0x2e]]
        %s548 = sld [smem:[#allocation7 + $0x2f]]
        %s549 = sld [smem:[#allocation7 + $0x30]]
        %s550 = sld [smem:[#allocation7 + $0x31]]
        %s551 = sld [smem:[#allocation7 + $0x32]]
        %s552 = sld [smem:[#allocation7 + $0x33]]
        %s553 = sld [smem:[#allocation7 + $0x34]]
        %s554 = sld [smem:[#allocation7 + $0x35]]
        %s555 = sld [smem:[#allocation7 + $0x36]]
        %s556 = sld [smem:[#allocation7 + $0x37]]
        %s557 = sld [smem:[#allocation7 + $0x38]]
        %s558 = sld [smem:[#allocation7 + $0x39]]
        %s559 = sld [smem:[#allocation7 + $0x3a]]
        %s560 = sld [smem:[#allocation7 + $0x3b]]
        %s561 = sld [smem:[#allocation7 + $0x3c]]
        %s562 = sld [smem:[#allocation7 + $0x3d]]
        %s563 = sld [smem:[#allocation7 + $0x3e]]
        %s564 = sld [smem:[#allocation7 + $0x3f]]
        %s565 = sld [smem:[#allocation7 + $0x40]]
        %s566 = sld [smem:[#allocation7 + $0x41]]
        %s567 = sld [smem:[#allocation7 + $0x42]]
        %s568 = sld [smem:[#allocation7 + $0x43]]
        %s569 = sld [smem:[#allocation7 + $0x44]]
        %s570 = sld [smem:[#allocation7 + $0x45]]
        %s571 = sld [smem:[#allocation7 + $0x46]]
        %s572 = sld [smem:[#allocation7 + $0x47]]
        %s573 = sld [smem:[#allocation8]]
        %s574 = sld [smem:[#allocation8 + $0x1]]
        %575 = vrot.lane.b32.xlu0 %v490, 1
        %v576 = vpop.permute.xlu0 %575
        %577 = vrot.lane.b32.xlu0 %v491, 1
        %v578 = vpop.permute.xlu0 %577
        %v579 = vsel %vm488, %v576, 0.0
        %v580 = vsel %vm488, %v578, 0.0
        %581 = vrot.lane.b32.xlu0 %v493, 1
        %v582 = vpop.permute.xlu0 %581
        %583 = vrot.lane.b32.xlu0 %v494, 1
        %v584 = vpop.permute.xlu0 %583
        %v585 = vsel %vm488, %v582, 0.0
        %v586 = vsel %vm488, %v584, 0.0
        %587 = vrot.lane.b32.xlu0 %v496, 1
        %v588 = vpop.permute.xlu0 %587
        %589 = vrot.lane.b32.xlu0 %v497, 1
        %v590 = vpop.permute.xlu0 %589
        %v591 = vsel %vm488, %v588, 0.0
        %v592 = vsel %vm488, %v590, 0.0
        %593 = vrot.lane.b32.xlu0 %v499, 1
        %v594 = vpop.permute.xlu0 %593
        %595 = vrot.lane.b32.xlu0 %v500, 1
        %v596 = vpop.permute.xlu0 %595
        %v597 = vsel %vm488, %v594, 0.0
        %v598 = vsel %vm488, %v596, 0.0
        %599 = vrot.lane.b32.xlu0 %v490, 127
        %v600 = vpop.permute.xlu0 %599
        %601 = vrot.lane.b32.xlu0 %v491, 127
        %v602 = vpop.permute.xlu0 %601
        %v603 = vsel %vm489, %v600, 0.0
        %v604 = vsel %vm489, %v602, 0.0
        %605 = vrot.lane.b32.xlu0 %v493, 127
        %v606 = vpop.permute.xlu0 %605
        %607 = vrot.lane.b32.xlu0 %v494, 127
        %v608 = vpop.permute.xlu0 %607
        %v609 = vsel %vm489, %v606, 0.0
        %v610 = vsel %vm489, %v608, 0.0
        %611 = vrot.lane.b32.xlu0 %v496, 127
        %v612 = vpop.permute.xlu0 %611
        %613 = vrot.lane.b32.xlu0 %v497, 127
        %v614 = vpop.permute.xlu0 %613
        %v615 = vsel %vm489, %v612, 0.0
        %v616 = vsel %vm489, %v614, 0.0
        %617 = vrot.lane.b32.xlu0 %v499, 127
        %v618 = vpop.permute.xlu0 %617
        %619 = vrot.lane.b32.xlu0 %v500, 127
        %v620 = vpop.permute.xlu0 %619
        %v621 = vsel %vm489, %v618, 0.0
        %v622 = vsel %vm489, %v620, 0.0
        %v623 = vstv %s573
        %v624 = vstv %s574
        %v625 = vstv %s501
        %v626 = vmul.f32 %v625, %v579
        %v627 = vmul.f32 %v625, %v580
        %v628 = vstv %s503
        %v629 = vmul.f32 %v628, %v585
        %v630 = vmul.f32 %v628, %v586
        %v631 = vadd.f32 %v626, %v629
        %v632 = vadd.f32 %v627, %v630
        %v633 = vstv %s505
        %v634 = vmul.f32 %v633, %v591
        %v635 = vmul.f32 %v633, %v592
        %v636 = vadd.f32 %v631, %v634
        %v637 = vadd.f32 %v632, %v635
        %v638 = vstv %s507
        %v639 = vmul.f32 %v638, %v597
        %v640 = vmul.f32 %v638, %v598
        %v641 = vadd.f32 %v636, %v639
        %v642 = vadd.f32 %v637, %v640
        %v643 = vstv %s509
        %v644 = vmul.f32 %v643, %v490
        %v645 = vmul.f32 %v643, %v491
        %v646 = vadd.f32 %v641, %v644
        %v647 = vadd.f32 %v642, %v645
        %v648 = vstv %s511
        %v649 = vmul.f32 %v648, %v493
        %v650 = vmul.f32 %v648, %v494
        %v651 = vadd.f32 %v646, %v649
        %v652 = vadd.f32 %v647, %v650
        %v653 = vstv %s513
        %v654 = vmul.f32 %v653, %v496
        %v655 = vmul.f32 %v653, %v497
        %v656 = vadd.f32 %v651, %v654
        %v657 = vadd.f32 %v652, %v655
        %v658 = vstv %s515
        %v659 = vmul.f32 %v658, %v499
        %v660 = vmul.f32 %v658, %v500
        %v661 = vadd.f32 %v656, %v659
        %v662 = vadd.f32 %v657, %v660
        %v663 = vstv %s517
        %v664 = vmul.f32 %v663, %v603
        %v665 = vmul.f32 %v663, %v604
        %v666 = vadd.f32 %v661, %v664
        %v667 = vadd.f32 %v662, %v665
        %v668 = vstv %s519
        %v669 = vmul.f32 %v668, %v609
        %v670 = vmul.f32 %v668, %v610
        %v671 = vadd.f32 %v666, %v669
        %v672 = vadd.f32 %v667, %v670
        %v673 = vstv %s521
        %v674 = vmul.f32 %v673, %v615
        %v675 = vmul.f32 %v673, %v616
        %v676 = vadd.f32 %v671, %v674
        %v677 = vadd.f32 %v672, %v675
        %v678 = vstv %s523
        %v679 = vmul.f32 %v678, %v621
        %v680 = vmul.f32 %v678, %v622
        %v681 = vadd.f32 %v676, %v679
        %v682 = vadd.f32 %v677, %v680
        %v683 = vrot.slane %v681, 7
        %v684 = vrot.slane %v682, 7
        %vm685 = vcmp.lt.s32.totalorder %v480, 1
        %v686 = vsel %vm685, %v683, %v684
        %v687 = vsel %vm685, %v684, %v683
        %v688 = vsel %vm484, %v687, 0.0
        %v689 = vsel %vm485, %v686, 0.0
        %v690 = vadd.f32 %v623, %v688
        %v691 = vadd.f32 %v623, %v689
        %v692 = vstv %s502
        %v693 = vmul.f32 %v692, %v579
        %v694 = vmul.f32 %v692, %v580
        %v695 = vstv %s504
        %v696 = vmul.f32 %v695, %v585
        %v697 = vmul.f32 %v695, %v586
        %v698 = vadd.f32 %v693, %v696
        %v699 = vadd.f32 %v694, %v697
        %v700 = vstv %s506
        %v701 = vmul.f32 %v700, %v591
        %v702 = vmul.f32 %v700, %v592
        %v703 = vadd.f32 %v698, %v701
        %v704 = vadd.f32 %v699, %v702
        %v705 = vstv %s508
        %v706 = vmul.f32 %v705, %v597
        %v707 = vmul.f32 %v705, %v598
        %v708 = vadd.f32 %v703, %v706
        %v709 = vadd.f32 %v704, %v707
        %v710 = vstv %s510
        %v711 = vmul.f32 %v710, %v490
        %v712 = vmul.f32 %v710, %v491
        %v713 = vadd.f32 %v708, %v711
        %v714 = vadd.f32 %v709, %v712
        %v715 = vstv %s512
        %v716 = vmul.f32 %v715, %v493
        %v717 = vmul.f32 %v715, %v494
        %v718 = vadd.f32 %v713, %v716
        %v719 = vadd.f32 %v714, %v717
        %v720 = vstv %s514
        %v721 = vmul.f32 %v720, %v496
        %v722 = vmul.f32 %v720, %v497
        %v723 = vadd.f32 %v718, %v721
        %v724 = vadd.f32 %v719, %v722
        %v725 = vstv %s516
        %v726 = vmul.f32 %v725, %v499
        %v727 = vmul.f32 %v725, %v500
        %v728 = vadd.f32 %v723, %v726
        %v729 = vadd.f32 %v724, %v727
        %v730 = vstv %s518
        %v731 = vmul.f32 %v730, %v603
        %v732 = vmul.f32 %v730, %v604
        %v733 = vadd.f32 %v728, %v731
        %v734 = vadd.f32 %v729, %v732
        %v735 = vstv %s520
        %v736 = vmul.f32 %v735, %v609
        %v737 = vmul.f32 %v735, %v610
        %v738 = vadd.f32 %v733, %v736
        %v739 = vadd.f32 %v734, %v737
        %v740 = vstv %s522
        %v741 = vmul.f32 %v740, %v615
        %v742 = vmul.f32 %v740, %v616
        %v743 = vadd.f32 %v738, %v741
        %v744 = vadd.f32 %v739, %v742
        %v745 = vstv %s524
        %v746 = vmul.f32 %v745, %v621
        %v747 = vmul.f32 %v745, %v622
        %v748 = vadd.f32 %v743, %v746
        %v749 = vadd.f32 %v744, %v747
        %v750 = vrot.slane %v748, 7
        %v751 = vrot.slane %v749, 7
        %v752 = vsel %vm685, %v750, %v751
        %v753 = vsel %vm685, %v751, %v750
        %v754 = vsel %vm484, %v753, 0.0
        %v755 = vsel %vm485, %v752, 0.0
        %v756 = vadd.f32 %v624, %v754
        %v757 = vadd.f32 %v624, %v755
        %v758 = vstv %s525
        %v759 = vmul.f32 %v758, %v579
        %v760 = vmul.f32 %v758, %v580
        %v761 = vstv %s527
        %v762 = vmul.f32 %v761, %v585
        %v763 = vmul.f32 %v761, %v586
        %v764 = vadd.f32 %v759, %v762
        %v765 = vadd.f32 %v760, %v763
        %v766 = vstv %s529
        %v767 = vmul.f32 %v766, %v591
        %v768 = vmul.f32 %v766, %v592
        %v769 = vadd.f32 %v764, %v767
        %v770 = vadd.f32 %v765, %v768
        %v771 = vstv %s531
        %v772 = vmul.f32 %v771, %v597
        %v773 = vmul.f32 %v771, %v598
        %v774 = vadd.f32 %v769, %v772
        %v775 = vadd.f32 %v770, %v773
        %v776 = vstv %s533
        %v777 = vmul.f32 %v776, %v490
        %v778 = vmul.f32 %v776, %v491
        %v779 = vadd.f32 %v774, %v777
        %v780 = vadd.f32 %v775, %v778
        %v781 = vstv %s535
        %v782 = vmul.f32 %v781, %v493
        %v783 = vmul.f32 %v781, %v494
        %v784 = vadd.f32 %v779, %v782
        %v785 = vadd.f32 %v780, %v783
        %v786 = vstv %s537
        %v787 = vmul.f32 %v786, %v496
        %v788 = vmul.f32 %v786, %v497
        %v789 = vadd.f32 %v784, %v787
        %v790 = vadd.f32 %v785, %v788
        %v791 = vstv %s539
        %v792 = vmul.f32 %v791, %v499
        %v793 = vmul.f32 %v791, %v500
        %v794 = vadd.f32 %v789, %v792
        %v795 = vadd.f32 %v790, %v793
        %v796 = vstv %s541
        %v797 = vmul.f32 %v796, %v603
        %v798 = vmul.f32 %v796, %v604
        %v799 = vadd.f32 %v794, %v797
        %v800 = vadd.f32 %v795, %v798
        %v801 = vstv %s543
        %v802 = vmul.f32 %v801, %v609
        %v803 = vmul.f32 %v801, %v610
        %v804 = vadd.f32 %v799, %v802
        %v805 = vadd.f32 %v800, %v803
        %v806 = vstv %s545
        %v807 = vmul.f32 %v806, %v615
        %v808 = vmul.f32 %v806, %v616
        %v809 = vadd.f32 %v804, %v807
        %v810 = vadd.f32 %v805, %v808
        %v811 = vstv %s547
        %v812 = vmul.f32 %v811, %v621
        %v813 = vmul.f32 %v811, %v622
        %v814 = vadd.f32 %v809, %v812
        %v815 = vadd.f32 %v810, %v813
        %v816 = vadd.f32 %v690, %v814
        %v817 = vadd.f32 %v691, %v815
        %v818 = vstv %s526
        %v819 = vmul.f32 %v818, %v579
        %v820 = vmul.f32 %v818, %v580
        %v821 = vstv %s528
        %v822 = vmul.f32 %v821, %v585
        %v823 = vmul.f32 %v821, %v586
        %v824 = vadd.f32 %v819, %v822
        %v825 = vadd.f32 %v820, %v823
        %v826 = vstv %s530
        %v827 = vmul.f32 %v826, %v591
        %v828 = vmul.f32 %v826, %v592
        %v829 = vadd.f32 %v824, %v827
        %v830 = vadd.f32 %v825, %v828
        %v831 = vstv %s532
        %v832 = vmul.f32 %v831, %v597
        %v833 = vmul.f32 %v831, %v598
        %v834 = vadd.f32 %v829, %v832
        %v835 = vadd.f32 %v830, %v833
        %v836 = vstv %s534
        %v837 = vmul.f32 %v836, %v490
        %v838 = vmul.f32 %v836, %v491
        %v839 = vadd.f32 %v834, %v837
        %v840 = vadd.f32 %v835, %v838
        %v841 = vstv %s536
        %v842 = vmul.f32 %v841, %v493
        %v843 = vmul.f32 %v841, %v494
        %v844 = vadd.f32 %v839, %v842
        %v845 = vadd.f32 %v840, %v843
        %v846 = vstv %s538
        %v847 = vmul.f32 %v846, %v496
        %v848 = vmul.f32 %v846, %v497
        %v849 = vadd.f32 %v844, %v847
        %v850 = vadd.f32 %v845, %v848
        %v851 = vstv %s540
        %v852 = vmul.f32 %v851, %v499
        %v853 = vmul.f32 %v851, %v500
        %v854 = vadd.f32 %v849, %v852
        %v855 = vadd.f32 %v850, %v853
        %v856 = vstv %s542
        %v857 = vmul.f32 %v856, %v603
        %v858 = vmul.f32 %v856, %v604
        %v859 = vadd.f32 %v854, %v857
        %v860 = vadd.f32 %v855, %v858
        %v861 = vstv %s544
        %v862 = vmul.f32 %v861, %v609
        %v863 = vmul.f32 %v861, %v610
        %v864 = vadd.f32 %v859, %v862
        %v865 = vadd.f32 %v860, %v863
        %v866 = vstv %s546
        %v867 = vmul.f32 %v866, %v615
        %v868 = vmul.f32 %v866, %v616
        %v869 = vadd.f32 %v864, %v867
        %v870 = vadd.f32 %v865, %v868
        %v871 = vstv %s548
        %v872 = vmul.f32 %v871, %v621
        %v873 = vmul.f32 %v871, %v622
        %v874 = vadd.f32 %v869, %v872
        %v875 = vadd.f32 %v870, %v873
        %v876 = vadd.f32 %v756, %v874
        %v877 = vadd.f32 %v757, %v875
        %v878 = vstv %s549
        %v879 = vmul.f32 %v878, %v579
        %v880 = vmul.f32 %v878, %v580
        %v881 = vstv %s551
        %v882 = vmul.f32 %v881, %v585
        %v883 = vmul.f32 %v881, %v586
        %v884 = vadd.f32 %v879, %v882
        %v885 = vadd.f32 %v880, %v883
        %v886 = vstv %s553
        %v887 = vmul.f32 %v886, %v591
        %v888 = vmul.f32 %v886, %v592
        %v889 = vadd.f32 %v884, %v887
        %v890 = vadd.f32 %v885, %v888
        %v891 = vstv %s555
        %v892 = vmul.f32 %v891, %v597
        %v893 = vmul.f32 %v891, %v598
        %v894 = vadd.f32 %v889, %v892
        %v895 = vadd.f32 %v890, %v893
        %v896 = vstv %s557
        %v897 = vmul.f32 %v896, %v490
        %v898 = vmul.f32 %v896, %v491
        %v899 = vadd.f32 %v894, %v897
        %v900 = vadd.f32 %v895, %v898
        %v901 = vstv %s559
        %v902 = vmul.f32 %v901, %v493
        %v903 = vmul.f32 %v901, %v494
        %v904 = vadd.f32 %v899, %v902
        %v905 = vadd.f32 %v900, %v903
        %v906 = vstv %s561
        %v907 = vmul.f32 %v906, %v496
        %v908 = vmul.f32 %v906, %v497
        %v909 = vadd.f32 %v904, %v907
        %v910 = vadd.f32 %v905, %v908
        %v911 = vstv %s563
        %v912 = vmul.f32 %v911, %v499
        %v913 = vmul.f32 %v911, %v500
        %v914 = vadd.f32 %v909, %v912
        %v915 = vadd.f32 %v910, %v913
        %v916 = vstv %s565
        %v917 = vmul.f32 %v916, %v603
        %v918 = vmul.f32 %v916, %v604
        %v919 = vadd.f32 %v914, %v917
        %v920 = vadd.f32 %v915, %v918
        %v921 = vstv %s567
        %v922 = vmul.f32 %v921, %v609
        %v923 = vmul.f32 %v921, %v610
        %v924 = vadd.f32 %v919, %v922
        %v925 = vadd.f32 %v920, %v923
        %v926 = vstv %s569
        %v927 = vmul.f32 %v926, %v615
        %v928 = vmul.f32 %v926, %v616
        %v929 = vadd.f32 %v924, %v927
        %v930 = vadd.f32 %v925, %v928
        %v931 = vstv %s571
        %v932 = vmul.f32 %v931, %v621
        %v933 = vmul.f32 %v931, %v622
        %v934 = vadd.f32 %v929, %v932
        %v935 = vadd.f32 %v930, %v933
        %v936 = vrot.slane %v934, 1
        %v937 = vrot.slane %v935, 1
        %vm938 = vcmp.lt.s32.totalorder %v480, 7
        %v939 = vsel %vm938, %v936, %v937
        %v940 = vsel %vm938, %v937, %v936
        %v941 = vsel %vm486, %v939, 0.0
        %v942 = vsel %vm487, %v940, 0.0
        %v943 = vadd.f32 %v816, %v941
        %v944 = vadd.f32 %v817, %v942
        %v945 = vstv %s550
        %v946 = vmul.f32 %v945, %v579
        %v947 = vmul.f32 %v945, %v580
        %v948 = vstv %s552
        %v949 = vmul.f32 %v948, %v585
        %v950 = vmul.f32 %v948, %v586
        %v951 = vadd.f32 %v946, %v949
        %v952 = vadd.f32 %v947, %v950
        %v953 = vstv %s554
        %v954 = vmul.f32 %v953, %v591
        %v955 = vmul.f32 %v953, %v592
        %v956 = vadd.f32 %v951, %v954
        %v957 = vadd.f32 %v952, %v955
        %v958 = vstv %s556
        %v959 = vmul.f32 %v958, %v597
        %v960 = vmul.f32 %v958, %v598
        %v961 = vadd.f32 %v956, %v959
        %v962 = vadd.f32 %v957, %v960
        %v963 = vstv %s558
        %v964 = vmul.f32 %v963, %v490
        %v965 = vmul.f32 %v963, %v491
        %v966 = vadd.f32 %v961, %v964
        %v967 = vadd.f32 %v962, %v965
        %v968 = vstv %s560
        %v969 = vmul.f32 %v968, %v493
        %v970 = vmul.f32 %v968, %v494
        %v971 = vadd.f32 %v966, %v969
        %v972 = vadd.f32 %v967, %v970
        %v973 = vstv %s562
        %v974 = vmul.f32 %v973, %v496
        %v975 = vmul.f32 %v973, %v497
        %v976 = vadd.f32 %v971, %v974
        %v977 = vadd.f32 %v972, %v975
        %v978 = vstv %s564
        %v979 = vmul.f32 %v978, %v499
        %v980 = vmul.f32 %v978, %v500
        %v981 = vadd.f32 %v976, %v979
        %v982 = vadd.f32 %v977, %v980
        %v983 = vstv %s566
        %v984 = vmul.f32 %v983, %v603
        %v985 = vmul.f32 %v983, %v604
        %v986 = vadd.f32 %v981, %v984
        %v987 = vadd.f32 %v982, %v985
        %v988 = vstv %s568
        %v989 = vmul.f32 %v988, %v609
        %v990 = vmul.f32 %v988, %v610
        %v991 = vadd.f32 %v986, %v989
        %v992 = vadd.f32 %v987, %v990
        %v993 = vstv %s570
        %v994 = vmul.f32 %v993, %v615
        %v995 = vmul.f32 %v993, %v616
        %v996 = vadd.f32 %v991, %v994
        %v997 = vadd.f32 %v992, %v995
        %v998 = vstv %s572
        %v999 = vmul.f32 %v998, %v621
        %v1000 = vmul.f32 %v998, %v622
        %v1001 = vadd.f32 %v996, %v999
        %v1002 = vadd.f32 %v997, %v1000
        %v1003 = vrot.slane %v1001, 1
        %v1004 = vrot.slane %v1002, 1
        %v1005 = vsel %vm938, %v1003, %v1004
        %v1006 = vsel %vm938, %v1004, %v1003
        %v1007 = vsel %vm486, %v1005, 0.0
        %v1008 = vsel %vm487, %v1006, 0.0
        %v1009 = vadd.f32 %v876, %v1007
        %v1010 = vadd.f32 %v877, %v1008
        %v1011 = vmax.f32 %v943, 0.0
        %v1012 = vmax.f32 %v944, 0.0
        %v1013 = vmax.f32 %v1009, 0.0
        %v1014 = vmax.f32 %v1010, 0.0
        %s1015 = sld [smem:[#allocation10]]
        %s1016 = sld [smem:[#allocation10 + $0x1]]
        %s1017 = sld [smem:[#allocation10 + $0x2]]
        %s1018 = sld [smem:[#allocation10 + $0x3]]
        %s1019 = sld [smem:[#allocation10 + $0x4]]
        %s1020 = sld [smem:[#allocation10 + $0x5]]
        %s1021 = sld [smem:[#allocation10 + $0x6]]
        %s1022 = sld [smem:[#allocation10 + $0x7]]
        %s1023 = sld [smem:[#allocation10 + $0x8]]
        %s1024 = sld [smem:[#allocation10 + $0x9]]
        %s1025 = sld [smem:[#allocation10 + $0xa]]
        %s1026 = sld [smem:[#allocation10 + $0xb]]
        %s1027 = sld [smem:[#allocation10 + $0xc]]
        %s1028 = sld [smem:[#allocation10 + $0xd]]
        %s1029 = sld [smem:[#allocation10 + $0xe]]
        %s1030 = sld [smem:[#allocation10 + $0xf]]
        %s1031 = sld [smem:[#allocation10 + $0x10]]
        %s1032 = sld [smem:[#allocation10 + $0x11]]
        %s1033 = sld [smem:[#allocation2]]
        %1034 = vrot.lane.b32.xlu0 %v1011, 1
        %v1035 = vpop.permute.xlu0 %1034
        %1036 = vrot.lane.b32.xlu0 %v1012, 1
        %v1037 = vpop.permute.xlu0 %1036
        %v1038 = vsel %vm488, %v1035, 0.0
        %v1039 = vsel %vm488, %v1037, 0.0
        %1040 = vrot.lane.b32.xlu0 %v1013, 1
        %v1041 = vpop.permute.xlu0 %1040
        %1042 = vrot.lane.b32.xlu0 %v1014, 1
        %v1043 = vpop.permute.xlu0 %1042
        %v1044 = vsel %vm488, %v1041, 0.0
        %v1045 = vsel %vm488, %v1043, 0.0
        %1046 = vrot.lane.b32.xlu0 %v1011, 127
        %v1047 = vpop.permute.xlu0 %1046
        %1048 = vrot.lane.b32.xlu0 %v1012, 127
        %v1049 = vpop.permute.xlu0 %1048
        %v1050 = vsel %vm489, %v1047, 0.0
        %v1051 = vsel %vm489, %v1049, 0.0
        %1052 = vrot.lane.b32.xlu0 %v1013, 127
        %v1053 = vpop.permute.xlu0 %1052
        %1054 = vrot.lane.b32.xlu0 %v1014, 127
        %v1055 = vpop.permute.xlu0 %1054
        %v1056 = vsel %vm489, %v1053, 0.0
        %v1057 = vsel %vm489, %v1055, 0.0
        %v1058 = vstv %s1033
        %v1059 = vstv %s1015
        %v1060 = vmul.f32 %v1059, %v1038
        %v1061 = vmul.f32 %v1059, %v1039
        %v1062 = vstv %s1016
        %v1063 = vmul.f32 %v1062, %v1044
        %v1064 = vmul.f32 %v1062, %v1045
        %v1065 = vadd.f32 %v1060, %v1063
        %v1066 = vadd.f32 %v1061, %v1064
        %v1067 = vstv %s1017
        %v1068 = vmul.f32 %v1067, %v1011
        %v1069 = vmul.f32 %v1067, %v1012
        %v1070 = vadd.f32 %v1065, %v1068
        %v1071 = vadd.f32 %v1066, %v1069
        %v1072 = vstv %s1018
        %v1073 = vmul.f32 %v1072, %v1013
        %v1074 = vmul.f32 %v1072, %v1014
        %v1075 = vadd.f32 %v1070, %v1073
        %v1076 = vadd.f32 %v1071, %v1074
        %v1077 = vstv %s1019
        %v1078 = vmul.f32 %v1077, %v1050
        %v1079 = vmul.f32 %v1077, %v1051
        %v1080 = vadd.f32 %v1075, %v1078
        %v1081 = vadd.f32 %v1076, %v1079
        %v1082 = vstv %s1020
        %v1083 = vmul.f32 %v1082, %v1056
        %v1084 = vmul.f32 %v1082, %v1057
        %v1085 = vadd.f32 %v1080, %v1083
        %v1086 = vadd.f32 %v1081, %v1084
        %v1087 = vrot.slane %v1085, 7
        %v1088 = vrot.slane %v1086, 7
        %v1089 = vsel %vm685, %v1087, %v1088
        %v1090 = vsel %vm685, %v1088, %v1087
        %v1091 = vsel %vm484, %v1090, 0.0
        %v1092 = vsel %vm485, %v1089, 0.0
        %v1093 = vadd.f32 %v1058, %v1091
        %v1094 = vadd.f32 %v1058, %v1092
        %v1095 = vstv %s1021
        %v1096 = vmul.f32 %v1095, %v1038
        %v1097 = vmul.f32 %v1095, %v1039
        %v1098 = vstv %s1022
        %v1099 = vmul.f32 %v1098, %v1044
        %v1100 = vmul.f32 %v1098, %v1045
        %v1101 = vadd.f32 %v1096, %v1099
        %v1102 = vadd.f32 %v1097, %v1100
        %v1103 = vstv %s1023
        %v1104 = vmul.f32 %v1103, %v1011
        %v1105 = vmul.f32 %v1103, %v1012
        %v1106 = vadd.f32 %v1101, %v1104
        %v1107 = vadd.f32 %v1102, %v1105
        %v1108 = vstv %s1024
        %v1109 = vmul.f32 %v1108, %v1013
        %v1110 = vmul.f32 %v1108, %v1014
        %v1111 = vadd.f32 %v1106, %v1109
        %v1112 = vadd.f32 %v1107, %v1110
        %v1113 = vstv %s1025
        %v1114 = vmul.f32 %v1113, %v1050
        %v1115 = vmul.f32 %v1113, %v1051
        %v1116 = vadd.f32 %v1111, %v1114
        %v1117 = vadd.f32 %v1112, %v1115
        %v1118 = vstv %s1026
        %v1119 = vmul.f32 %v1118, %v1056
        %v1120 = vmul.f32 %v1118, %v1057
        %v1121 = vadd.f32 %v1116, %v1119
        %v1122 = vadd.f32 %v1117, %v1120
        %v1123 = vadd.f32 %v1093, %v1121
        %v1124 = vadd.f32 %v1094, %v1122
        %v1125 = vstv %s1027
        %v1126 = vmul.f32 %v1125, %v1038
        %v1127 = vmul.f32 %v1125, %v1039
        %v1128 = vstv %s1028
        %v1129 = vmul.f32 %v1128, %v1044
        %v1130 = vmul.f32 %v1128, %v1045
        %v1131 = vadd.f32 %v1126, %v1129
        %v1132 = vadd.f32 %v1127, %v1130
        %v1133 = vstv %s1029
        %v1134 = vmul.f32 %v1133, %v1011
        %v1135 = vmul.f32 %v1133, %v1012
        %v1136 = vadd.f32 %v1131, %v1134
        %v1137 = vadd.f32 %v1132, %v1135
        %v1138 = vstv %s1030
        %v1139 = vmul.f32 %v1138, %v1013
        %v1140 = vmul.f32 %v1138, %v1014
        %v1141 = vadd.f32 %v1136, %v1139
        %v1142 = vadd.f32 %v1137, %v1140
        %v1143 = vstv %s1031
        %v1144 = vmul.f32 %v1143, %v1050
        %v1145 = vmul.f32 %v1143, %v1051
        %v1146 = vadd.f32 %v1141, %v1144
        %v1147 = vadd.f32 %v1142, %v1145
        %v1148 = vstv %s1032
        %v1149 = vmul.f32 %v1148, %v1056
        %v1150 = vmul.f32 %v1148, %v1057
        %v1151 = vadd.f32 %v1146, %v1149
        %v1152 = vadd.f32 %v1147, %v1150
        %v1153 = vrot.slane %v1151, 1
        %v1154 = vrot.slane %v1152, 1
        %v1155 = vsel %vm938, %v1153, %v1154
        %v1156 = vsel %vm938, %v1154, %v1153
        %v1157 = vsel %vm486, %v1155, 0.0
        %v1158 = vsel %vm487, %v1156, 0.0
        %v1159 = vadd.f32 %v1123, %v1157
        %v1160 = vadd.f32 %v1124, %v1158
        %v1161 = vxor.u32 %v1159, 2147483648
        %v1162 = vxor.u32 %v1160, 2147483648
        %v1163 = vmul.f32 %v1161, 1.442695
        %v1164 = vpow.pop %v1163
        %v1165 = vmul.f32 %v1162, 1.442695
        %v1166 = vpow.pop %v1165
        %v1167 = vadd.f32 %v1164, 1.0
        %v1168 = vadd.f32 %v1166, 1.0
        %v1169 = vrcp.pop %v1167
        %v1170 = vmul.f32 1.0, %v1169
        %v1171 = vrcp.pop %v1168
        %v1172 = vmul.f32 1.0, %v1171
        %s1173 = sld [smem:[#allocation11]]
        %s1174 = sld [smem:[#allocation11 + $0x1]]
        %s1175 = sld [smem:[#allocation11 + $0x2]]
        %s1176 = sld [smem:[#allocation11 + $0x3]]
        %s1177 = sld [smem:[#allocation11 + $0x4]]
        %s1178 = sld [smem:[#allocation11 + $0x5]]
        %s1179 = sld [smem:[#allocation11 + $0x6]]
        %s1180 = sld [smem:[#allocation11 + $0x7]]
        %s1181 = sld [smem:[#allocation11 + $0x8]]
        %s1182 = sld [smem:[#allocation11 + $0x9]]
        %s1183 = sld [smem:[#allocation11 + $0xa]]
        %s1184 = sld [smem:[#allocation11 + $0xb]]
        %s1185 = sld [smem:[#allocation11 + $0xc]]
        %s1186 = sld [smem:[#allocation11 + $0xd]]
        %s1187 = sld [smem:[#allocation11 + $0xe]]
        %s1188 = sld [smem:[#allocation11 + $0xf]]
        %s1189 = sld [smem:[#allocation11 + $0x10]]
        %s1190 = sld [smem:[#allocation11 + $0x11]]
        %s1191 = sld [smem:[#allocation13]]
        %s1192 = sld [smem:[#allocation13 + $0x1]]
        %1193 = vrot.lane.b32.xlu0 %v1170, 1
        %v1194 = vpop.permute.xlu0 %1193
        %1195 = vrot.lane.b32.xlu0 %v1172, 1
        %v1196 = vpop.permute.xlu0 %1195
        %v1197 = vsel %vm488, %v1194, 0.0
        %v1198 = vsel %vm488, %v1196, 0.0
        %1199 = vrot.lane.b32.xlu0 %v1170, 127
        %v1200 = vpop.permute.xlu0 %1199
        %1201 = vrot.lane.b32.xlu0 %v1172, 127
        %v1202 = vpop.permute.xlu0 %1201
        %v1203 = vsel %vm489, %v1200, 0.0
        %v1204 = vsel %vm489, %v1202, 0.0
        %v1205 = vstv %s1191
        %v1206 = vstv %s1192
        %v1207 = vstv %s1173
        %v1208 = vmul.f32 %v1207, %v1197
        %v1209 = vmul.f32 %v1207, %v1198
        %v1210 = vstv %s1175
        %v1211 = vmul.f32 %v1210, %v1170
        %v1212 = vmul.f32 %v1210, %v1172
        %v1213 = vadd.f32 %v1208, %v1211
        %v1214 = vadd.f32 %v1209, %v1212
        %v1215 = vstv %s1177
        %v1216 = vmul.f32 %v1215, %v1203
        %v1217 = vmul.f32 %v1215, %v1204
        %v1218 = vadd.f32 %v1213, %v1216
        %v1219 = vadd.f32 %v1214, %v1217
        %v1220 = vrot.slane %v1218, 7
        %v1221 = vrot.slane %v1219, 7
        %v1222 = vsel %vm685, %v1220, %v1221
        %v1223 = vsel %vm685, %v1221, %v1220
        %v1224 = vsel %vm484, %v1223, 0.0
        %v1225 = vsel %vm485, %v1222, 0.0
        %v1226 = vadd.f32 %v1205, %v1224
        %v1227 = vadd.f32 %v1205, %v1225
        %v1228 = vstv %s1174
        %v1229 = vmul.f32 %v1228, %v1197
        %v1230 = vmul.f32 %v1228, %v1198
        %v1231 = vstv %s1176
        %v1232 = vmul.f32 %v1231, %v1170
        %v1233 = vmul.f32 %v1231, %v1172
        %v1234 = vadd.f32 %v1229, %v1232
        %v1235 = vadd.f32 %v1230, %v1233
        %v1236 = vstv %s1178
        %v1237 = vmul.f32 %v1236, %v1203
        %v1238 = vmul.f32 %v1236, %v1204
        %v1239 = vadd.f32 %v1234, %v1237
        %v1240 = vadd.f32 %v1235, %v1238
        %v1241 = vrot.slane %v1239, 7
        %v1242 = vrot.slane %v1240, 7
        %v1243 = vsel %vm685, %v1241, %v1242
        %v1244 = vsel %vm685, %v1242, %v1241
        %v1245 = vsel %vm484, %v1244, 0.0
        %v1246 = vsel %vm485, %v1243, 0.0
        %v1247 = vadd.f32 %v1206, %v1245
        %v1248 = vadd.f32 %v1206, %v1246
        %v1249 = vstv %s1179
        %v1250 = vmul.f32 %v1249, %v1197
        %v1251 = vmul.f32 %v1249, %v1198
        %v1252 = vstv %s1181
        %v1253 = vmul.f32 %v1252, %v1170
        %v1254 = vmul.f32 %v1252, %v1172
        %v1255 = vadd.f32 %v1250, %v1253
        %v1256 = vadd.f32 %v1251, %v1254
        %v1257 = vstv %s1183
        %v1258 = vmul.f32 %v1257, %v1203
        %v1259 = vmul.f32 %v1257, %v1204
        %v1260 = vadd.f32 %v1255, %v1258
        %v1261 = vadd.f32 %v1256, %v1259
        %v1262 = vadd.f32 %v1226, %v1260
        %v1263 = vadd.f32 %v1227, %v1261
        %v1264 = vstv %s1180
        %v1265 = vmul.f32 %v1264, %v1197
        %v1266 = vmul.f32 %v1264, %v1198
        %v1267 = vstv %s1182
        %v1268 = vmul.f32 %v1267, %v1170
        %v1269 = vmul.f32 %v1267, %v1172
        %v1270 = vadd.f32 %v1265, %v1268
        %v1271 = vadd.f32 %v1266, %v1269
        %v1272 = vstv %s1184
        %v1273 = vmul.f32 %v1272, %v1203
        %v1274 = vmul.f32 %v1272, %v1204
        %v1275 = vadd.f32 %v1270, %v1273
        %v1276 = vadd.f32 %v1271, %v1274
        %v1277 = vadd.f32 %v1247, %v1275
        %v1278 = vadd.f32 %v1248, %v1276
        %v1279 = vstv %s1185
        %v1280 = vmul.f32 %v1279, %v1197
        %v1281 = vmul.f32 %v1279, %v1198
        %v1282 = vstv %s1187
        %v1283 = vmul.f32 %v1282, %v1170
        %v1284 = vmul.f32 %v1282, %v1172
        %v1285 = vadd.f32 %v1280, %v1283
        %v1286 = vadd.f32 %v1281, %v1284
        %v1287 = vstv %s1189
        %v1288 = vmul.f32 %v1287, %v1203
        %v1289 = vmul.f32 %v1287, %v1204
        %v1290 = vadd.f32 %v1285, %v1288
        %v1291 = vadd.f32 %v1286, %v1289
        %v1292 = vrot.slane %v1290, 1
        %v1293 = vrot.slane %v1291, 1
        %v1294 = vsel %vm938, %v1292, %v1293
        %v1295 = vsel %vm938, %v1293, %v1292
        %v1296 = vsel %vm486, %v1294, 0.0
        %v1297 = vsel %vm487, %v1295, 0.0
        %v1298 = vadd.f32 %v1262, %v1296
        %v1299 = vadd.f32 %v1263, %v1297
        %v1300 = vstv %s1186
        %v1301 = vmul.f32 %v1300, %v1197
        %v1302 = vmul.f32 %v1300, %v1198
        %v1303 = vstv %s1188
        %v1304 = vmul.f32 %v1303, %v1170
        %v1305 = vmul.f32 %v1303, %v1172
        %v1306 = vadd.f32 %v1301, %v1304
        %v1307 = vadd.f32 %v1302, %v1305
        %v1308 = vstv %s1190
        %v1309 = vmul.f32 %v1308, %v1203
        %v1310 = vmul.f32 %v1308, %v1204
        %v1311 = vadd.f32 %v1306, %v1309
        %v1312 = vadd.f32 %v1307, %v1310
        %v1313 = vrot.slane %v1311, 1
        %v1314 = vrot.slane %v1312, 1
        %v1315 = vsel %vm938, %v1313, %v1314
        %v1316 = vsel %vm938, %v1314, %v1313
        %v1317 = vsel %vm486, %v1315, 0.0
        %v1318 = vsel %vm487, %v1316, 0.0
        %v1319 = vadd.f32 %v1277, %v1317
        %v1320 = vadd.f32 %v1278, %v1318
        %v1321 = vmax.f32 %v1298, 0.0
        %v1322 = vmax.f32 %v1299, 0.0
        %v1323 = vmax.f32 %v1319, 0.0
        %v1324 = vmax.f32 %v1320, 0.0
        %s1325 = sld [smem:[#allocation14]]
        %s1326 = sld [smem:[#allocation14 + $0x1]]
        %s1327 = sld [smem:[#allocation14 + $0x2]]
        %s1328 = sld [smem:[#allocation14 + $0x3]]
        %s1329 = sld [smem:[#allocation14 + $0x4]]
        %s1330 = sld [smem:[#allocation14 + $0x5]]
        %s1331 = sld [smem:[#allocation14 + $0x6]]
        %s1332 = sld [smem:[#allocation14 + $0x7]]
        %s1333 = sld [smem:[#allocation14 + $0x8]]
        %s1334 = sld [smem:[#allocation14 + $0x9]]
        %s1335 = sld [smem:[#allocation14 + $0xa]]
        %s1336 = sld [smem:[#allocation14 + $0xb]]
        %s1337 = sld [smem:[#allocation14 + $0xc]]
        %s1338 = sld [smem:[#allocation14 + $0xd]]
        %s1339 = sld [smem:[#allocation14 + $0xe]]
        %s1340 = sld [smem:[#allocation14 + $0xf]]
        %s1341 = sld [smem:[#allocation14 + $0x10]]
        %s1342 = sld [smem:[#allocation14 + $0x11]]
        %s1343 = sld [smem:[#allocation14 + $0x12]]
        %s1344 = sld [smem:[#allocation14 + $0x13]]
        %s1345 = sld [smem:[#allocation14 + $0x14]]
        %s1346 = sld [smem:[#allocation14 + $0x15]]
        %s1347 = sld [smem:[#allocation14 + $0x16]]
        %s1348 = sld [smem:[#allocation14 + $0x17]]
        %s1349 = sld [smem:[#allocation14 + $0x18]]
        %s1350 = sld [smem:[#allocation14 + $0x19]]
        %s1351 = sld [smem:[#allocation14 + $0x1a]]
        %s1352 = sld [smem:[#allocation14 + $0x1b]]
        %s1353 = sld [smem:[#allocation14 + $0x1c]]
        %s1354 = sld [smem:[#allocation14 + $0x1d]]
        %s1355 = sld [smem:[#allocation14 + $0x1e]]
        %s1356 = sld [smem:[#allocation14 + $0x1f]]
        %s1357 = sld [smem:[#allocation14 + $0x20]]
        %s1358 = sld [smem:[#allocation14 + $0x21]]
        %s1359 = sld [smem:[#allocation14 + $0x22]]
        %s1360 = sld [smem:[#allocation14 + $0x23]]
        %s1361 = sld [smem:[#allocation14 + $0x24]]
        %s1362 = sld [smem:[#allocation14 + $0x25]]
        %s1363 = sld [smem:[#allocation14 + $0x26]]
        %s1364 = sld [smem:[#allocation14 + $0x27]]
        %s1365 = sld [smem:[#allocation14 + $0x28]]
        %s1366 = sld [smem:[#allocation14 + $0x29]]
        %s1367 = sld [smem:[#allocation14 + $0x2a]]
        %s1368 = sld [smem:[#allocation14 + $0x2b]]
        %s1369 = sld [smem:[#allocation14 + $0x2c]]
        %s1370 = sld [smem:[#allocation14 + $0x2d]]
        %s1371 = sld [smem:[#allocation14 + $0x2e]]
        %s1372 = sld [smem:[#allocation14 + $0x2f]]
        %s1373 = sld [smem:[#allocation14 + $0x30]]
        %s1374 = sld [smem:[#allocation14 + $0x31]]
        %s1375 = sld [smem:[#allocation14 + $0x32]]
        %s1376 = sld [smem:[#allocation14 + $0x33]]
        %s1377 = sld [smem:[#allocation14 + $0x34]]
        %s1378 = sld [smem:[#allocation14 + $0x35]]
        %s1379 = sld [smem:[#allocation14 + $0x36]]
        %s1380 = sld [smem:[#allocation14 + $0x37]]
        %s1381 = sld [smem:[#allocation14 + $0x38]]
        %s1382 = sld [smem:[#allocation14 + $0x39]]
        %s1383 = sld [smem:[#allocation14 + $0x3a]]
        %s1384 = sld [smem:[#allocation14 + $0x3b]]
        %s1385 = sld [smem:[#allocation14 + $0x3c]]
        %s1386 = sld [smem:[#allocation14 + $0x3d]]
        %s1387 = sld [smem:[#allocation14 + $0x3e]]
        %s1388 = sld [smem:[#allocation14 + $0x3f]]
        %s1389 = sld [smem:[#allocation14 + $0x40]]
        %s1390 = sld [smem:[#allocation14 + $0x41]]
        %s1391 = sld [smem:[#allocation14 + $0x42]]
        %s1392 = sld [smem:[#allocation14 + $0x43]]
        %s1393 = sld [smem:[#allocation14 + $0x44]]
        %s1394 = sld [smem:[#allocation14 + $0x45]]
        %s1395 = sld [smem:[#allocation14 + $0x46]]
        %s1396 = sld [smem:[#allocation14 + $0x47]]
        %s1397 = sld [smem:[#allocation16]]
        %s1398 = sld [smem:[#allocation16 + $0x1]]
        %s1399 = sld [smem:[#allocation16 + $0x2]]
        %s1400 = sld [smem:[#allocation16 + $0x3]]
        %1401 = vrot.lane.b32.xlu0 %v1321, 1
        %v1402 = vpop.permute.xlu0 %1401
        %1403 = vrot.lane.b32.xlu0 %v1322, 1
        %v1404 = vpop.permute.xlu0 %1403
        %v1405 = vsel %vm488, %v1402, 0.0
        %v1406 = vsel %vm488, %v1404, 0.0
        %1407 = vrot.lane.b32.xlu0 %v1323, 1
        %v1408 = vpop.permute.xlu0 %1407
        %1409 = vrot.lane.b32.xlu0 %v1324, 1
        %v1410 = vpop.permute.xlu0 %1409
        %v1411 = vsel %vm488, %v1408, 0.0
        %v1412 = vsel %vm488, %v1410, 0.0
        %1413 = vrot.lane.b32.xlu0 %v1321, 127
        %v1414 = vpop.permute.xlu0 %1413
        %1415 = vrot.lane.b32.xlu0 %v1322, 127
        %v1416 = vpop.permute.xlu0 %1415
        %v1417 = vsel %vm489, %v1414, 0.0
        %v1418 = vsel %vm489, %v1416, 0.0
        %1419 = vrot.lane.b32.xlu0 %v1323, 127
        %v1420 = vpop.permute.xlu0 %1419
        %1421 = vrot.lane.b32.xlu0 %v1324, 127
        %v1422 = vpop.permute.xlu0 %1421
        %v1423 = vsel %vm489, %v1420, 0.0
        %v1424 = vsel %vm489, %v1422, 0.0
        %v1425 = vstv %s1397
        %v1426 = vstv %s1398
        %v1427 = vstv %s1399
        %v1428 = vstv %s1400
        %v1429 = vstv %s1325
        %v1430 = vmul.f32 %v1429, %v1405
        %v1431 = vmul.f32 %v1429, %v1406
        %v1432 = vstv %s1329
        %v1433 = vmul.f32 %v1432, %v1411
        %v1434 = vmul.f32 %v1432, %v1412
        %v1435 = vadd.f32 %v1430, %v1433
        %v1436 = vadd.f32 %v1431, %v1434
        %v1437 = vstv %s1333
        %v1438 = vmul.f32 %v1437, %v1321
        %v1439 = vmul.f32 %v1437, %v1322
        %v1440 = vadd.f32 %v1435, %v1438
        %v1441 = vadd.f32 %v1436, %v1439
        %v1442 = vstv %s1337
        %v1443 = vmul.f32 %v1442, %v1323
        %v1444 = vmul.f32 %v1442, %v1324
        %v1445 = vadd.f32 %v1440, %v1443
        %v1446 = vadd.f32 %v1441, %v1444
        %v1447 = vstv %s1341
        %v1448 = vmul.f32 %v1447, %v1417
        %v1449 = vmul.f32 %v1447, %v1418
        %v1450 = vadd.f32 %v1445, %v1448
        %v1451 = vadd.f32 %v1446, %v1449
        %v1452 = vstv %s1345
        %v1453 = vmul.f32 %v1452, %v1423
        %v1454 = vmul.f32 %v1452, %v1424
        %v1455 = vadd.f32 %v1450, %v1453
        %v1456 = vadd.f32 %v1451, %v1454
        %v1457 = vrot.slane %v1455, 7
        %v1458 = vrot.slane %v1456, 7
        %v1459 = vsel %vm685, %v1457, %v1458
        %v1460 = vsel %vm685, %v1458, %v1457
        %v1461 = vsel %vm484, %v1460, 0.0
        %v1462 = vsel %vm485, %v1459, 0.0
        %v1463 = vadd.f32 %v1425, %v1461
        %v1464 = vadd.f32 %v1425, %v1462
        %v1465 = vstv %s1326
        %v1466 = vmul.f32 %v1465, %v1405
        %v1467 = vmul.f32 %v1465, %v1406
        %v1468 = vstv %s1330
        %v1469 = vmul.f32 %v1468, %v1411
        %v1470 = vmul.f32 %v1468, %v1412
        %v1471 = vadd.f32 %v1466, %v1469
        %v1472 = vadd.f32 %v1467, %v1470
        %v1473 = vstv %s1334
        %v1474 = vmul.f32 %v1473, %v1321
        %v1475 = vmul.f32 %v1473, %v1322
        %v1476 = vadd.f32 %v1471, %v1474
        %v1477 = vadd.f32 %v1472, %v1475
        %v1478 = vstv %s1338
        %v1479 = vmul.f32 %v1478, %v1323
        %v1480 = vmul.f32 %v1478, %v1324
        %v1481 = vadd.f32 %v1476, %v1479
        %v1482 = vadd.f32 %v1477, %v1480
        %v1483 = vstv %s1342
        %v1484 = vmul.f32 %v1483, %v1417
        %v1485 = vmul.f32 %v1483, %v1418
        %v1486 = vadd.f32 %v1481, %v1484
        %v1487 = vadd.f32 %v1482, %v1485
        %v1488 = vstv %s1346
        %v1489 = vmul.f32 %v1488, %v1423
        %v1490 = vmul.f32 %v1488, %v1424
        %v1491 = vadd.f32 %v1486, %v1489
        %v1492 = vadd.f32 %v1487, %v1490
        %v1493 = vrot.slane %v1491, 7
        %v1494 = vrot.slane %v1492, 7
        %v1495 = vsel %vm685, %v1493, %v1494
        %v1496 = vsel %vm685, %v1494, %v1493
        %v1497 = vsel %vm484, %v1496, 0.0
        %v1498 = vsel %vm485, %v1495, 0.0
        %v1499 = vadd.f32 %v1426, %v1497
        %v1500 = vadd.f32 %v1426, %v1498
        %v1501 = vstv %s1327
        %v1502 = vmul.f32 %v1501, %v1405
        %v1503 = vmul.f32 %v1501, %v1406
        %v1504 = vstv %s1331
        %v1505 = vmul.f32 %v1504, %v1411
        %v1506 = vmul.f32 %v1504, %v1412
        %v1507 = vadd.f32 %v1502, %v1505
        %v1508 = vadd.f32 %v1503, %v1506
        %v1509 = vstv %s1335
        %v1510 = vmul.f32 %v1509, %v1321
        %v1511 = vmul.f32 %v1509, %v1322
        %v1512 = vadd.f32 %v1507, %v1510
        %v1513 = vadd.f32 %v1508, %v1511
        %v1514 = vstv %s1339
        %v1515 = vmul.f32 %v1514, %v1323
        %v1516 = vmul.f32 %v1514, %v1324
        %v1517 = vadd.f32 %v1512, %v1515
        %v1518 = vadd.f32 %v1513, %v1516
        %v1519 = vstv %s1343
        %v1520 = vmul.f32 %v1519, %v1417
        %v1521 = vmul.f32 %v1519, %v1418
        %v1522 = vadd.f32 %v1517, %v1520
        %v1523 = vadd.f32 %v1518, %v1521
        %v1524 = vstv %s1347
        %v1525 = vmul.f32 %v1524, %v1423
        %v1526 = vmul.f32 %v1524, %v1424
        %v1527 = vadd.f32 %v1522, %v1525
        %v1528 = vadd.f32 %v1523, %v1526
        %v1529 = vrot.slane %v1527, 7
        %v1530 = vrot.slane %v1528, 7
        %v1531 = vsel %vm685, %v1529, %v1530
        %v1532 = vsel %vm685, %v1530, %v1529
        %v1533 = vsel %vm484, %v1532, 0.0
        %v1534 = vsel %vm485, %v1531, 0.0
        %v1535 = vadd.f32 %v1427, %v1533
        %v1536 = vadd.f32 %v1427, %v1534
        %v1537 = vstv %s1328
        %v1538 = vmul.f32 %v1537, %v1405
        %v1539 = vmul.f32 %v1537, %v1406
        %v1540 = vstv %s1332
        %v1541 = vmul.f32 %v1540, %v1411
        %v1542 = vmul.f32 %v1540, %v1412
        %v1543 = vadd.f32 %v1538, %v1541
        %v1544 = vadd.f32 %v1539, %v1542
        %v1545 = vstv %s1336
        %v1546 = vmul.f32 %v1545, %v1321
        %v1547 = vmul.f32 %v1545, %v1322
        %v1548 = vadd.f32 %v1543, %v1546
        %v1549 = vadd.f32 %v1544, %v1547
        %v1550 = vstv %s1340
        %v1551 = vmul.f32 %v1550, %v1323
        %v1552 = vmul.f32 %v1550, %v1324
        %v1553 = vadd.f32 %v1548, %v1551
        %v1554 = vadd.f32 %v1549, %v1552
        %v1555 = vstv %s1344
        %v1556 = vmul.f32 %v1555, %v1417
        %v1557 = vmul.f32 %v1555, %v1418
        %v1558 = vadd.f32 %v1553, %v1556
        %v1559 = vadd.f32 %v1554, %v1557
        %v1560 = vstv %s1348
        %v1561 = vmul.f32 %v1560, %v1423
        %v1562 = vmul.f32 %v1560, %v1424
        %v1563 = vadd.f32 %v1558, %v1561
        %v1564 = vadd.f32 %v1559, %v1562
        %v1565 = vrot.slane %v1563, 7
        %v1566 = vrot.slane %v1564, 7
        %v1567 = vsel %vm685, %v1565, %v1566
        %v1568 = vsel %vm685, %v1566, %v1565
        %v1569 = vsel %vm484, %v1568, 0.0
        %v1570 = vsel %vm485, %v1567, 0.0
        %v1571 = vadd.f32 %v1428, %v1569
        %v1572 = vadd.f32 %v1428, %v1570
        %v1573 = vstv %s1349
        %v1574 = vmul.f32 %v1573, %v1405
        %v1575 = vmul.f32 %v1573, %v1406
        %v1576 = vstv %s1353
        %v1577 = vmul.f32 %v1576, %v1411
        %v1578 = vmul.f32 %v1576, %v1412
        %v1579 = vadd.f32 %v1574, %v1577
        %v1580 = vadd.f32 %v1575, %v1578
        %v1581 = vstv %s1357
        %v1582 = vmul.f32 %v1581, %v1321
        %v1583 = vmul.f32 %v1581, %v1322
        %v1584 = vadd.f32 %v1579, %v1582
        %v1585 = vadd.f32 %v1580, %v1583
        %v1586 = vstv %s1361
        %v1587 = vmul.f32 %v1586, %v1323
        %v1588 = vmul.f32 %v1586, %v1324
        %v1589 = vadd.f32 %v1584, %v1587
        %v1590 = vadd.f32 %v1585, %v1588
        %v1591 = vstv %s1365
        %v1592 = vmul.f32 %v1591, %v1417
        %v1593 = vmul.f32 %v1591, %v1418
        %v1594 = vadd.f32 %v1589, %v1592
        %v1595 = vadd.f32 %v1590, %v1593
        %v1596 = vstv %s1369
        %v1597 = vmul.f32 %v1596, %v1423
        %v1598 = vmul.f32 %v1596, %v1424
        %v1599 = vadd.f32 %v1594, %v1597
        %v1600 = vadd.f32 %v1595, %v1598
        %v1601 = vadd.f32 %v1463, %v1599
        %v1602 = vadd.f32 %v1464, %v1600
        %v1603 = vstv %s1350
        %v1604 = vmul.f32 %v1603, %v1405
        %v1605 = vmul.f32 %v1603, %v1406
        %v1606 = vstv %s1354
        %v1607 = vmul.f32 %v1606, %v1411
        %v1608 = vmul.f32 %v1606, %v1412
        %v1609 = vadd.f32 %v1604, %v1607
        %v1610 = vadd.f32 %v1605, %v1608
        %v1611 = vstv %s1358
        %v1612 = vmul.f32 %v1611, %v1321
        %v1613 = vmul.f32 %v1611, %v1322
        %v1614 = vadd.f32 %v1609, %v1612
        %v1615 = vadd.f32 %v1610, %v1613
        %v1616 = vstv %s1362
        %v1617 = vmul.f32 %v1616, %v1323
        %v1618 = vmul.f32 %v1616, %v1324
        %v1619 = vadd.f32 %v1614, %v1617
        %v1620 = vadd.f32 %v1615, %v1618
        %v1621 = vstv %s1366
        %v1622 = vmul.f32 %v1621, %v1417
        %v1623 = vmul.f32 %v1621, %v1418
        %v1624 = vadd.f32 %v1619, %v1622
        %v1625 = vadd.f32 %v1620, %v1623
        %v1626 = vstv %s1370
        %v1627 = vmul.f32 %v1626, %v1423
        %v1628 = vmul.f32 %v1626, %v1424
        %v1629 = vadd.f32 %v1624, %v1627
        %v1630 = vadd.f32 %v1625, %v1628
        %v1631 = vadd.f32 %v1499, %v1629
        %v1632 = vadd.f32 %v1500, %v1630
        %v1633 = vstv %s1351
        %v1634 = vmul.f32 %v1633, %v1405
        %v1635 = vmul.f32 %v1633, %v1406
        %v1636 = vstv %s1355
        %v1637 = vmul.f32 %v1636, %v1411
        %v1638 = vmul.f32 %v1636, %v1412
        %v1639 = vadd.f32 %v1634, %v1637
        %v1640 = vadd.f32 %v1635, %v1638
        %v1641 = vstv %s1359
        %v1642 = vmul.f32 %v1641, %v1321
        %v1643 = vmul.f32 %v1641, %v1322
        %v1644 = vadd.f32 %v1639, %v1642
        %v1645 = vadd.f32 %v1640, %v1643
        %v1646 = vstv %s1363
        %v1647 = vmul.f32 %v1646, %v1323
        %v1648 = vmul.f32 %v1646, %v1324
        %v1649 = vadd.f32 %v1644, %v1647
        %v1650 = vadd.f32 %v1645, %v1648
        %v1651 = vstv %s1367
        %v1652 = vmul.f32 %v1651, %v1417
        %v1653 = vmul.f32 %v1651, %v1418
        %v1654 = vadd.f32 %v1649, %v1652
        %v1655 = vadd.f32 %v1650, %v1653
        %v1656 = vstv %s1371
        %v1657 = vmul.f32 %v1656, %v1423
        %v1658 = vmul.f32 %v1656, %v1424
        %v1659 = vadd.f32 %v1654, %v1657
        %v1660 = vadd.f32 %v1655, %v1658
        %v1661 = vadd.f32 %v1535, %v1659
        %v1662 = vadd.f32 %v1536, %v1660
        %v1663 = vstv %s1352
        %v1664 = vmul.f32 %v1663, %v1405
        %v1665 = vmul.f32 %v1663, %v1406
        %v1666 = vstv %s1356
        %v1667 = vmul.f32 %v1666, %v1411
        %v1668 = vmul.f32 %v1666, %v1412
        %v1669 = vadd.f32 %v1664, %v1667
        %v1670 = vadd.f32 %v1665, %v1668
        %v1671 = vstv %s1360
        %v1672 = vmul.f32 %v1671, %v1321
        %v1673 = vmul.f32 %v1671, %v1322
        %v1674 = vadd.f32 %v1669, %v1672
        %v1675 = vadd.f32 %v1670, %v1673
        %v1676 = vstv %s1364
        %v1677 = vmul.f32 %v1676, %v1323
        %v1678 = vmul.f32 %v1676, %v1324
        %v1679 = vadd.f32 %v1674, %v1677
        %v1680 = vadd.f32 %v1675, %v1678
        %v1681 = vstv %s1368
        %v1682 = vmul.f32 %v1681, %v1417
        %v1683 = vmul.f32 %v1681, %v1418
        %v1684 = vadd.f32 %v1679, %v1682
        %v1685 = vadd.f32 %v1680, %v1683
        %v1686 = vstv %s1372
        %v1687 = vmul.f32 %v1686, %v1423
        %v1688 = vmul.f32 %v1686, %v1424
        %v1689 = vadd.f32 %v1684, %v1687
        %v1690 = vadd.f32 %v1685, %v1688
        %v1691 = vadd.f32 %v1571, %v1689
        %v1692 = vadd.f32 %v1572, %v1690
        %v1693 = vstv %s1373
        %v1694 = vmul.f32 %v1693, %v1405
        %v1695 = vmul.f32 %v1693, %v1406
        %v1696 = vstv %s1377
        %v1697 = vmul.f32 %v1696, %v1411
        %v1698 = vmul.f32 %v1696, %v1412
        %v1699 = vadd.f32 %v1694, %v1697
        %v1700 = vadd.f32 %v1695, %v1698
        %v1701 = vstv %s1381
        %v1702 = vmul.f32 %v1701, %v1321
        %v1703 = vmul.f32 %v1701, %v1322
        %v1704 = vadd.f32 %v1699, %v1702
        %v1705 = vadd.f32 %v1700, %v1703
        %v1706 = vstv %s1385
        %v1707 = vmul.f32 %v1706, %v1323
        %v1708 = vmul.f32 %v1706, %v1324
        %v1709 = vadd.f32 %v1704, %v1707
        %v1710 = vadd.f32 %v1705, %v1708
        %v1711 = vstv %s1389
        %v1712 = vmul.f32 %v1711, %v1417
        %v1713 = vmul.f32 %v1711, %v1418
        %v1714 = vadd.f32 %v1709, %v1712
        %v1715 = vadd.f32 %v1710, %v1713
        %v1716 = vstv %s1393
        %v1717 = vmul.f32 %v1716, %v1423
        %v1718 = vmul.f32 %v1716, %v1424
        %v1719 = vadd.f32 %v1714, %v1717
        %v1720 = vadd.f32 %v1715, %v1718
        %v1721 = vrot.slane %v1719, 1
        %v1722 = vrot.slane %v1720, 1
        %v1723 = vsel %vm938, %v1721, %v1722
        %v1724 = vsel %vm938, %v1722, %v1721
        %v1725 = vsel %vm486, %v1723, 0.0
        %v1726 = vsel %vm487, %v1724, 0.0
        %v1727 = vadd.f32 %v1601, %v1725
        %v1728 = vadd.f32 %v1602, %v1726
        %v1729 = vstv %s1374
        %v1730 = vmul.f32 %v1729, %v1405
        %v1731 = vmul.f32 %v1729, %v1406
        %v1732 = vstv %s1378
        %v1733 = vmul.f32 %v1732, %v1411
        %v1734 = vmul.f32 %v1732, %v1412
        %v1735 = vadd.f32 %v1730, %v1733
        %v1736 = vadd.f32 %v1731, %v1734
        %v1737 = vstv %s1382
        %v1738 = vmul.f32 %v1737, %v1321
        %v1739 = vmul.f32 %v1737, %v1322
        %v1740 = vadd.f32 %v1735, %v1738
        %v1741 = vadd.f32 %v1736, %v1739
        %v1742 = vstv %s1386
        %v1743 = vmul.f32 %v1742, %v1323
        %v1744 = vmul.f32 %v1742, %v1324
        %v1745 = vadd.f32 %v1740, %v1743
        %v1746 = vadd.f32 %v1741, %v1744
        %v1747 = vstv %s1390
        %v1748 = vmul.f32 %v1747, %v1417
        %v1749 = vmul.f32 %v1747, %v1418
        %v1750 = vadd.f32 %v1745, %v1748
        %v1751 = vadd.f32 %v1746, %v1749
        %v1752 = vstv %s1394
        %v1753 = vmul.f32 %v1752, %v1423
        %v1754 = vmul.f32 %v1752, %v1424
        %v1755 = vadd.f32 %v1750, %v1753
        %v1756 = vadd.f32 %v1751, %v1754
        %v1757 = vrot.slane %v1755, 1
        %v1758 = vrot.slane %v1756, 1
        %v1759 = vsel %vm938, %v1757, %v1758
        %v1760 = vsel %vm938, %v1758, %v1757
        %v1761 = vsel %vm486, %v1759, 0.0
        %v1762 = vsel %vm487, %v1760, 0.0
        %v1763 = vadd.f32 %v1631, %v1761
        %v1764 = vadd.f32 %v1632, %v1762
        %v1765 = vstv %s1375
        %v1766 = vmul.f32 %v1765, %v1405
        %v1767 = vmul.f32 %v1765, %v1406
        %v1768 = vstv %s1379
        %v1769 = vmul.f32 %v1768, %v1411
        %v1770 = vmul.f32 %v1768, %v1412
        %v1771 = vadd.f32 %v1766, %v1769
        %v1772 = vadd.f32 %v1767, %v1770
        %v1773 = vstv %s1383
        %v1774 = vmul.f32 %v1773, %v1321
        %v1775 = vmul.f32 %v1773, %v1322
        %v1776 = vadd.f32 %v1771, %v1774
        %v1777 = vadd.f32 %v1772, %v1775
        %v1778 = vstv %s1387
        %v1779 = vmul.f32 %v1778, %v1323
        %v1780 = vmul.f32 %v1778, %v1324
        %v1781 = vadd.f32 %v1776, %v1779
        %v1782 = vadd.f32 %v1777, %v1780
        %v1783 = vstv %s1391
        %v1784 = vmul.f32 %v1783, %v1417
        %v1785 = vmul.f32 %v1783, %v1418
        %v1786 = vadd.f32 %v1781, %v1784
        %v1787 = vadd.f32 %v1782, %v1785
        %v1788 = vstv %s1395
        %v1789 = vmul.f32 %v1788, %v1423
        %v1790 = vmul.f32 %v1788, %v1424
        %v1791 = vadd.f32 %v1786, %v1789
        %v1792 = vadd.f32 %v1787, %v1790
        %v1793 = vrot.slane %v1791, 1
        %v1794 = vrot.slane %v1792, 1
        %v1795 = vsel %vm938, %v1793, %v1794
        %v1796 = vsel %vm938, %v1794, %v1793
        %v1797 = vsel %vm486, %v1795, 0.0
        %v1798 = vsel %vm487, %v1796, 0.0
        %v1799 = vadd.f32 %v1661, %v1797
        %v1800 = vadd.f32 %v1662, %v1798
        %v1801 = vstv %s1376
        %v1802 = vmul.f32 %v1801, %v1405
        %v1803 = vmul.f32 %v1801, %v1406
        %v1804 = vstv %s1380
        %v1805 = vmul.f32 %v1804, %v1411
        %v1806 = vmul.f32 %v1804, %v1412
        %v1807 = vadd.f32 %v1802, %v1805
        %v1808 = vadd.f32 %v1803, %v1806
        %v1809 = vstv %s1384
        %v1810 = vmul.f32 %v1809, %v1321
        %v1811 = vmul.f32 %v1809, %v1322
        %v1812 = vadd.f32 %v1807, %v1810
        %v1813 = vadd.f32 %v1808, %v1811
        %v1814 = vstv %s1388
        %v1815 = vmul.f32 %v1814, %v1323
        %v1816 = vmul.f32 %v1814, %v1324
        %v1817 = vadd.f32 %v1812, %v1815
        %v1818 = vadd.f32 %v1813, %v1816
        %v1819 = vstv %s1392
        %v1820 = vmul.f32 %v1819, %v1417
        %v1821 = vmul.f32 %v1819, %v1418
        %v1822 = vadd.f32 %v1817, %v1820
        %v1823 = vadd.f32 %v1818, %v1821
        %v1824 = vstv %s1396
        %v1825 = vmul.f32 %v1824, %v1423
        %v1826 = vmul.f32 %v1824, %v1424
        %v1827 = vadd.f32 %v1822, %v1825
        %v1828 = vadd.f32 %v1823, %v1826
        %v1829 = vrot.slane %v1827, 1
        %v1830 = vrot.slane %v1828, 1
        %v1831 = vsel %vm938, %v1829, %v1830
        %v1832 = vsel %vm938, %v1830, %v1829
        %v1833 = vsel %vm486, %v1831, 0.0
        %v1834 = vsel %vm487, %v1832, 0.0
        %v1835 = vadd.f32 %v1691, %v1833
        %v1836 = vadd.f32 %v1692, %v1834
        %v1837 = vmax.f32 %v1727, 0.0
        %v1838 = vmax.f32 %v1728, 0.0
        %v1839 = vmax.f32 %v1763, 0.0
        %v1840 = vmax.f32 %v1764, 0.0
        %v1841 = vmax.f32 %v1799, 0.0
        %v1842 = vmax.f32 %v1800, 0.0
        %v1843 = vmax.f32 %v1835, 0.0
        %v1844 = vmax.f32 %v1836, 0.0
        %v1845 = vadd.f32 %v1837, %v490
        %v1846 = vadd.f32 %v1838, %v491
        %1847 = vst [vmem:[%s471] sm:$0xff] %v1845
        %1848 = vst [vmem:[%s471 + $0x8] sm:$0xff] %v1846
        %v1849 = vadd.f32 %v1839, %v493
        %v1850 = vadd.f32 %v1840, %v494
        %s1851 = scalar_lea.vmem %s471, 16 [#allocation17]
        %1852 = vst [vmem:[%s1851] sm:$0xff] %v1849
        %1853 = vst [vmem:[%s1851 + $0x8] sm:$0xff] %v1850
        %v1854 = vadd.f32 %v1841, %v496
        %v1855 = vadd.f32 %v1842, %v497
        %s1856 = scalar_lea.vmem %s471, 32 [#allocation17]
        %1857 = vst [vmem:[%s1856] sm:$0xff] %v1854
        %1858 = vst [vmem:[%s1856 + $0x8] sm:$0xff] %v1855
        %v1859 = vadd.f32 %v1843, %v499
        %v1860 = vadd.f32 %v1844, %v500
        %s1861 = scalar_lea.vmem %s471, 48 [#allocation17]
        %1862 = vst [vmem:[%s1861] sm:$0xff] %v1859
        %1863 = vst [vmem:[%s1861 + $0x8] sm:$0xff] %v1860
        %1864 = vst [vmem:[%s478] sm:$0xff] %v1170
        %1865 = vst [vmem:[%s478 + $0x8] sm:$0xff] %v1172
        %s1866 = sand.u32 %s238, 1
        %s1867 = scalar_lea.sflag [#allocation5], %s1866
        %s1868 = sand.u32 %s238, 1
        %s1869 = smul.addr %s1868, 64
        %s1870 = scalar_lea.vmem [#allocation17], %s1869
        %s1871 = sand.u32 %s264, 1
        %s1872 = scalar_lea.sflag [#allocation19], %s1871
        %s1873 = sand.u32 %s264, 1
        %s1874 = smul.addr %s1873, 16
        %s1875 = scalar_lea.vmem [#allocation18], %s1874
        // Predicated region
        $region89: #{detailbranch_forward.1} parent=55 // pred_check
          %p1876 = pneg %p248
        $region90: #{detailbranch_forward.1} parent=55 // pred_check_branch
          %1878 = sbr.rel (%p1876) target = $region92
        $region91: #{detailbranch_forward.1} parent=55 // pred_region
          %s1880 = ssub.s32 1024, 1024
          %1881 = vsyncadd %s1867, %s1880
          %s1882 = smul.addr %s36, 8
          %s1883 = smul.addr %s1882, 128
          %s1884 = scalar_lea.hbm %s9, %s1883
          %s1885 = sshll.u32 %s1870, 4
          %s1886 = int_to_ptr.vmem [resolvable:$true] %s1885
          %1891 = dma.vmem_to_hbm [thread:$0]  %s1886, 1024, %s1884, %s1867, 128, 128, 8
        $region92: #{detailbranch_forward.1} parent=55 // pred_fallthru
          _
        // Predicated region
        $region93: #{detailbranch_forward.1} parent=55 // pred_check
          %p1892 = pneg %p274
        $region94: #{detailbranch_forward.1} parent=55 // pred_check_branch
          %1894 = sbr.rel (%p1892) target = $region96
        $region95: #{detailbranch_forward.1} parent=55 // pred_region
          %s1896 = ssub.s32 256, 256
          %1897 = vsyncadd %s1872, %s1896
          %s1898 = smul.addr %s36, 2
          %s1899 = smul.addr %s1898, 128
          %s1900 = scalar_lea.hbm %s10, %s1899
          %s1901 = sshll.u32 %s1875, 4
          %s1902 = int_to_ptr.vmem [resolvable:$true] %s1901
          %1907 = dma.vmem_to_hbm [thread:$0]  %s1902, 256, %s1900, %s1872, 128, 128, 8
        $region96: #{detailbranch_forward.1} parent=55 // pred_fallthru
          _
      $region56: #{detailbranch_forward.1} parent=5 // pred_fallthru
        _
      %p1908 = scmp.le.s32.totalorder 2, %s31
      // Predicated region
      $region97: #{detailbranch_forward.1} parent=5 // pred_check
        %p1909 = pneg %p1908
      $region98: #{detailbranch_forward.1} parent=5 // pred_check_branch
        %1911 = sbr.rel (%p1909) target = $region100
      $region99: #{detailbranch_forward.1} parent=5 // pred_region
        %s1912 = ssub.s32 %s31, 2
        // Predicated region
        $region101: #{detailbranch_forward.1} parent=99 // pred_check
          %p1913 = pneg %p254
        $region102: #{detailbranch_forward.1} parent=99 // pred_check_branch
          %1915 = sbr.rel (%p1913) target = $region104
        $region103: #{detailbranch_forward.1} parent=99 // pred_region
          %s1916 = sand.u32 %s239, 1
          %s1917 = scalar_lea.sflag [#allocation5], %s1916
          %s1918 = sand.u32 %s239, 1
          %s1919 = smul.addr %s1918, 64
          %s1920 = scalar_lea.vmem [#allocation17], %s1919
          %1921 = dma.done %s1917, 1024
        $region104: #{detailbranch_forward.1} parent=99 // pred_fallthru
          _
        // Predicated region
        $region105: #{detailbranch_forward.1} parent=99 // pred_check
          %p1922 = pneg %p280
        $region106: #{detailbranch_forward.1} parent=99 // pred_check_branch
          %1924 = sbr.rel (%p1922) target = $region108
        $region107: #{detailbranch_forward.1} parent=99 // pred_region
          %s1925 = sand.u32 %s265, 1
          %s1926 = scalar_lea.sflag [#allocation19], %s1925
          %s1927 = sand.u32 %s265, 1
          %s1928 = smul.addr %s1927, 16
          %s1929 = scalar_lea.vmem [#allocation18], %s1928
          %1930 = dma.done %s1926, 256
        $region108: #{detailbranch_forward.1} parent=99 // pred_fallthru
          _
      $region100: #{detailbranch_forward.1} parent=5 // pred_fallthru
        _
    $region6: #{detailbranch_forward.1} parent=1 // loop_footer
      %s35 = sadd.s32 1, %s31
    $region7: #{detailbranch_forward.1} parent=1 // loop_footer_branch
      %30 = sbr.rel target = $region3
    $region8: #{detailbranch_forward.1} parent=1 // loop_exit
      _
    %1931 = vsyncpa [#allocation4], 1
    %s1932 = scalar_lea.sflag [#allocation4], 1
    %1933 = vsyncpa %s1932, 1
    %1934 = vsyncpa [#allocation5], 1
    %s1935 = scalar_lea.sflag [#allocation5], 1
    %1936 = vsyncpa %s1935, 1
    %1937 = vsyncpa [#allocation19], 1
    %s1938 = scalar_lea.sflag [#allocation19], 1
    %1939 = vsyncpa %s1938, 1
    %1940 = vsyncpa [#allocation6], 1
    %s1941 = scalar_lea.sflag [#allocation6], 1
    %1942 = vsyncpa %s1941, 1
    %1943 = vsyncpa [#allocation9], 1
    %1944 = vsyncpa [#allocation12], 1
    %1945 = vsyncpa [#allocation15], 1

</llo_original>
